<compile_context>
chip_gen: v7x
topology: tpu7x:2x2x1
jax: 0.10.0
libtpu: 0.0.40
codegen_flags: <defaults>
</compile_context>

<pallas_src>
import math
from functools import partial

import numpy as np
import jax
import jax.numpy as jnp
from jax.experimental import pallas as pl
from jax.experimental.pallas import tpu as pltpu


# ---------------- static hyper-parameters (mirror the PyTorch __init__) -----

def get_kernel_num(C, gamma=2, b=1):
    t = math.log2(C) / gamma + b / gamma
    floor = math.floor(t)
    return floor + (1 - floor % 2)


def get_important_channel_num(C, Lambda=0.6):
    floor = math.floor(Lambda * C)
    return floor + floor % 2


# ---------------- host-side (data-independent) setup -------------------------

def build_conv7_tables(H, W, w2_flat, B):
    """7x7 pad-3 conv in flat (H*W) layout, for the sublane-packed pooled maps.

    Returns:
      shifts: 49 static lane-roll amounts so pltpu.roll(v, shift, -1)[p] reads
              v[p + (dy-3)*W + (dx-3)] (row-wrap handled by the mask).
      wmask:  (49, 4B, HW) f32; rows [0, 2B) carry w2[avg-ch] * validity,
              rows [2B, 4B) carry w2[max-ch] * validity (weights premultiplied).
    """
    HW = H * W
    ys = np.arange(H)
    xs = np.arange(W)
    shifts = []
    wmask = np.zeros((49, 4 * B, HW), np.float32)
    t = 0
    for dy in range(7):
        sy = dy - 3
        vy = (ys + sy >= 0) & (ys + sy < H)
        for dx in range(7):
            sx = dx - 3
            vx = (xs + sx >= 0) & (xs + sx < W)
            valid = (vy[:, None] & vx[None, :]).reshape(-1).astype(np.float32)
            wmask[t, :2 * B, :] = w2_flat[0, t] * valid   # avg-channel weight
            wmask[t, 2 * B:, :] = w2_flat[1, t] * valid   # max-channel weight
            s = sy * W + sx
            shifts.append(int((-s) % HW))
            t += 1
    return tuple(shifts), jnp.asarray(wmask)


# ---------------- the Pallas kernel ------------------------------------------

def ham_kernel(x_ref, wmask_ref, lnw_ref, lnb_ref, scal_ref, w1_ref, out_ref, *,
               c_im, c_sub, shifts, k_ch):
    x = x_ref[...]                                           # (B, C, HW) f32
    B, C, HW = x.shape

    alpha = scal_ref[0]
    beta = scal_ref[1]
    b1d = scal_ref[2]
    bn_g = scal_ref[3]
    bn_b = scal_ref[4]

    # ---- ChannelAttention ---------------------------------------------------
    # TODO(synk): fuse the avg & max pooling into a single pass over x.
    f_avg = jnp.mean(x, axis=2)                              # (B, C)
    f_max = jnp.max(x, axis=2)                               # (B, C)
    f_add = 0.5 * (f_avg + f_max) + alpha * f_avg + beta * f_max

    # 1-D "same" conv over channels as k shifted MACs in exact f32 (keeps the
    # attention map m exact -> stable top-k ordering).
    pad = k_ch // 2
    if pad > 0:
        zpad = jnp.zeros((B, pad), jnp.float32)
        fpad = jnp.concatenate([zpad, f_add, zpad], axis=1)  # (B, C + 2*pad)
    else:
        fpad = f_add
    conv1 = jnp.zeros((B, C), jnp.float32) + b1d
    for i in range(k_ch):
        conv1 = conv1 + w1_ref[i] * fpad[:, i:i + C]
    m = jax.nn.sigmoid(conv1)                                # (B, C) attention

    crf = m[:, :, None] * x                                  # channel-refined

    # ---- top-k channel split (torch.topk; ties -> lower channel index) ------
    # "j beats i": lane-axis reduction is the XLU fast path.
    ii = jax.lax.broadcasted_iota(jnp.int32, (C, C), 0)
    jj = jax.lax.broadcasted_iota(jnp.int32, (C, C), 1)
    tie = jj < ii                                            # (C, C) tie-break
    mi = m[:, :, None]
    mj = m[:, None, :]
    beats = (mj > mi) | ((mj == mi) & tie[None, :, :])       # (B, C, C)
    rank = jnp.sum(beats.astype(jnp.float32), axis=2)        # (B, C)
    im_mask = (rank < c_im).astype(jnp.float32)
    # TODO(synk): chunk the (B,C,C) count over lane-blocks for large C.

    # ---- channel reductions -------------------------------------------------
    # Sum reductions on the otherwise-idle MXU (exact enough with HIGHEST);
    # max reductions stay on the VPU/XLU.
    weights = jnp.stack([m, m * im_mask], axis=1)            # (B, 2, C)
    sums = jnp.einsum('bkc,bcp->bkp', weights, x,
                      preferred_element_type=jnp.float32,
                      precision=jax.lax.Precision.HIGHEST)   # (B, 2, HW)
    crf_sum = sums[:, 0, :]                                  # sum_c crf
    imp_sum = sums[:, 1, :]                                  # sum_c imp
    imp_max = jnp.max(im_mask[:, :, None] * crf, axis=1)     # (B, HW)
    sub_max = jnp.max((1.0 - im_mask)[:, :, None] * crf, axis=1)

    im_avg = imp_sum * (1.0 / c_im)                          # mean * (C / C_im)
    sub_avg = (crf_sum - imp_sum) * (1.0 / c_sub)

    # ---- 7x7 pad-3 spatial conv: 49 packed shifted MACs ---------------------
    # Pack the 4 pooled maps onto sublanes: one roll + one mul-add per tap.
    pmaps = jnp.concatenate([im_avg, sub_avg, imp_max, sub_max], axis=0)  # (4B, HW)
    acc = jnp.zeros((4 * B, HW), jnp.float32)
    for t, sh in enumerate(shifts):
        v = pmaps if sh == 0 else pltpu.roll(pmaps, sh, 1)
        acc = acc + v * wmask_ref[t]                         # weights folded in
    conv_im = acc[0:B] + acc[2 * B:3 * B]                    # (B, HW)
    conv_sub = acc[B:2 * B] + acc[3 * B:4 * B]

    # ---- BatchNorm2d(1) (training-mode batch stats) + ReLU + Sigmoid --------
    n_elems = float(B * HW)

    def bn_relu_sig(v):
        mu = jnp.sum(v) / n_elems
        var = jnp.sum((v - mu) ** 2) / n_elems
        vhat = (v - mu) * jax.lax.rsqrt(var + 1e-5) * bn_g + bn_b
        return jax.nn.sigmoid(jnp.maximum(vhat, 0.0))

    a1 = bn_relu_sig(conv_im)                                # (B, HW)
    a2 = bn_relu_sig(conv_sub)

    # refined = imp*a1 + sub*a2; out = relu(refined + residual), fused via a
    # per-channel gate so `imp`/`sub` are never re-materialized.
    gate = a2[:, None, :] + im_mask[:, :, None] * (a1 - a2)[:, None, :]
    out = jnp.maximum(crf * gate + x, 0.0)                   # (B, C, HW)

    # ---- HAM head: global avg pool + LayerNorm(C) ----------------------------
    pooled = jnp.sum(out, axis=2) * (1.0 / HW)               # (B, C)
    mu = jnp.mean(pooled, axis=1, keepdims=True)
    var = jnp.mean((pooled - mu) ** 2, axis=1, keepdims=True)
    normed = (pooled - mu) * jax.lax.rsqrt(var + 1e-6)
    out_ref[...] = normed * lnw_ref[...] + lnb_ref[...]


# ---------------- wrapper -----------------------------------------------------

def ham_forward(x, params):
    B, C, H, W = x.shape
    k = get_kernel_num(C)
    c_im = get_important_channel_num(C)
    c_sub = C - c_im
    HW = H * W

    x_flat = x.reshape(B, C, HW).astype(jnp.float32)
    w2_flat = np.asarray(params["conv2d_w"], np.float32).reshape(2, 49)
    shifts, wmask = build_conv7_tables(H, W, w2_flat, B)      # 49 taps, weighted
    w1d = jnp.asarray(params["conv1d_w"], jnp.float32)        # (k,)
    scal = jnp.stack([params["alpha"], params["beta"], params["conv1d_b"],
                      params["bn_gamma"], params["bn_beta"]]).astype(jnp.float32)
    ln_w = params["ln_w"].reshape(1, C).astype(jnp.float32)
    ln_b = params["ln_b"].reshape(1, C).astype(jnp.float32)

    # VMEM footprint: ~5 live (B,C,HW) buffers (x, crf, gate/out transients)
    # + 49-tap weighted masks + small (B,C)/(B,HW) stuff.  Cap generation-aware.
    big = B * C * HW
    est = 4 * (5 * big + 49 * 4 * B * HW + 2 * B * C * C + 16 * B * HW
               + 2 * C * C + 4 * C)
    cap = 64 * 2**20
    try:
        info = pltpu.get_tpu_info()
        cap = int(getattr(info, "vmem_capacity_bytes", cap))
    except Exception:
        pass
    vmem_limit = int(min(max(2 * est, 32 * 2**20), int(0.85 * cap)))

    kernel = partial(ham_kernel, c_im=float(c_im), c_sub=float(c_sub),
                     shifts=shifts, k_ch=k)
    return pl.pallas_call(
        kernel,
        out_shape=jax.ShapeDtypeStruct((B, C), jnp.float32),
        in_specs=[
            pl.BlockSpec(memory_space=pltpu.MemorySpace.VMEM),   # x (B,C,HW)
            pl.BlockSpec(memory_space=pltpu.MemorySpace.VMEM),   # conv7 weighted masks
            pl.BlockSpec(memory_space=pltpu.MemorySpace.VMEM),   # LN weight
            pl.BlockSpec(memory_space=pltpu.MemorySpace.VMEM),   # LN bias
            pl.BlockSpec(memory_space=pltpu.MemorySpace.SMEM),   # scalar params (5,)
            pl.BlockSpec(memory_space=pltpu.MemorySpace.SMEM),   # conv1d weights (k,)
        ],
        out_specs=pl.BlockSpec(memory_space=pltpu.MemorySpace.VMEM),
        compiler_params=pltpu.CompilerParams(vmem_limit_bytes=vmem_limit),
    )(x_flat, wmask, ln_w, ln_b, scal, w1d)


# ---------------- pure-JAX reference (independent implementation) ------------

@jax.jit
def ham_reference(x, params):
    B, C, H, W = x.shape
    k = get_kernel_num(C)
    c_im = get_important_channel_num(C)
    c_sub = C - c_im
    pad = k // 2

    f_avg = x.mean(axis=(2, 3))
    f_max = x.max(axis=(2, 3))
    f_add = 0.5 * (f_avg + f_max) + params["alpha"] * f_avg + params["beta"] * f_max
    fp = jnp.pad(f_add, ((0, 0), (pad, pad)))
    conv = jnp.zeros((B, C)) + params["conv1d_b"]
    for i in range(k):
        conv = conv + params["conv1d_w"][i] * fp[:, i:i + C]
    m = jax.nn.sigmoid(conv)                                 # (B, C)
    crf = m[:, :, None, None] * x

    idx = jnp.argsort(-m, axis=1)[:, :c_im]                  # stable, descending
    im_mask = jnp.zeros((B, C)).at[jnp.arange(B)[:, None], idx].set(1.0)
    sub_mask = 1.0 - im_mask
    imp = im_mask[:, :, None, None] * crf
    sub = sub_mask[:, :, None, None] * crf

    im_avg = imp.mean(axis=1) * (C / c_im)
    im_max = imp.max(axis=1)
    sub_avg = sub.mean(axis=1) * (C / c_sub)
    sub_max = sub.max(axis=1)

    w2 = params["conv2d_w"]

    def conv7(avg, mx):
        v = jnp.stack([avg, mx], axis=1)                     # (B, 2, H, W)
        vp = jnp.pad(v, ((0, 0), (0, 0), (3, 3), (3, 3)))
        out = jnp.zeros((B, H, W))
        for ci in range(2):
            for dy in range(7):
                for dx in range(7):
                    out = out + w2[ci, dy, dx] * vp[:, ci, dy:dy + H, dx:dx + W]
        return out

    def bn_relu_sig(v):
        mu = v.mean()
        var = ((v - mu) ** 2).mean()
        vhat = (v - mu) / jnp.sqrt(var + 1e-5) * params["bn_gamma"] + params["bn_beta"]
        return jax.nn.sigmoid(jnp.maximum(vhat, 0.0))

    a1 = bn_relu_sig(conv7(im_avg, im_max))[:, None]         # (B, 1, H, W)
    a2 = bn_relu_sig(conv7(sub_avg, sub_max))[:, None]
    refined = imp * a1 + sub * a2

    out = jnp.maximum(refined + x, 0.0).mean(axis=(2, 3))    # (B, C)
    mu = out.mean(axis=1, keepdims=True)
    var = ((out - mu) ** 2).mean(axis=1, keepdims=True)
    return (out - mu) / jnp.sqrt(var + 1e-6) * params["ln_w"] + params["ln_b"]


# ---------------- deterministic parameter init --------------------------------

def init_params(C, key):
    k = get_kernel_num(C)
    k1, k2, k3 = jax.random.split(key, 3)
    return {
        "alpha": jnp.float32(0.5),
        "beta": jnp.float32(0.5),
        "conv1d_w": jax.random.normal(k1, (k,), jnp.float32) * 0.5,
        "conv1d_b": jax.random.normal(k2, (), jnp.float32) * 0.1,
        "conv2d_w": jax.random.normal(k3, (2, 7, 7), jnp.float32)
                    * (1.0 / math.sqrt(2 * 49)),
        "bn_gamma": jnp.float32(1.0),
        "bn_beta": jnp.float32(0.0),
        "ln_w": jnp.ones((C,), jnp.float32),
        "ln_b": jnp.zeros((C,), jnp.float32),
    }


if __name__ == "__main__":
    B, C, H, W = 2, 16, 16, 16
    root = jax.random.PRNGKey(0)
    kx, kp = jax.random.split(root)
    x = jax.random.normal(kx, (B, C, H, W), jnp.float32)
    params = init_params(C, kp)

    out = ham_forward(x, params)
    jax.block_until_ready(out)

    ref = ham_reference(x, params)
    np.testing.assert_allclose(np.asarray(out), np.asarray(ref),
                               rtol=1e-3, atol=1e-3)
    print("KERNEL_OK")
</pallas_src>

<mosaic_0001>
module attributes {stable_mosaic.version = 11 : i64} {
  func.func @ham_kernel(%arg0: memref<2x16x256xf32, #tpu.memory_space<vmem>>, %arg1: memref<49x8x256xf32, #tpu.memory_space<vmem>>, %arg2: memref<1x16xf32, #tpu.memory_space<vmem>>, %arg3: memref<1x16xf32, #tpu.memory_space<vmem>>, %arg4: memref<5xf32, #tpu.memory_space<smem>>, %arg5: memref<3xf32, #tpu.memory_space<smem>>, %arg6: memref<2x16xf32, #tpu.memory_space<vmem>>) attributes {dimension_semantics = [], scalar_prefetch = 0 : i64, scratch_operands = 0 : i64, tpu.core_type = #tpu.core_type<tc>} {
    %c0 = arith.constant 0 : index
    %c0_0 = arith.constant 0 : index
    %c0_1 = arith.constant 0 : index
    %0 = vector.load %arg0[%c0, %c0_0, %c0_1] : memref<2x16x256xf32, #tpu.memory_space<vmem>>, vector<2x16x256xf32>
    %c0_2 = arith.constant 0 : index
    %1 = memref.load %arg4[%c0_2] : memref<5xf32, #tpu.memory_space<smem>>
    %c1 = arith.constant 1 : index
    %2 = memref.load %arg4[%c1] : memref<5xf32, #tpu.memory_space<smem>>
    %c2 = arith.constant 2 : index
    %3 = memref.load %arg4[%c2] : memref<5xf32, #tpu.memory_space<smem>>
    %c3 = arith.constant 3 : index
    %4 = memref.load %arg4[%c3] : memref<5xf32, #tpu.memory_space<smem>>
    %c4 = arith.constant 4 : index
    %5 = memref.load %arg4[%c4] : memref<5xf32, #tpu.memory_space<smem>>
    %cst = arith.constant dense<0.000000e+00> : vector<2x16xf32>
    %6 = vector.multi_reduction <add>, %0, %cst [2] : vector<2x16x256xf32> to vector<2x16xf32>
    %cst_3 = arith.constant 2.560000e+02 : f32
    %7 = vector.broadcast %cst_3 : f32 to vector<2x16xf32>
    %8 = arith.divf %6, %7 : vector<2x16xf32>
    %cst_4 = arith.constant dense<0xFF800000> : vector<2x16xf32>
    %9 = vector.multi_reduction <maximumf>, %0, %cst_4 [2] : vector<2x16x256xf32> to vector<2x16xf32>
    %10 = arith.addf %8, %9 : vector<2x16xf32>
    %cst_5 = arith.constant 5.000000e-01 : f32
    %11 = vector.broadcast %cst_5 : f32 to vector<2x16xf32>
    %12 = arith.mulf %11, %10 : vector<2x16xf32>
    %13 = vector.broadcast %1 : f32 to vector<2x16xf32>
    %14 = arith.mulf %13, %8 : vector<2x16xf32>
    %15 = arith.addf %12, %14 : vector<2x16xf32>
    %16 = vector.broadcast %2 : f32 to vector<2x16xf32>
    %17 = arith.mulf %16, %9 : vector<2x16xf32>
    %18 = arith.addf %15, %17 : vector<2x16xf32>
    %cst_6 = arith.constant 0.000000e+00 : f32
    %19 = vector.broadcast %cst_6 : f32 to vector<2x1xf32>
    %20 = tpu.concatenate %19, %18, %19 in 1 : vector<2x1xf32>, vector<2x16xf32>, vector<2x1xf32> -> vector<2x18xf32>
    %cst_7 = arith.constant 0.000000e+00 : f32
    %21 = vector.broadcast %cst_7 : f32 to vector<2x16xf32>
    %22 = vector.broadcast %3 : f32 to vector<2x16xf32>
    %23 = arith.addf %21, %22 : vector<2x16xf32>
    %c0_8 = arith.constant 0 : index
    %24 = memref.load %arg5[%c0_8] : memref<3xf32, #tpu.memory_space<smem>>
    %25 = vector.extract_strided_slice %20 {offsets = [0, 0], sizes = [2, 16], strides = [1, 1]} : vector<2x18xf32> to vector<2x16xf32>
    %26 = vector.broadcast %24 : f32 to vector<2x16xf32>
    %27 = arith.mulf %26, %25 : vector<2x16xf32>
    %28 = arith.addf %23, %27 : vector<2x16xf32>
    %c1_9 = arith.constant 1 : index
    %29 = memref.load %arg5[%c1_9] : memref<3xf32, #tpu.memory_space<smem>>
    %30 = vector.extract_strided_slice %20 {offsets = [0, 1], sizes = [2, 16], strides = [1, 1]} : vector<2x18xf32> to vector<2x16xf32>
    %31 = vector.broadcast %29 : f32 to vector<2x16xf32>
    %32 = arith.mulf %31, %30 : vector<2x16xf32>
    %33 = arith.addf %28, %32 : vector<2x16xf32>
    %c2_10 = arith.constant 2 : index
    %34 = memref.load %arg5[%c2_10] : memref<3xf32, #tpu.memory_space<smem>>
    %35 = vector.extract_strided_slice %20 {offsets = [0, 2], sizes = [2, 16], strides = [1, 1]} : vector<2x18xf32> to vector<2x16xf32>
    %36 = vector.broadcast %34 : f32 to vector<2x16xf32>
    %37 = arith.mulf %36, %35 : vector<2x16xf32>
    %38 = arith.addf %33, %37 : vector<2x16xf32>
    %39 = arith.negf %38 : vector<2x16xf32>
    %40 = math.exp %39 : vector<2x16xf32>
    %cst_11 = arith.constant 1.000000e+00 : f32
    %41 = vector.broadcast %cst_11 : f32 to vector<2x16xf32>
    %42 = arith.addf %41, %40 : vector<2x16xf32>
    %43 = arith.divf %41, %42 : vector<2x16xf32>
    %44 = vector.shape_cast %43 : vector<2x16xf32> to vector<2x16x1xf32>
    %45 = vector.broadcast %44 : vector<2x16x1xf32> to vector<2x16x256xf32>
    %46 = arith.mulf %45, %0 : vector<2x16x256xf32>
    %47 = tpu.iota {dimensions = array<i32: 0>} : vector<16x16xi32>
    %48 = tpu.iota {dimensions = array<i32: 1>} : vector<16x16xi32>
    %49 = arith.cmpi slt, %48, %47 : vector<16x16xi32>
    %50 = vector.shape_cast %43 : vector<2x16xf32> to vector<2x16x1xf32>
    %51 = vector.shape_cast %43 : vector<2x16xf32> to vector<2x1x16xf32>
    %52 = vector.broadcast %51 : vector<2x1x16xf32> to vector<2x16x16xf32>
    %53 = vector.broadcast %50 : vector<2x16x1xf32> to vector<2x16x16xf32>
    %54 = arith.cmpf ogt, %52, %53 : vector<2x16x16xf32>
    %55 = vector.broadcast %51 : vector<2x1x16xf32> to vector<2x16x16xf32>
    %56 = vector.broadcast %50 : vector<2x16x1xf32> to vector<2x16x16xf32>
    %57 = arith.cmpf oeq, %55, %56 : vector<2x16x16xf32>
    %58 = vector.shape_cast %49 : vector<16x16xi1> to vector<1x16x16xi1>
    %59 = vector.broadcast %58 : vector<1x16x16xi1> to vector<2x16x16xi1>
    %60 = arith.andi %57, %59 : vector<2x16x16xi1>
    %61 = arith.ori %54, %60 : vector<2x16x16xi1>
    %62 = arith.extui %61 : vector<2x16x16xi1> to vector<2x16x16xi32>
    %63 = arith.sitofp %62 : vector<2x16x16xi32> to vector<2x16x16xf32>
    %cst_12 = arith.constant dense<0.000000e+00> : vector<2x16xf32>
    %64 = vector.multi_reduction <add>, %63, %cst_12 [2] : vector<2x16x16xf32> to vector<2x16xf32>
    %cst_13 = arith.constant 1.000000e+01 : f32
    %65 = vector.broadcast %cst_13 : f32 to vector<2x16xf32>
    %66 = arith.cmpf olt, %64, %65 : vector<2x16xf32>
    %67 = arith.extui %66 : vector<2x16xi1> to vector<2x16xi32>
    %68 = arith.sitofp %67 : vector<2x16xi32> to vector<2x16xf32>
    %69 = arith.mulf %43, %68 : vector<2x16xf32>
    %70 = vector.shape_cast %43 : vector<2x16xf32> to vector<2x1x16xf32>
    %71 = vector.shape_cast %69 : vector<2x16xf32> to vector<2x1x16xf32>
    %72 = tpu.concatenate %70, %71 in 1 : vector<2x1x16xf32>, vector<2x1x16xf32> -> vector<2x2x16xf32>
    "tpu.trace_start"() <{level = 10 : i32, message = "bkc,bcp->bkp"}> : () -> ()
    %cst_14 = arith.constant dense<0.000000e+00> : vector<2x2x256xf32>
    %73 = tpu.matmul %72, %0, %cst_14 {dimension_numbers = #tpu.dot_dimension_numbers<[2], [1], [1], [2], [0, 0, 0, 1, 1, 2], [0], [0]>, precision = #tpu.contract_precision<fp32>} : vector<2x2x16xf32>, vector<2x16x256xf32>, vector<2x2x256xf32> -> vector<2x2x256xf32>
    "tpu.trace_stop"() : () -> ()
    %74 = vector.extract_strided_slice %73 {offsets = [0, 0, 0], sizes = [2, 1, 256], strides = [1, 1, 1]} : vector<2x2x256xf32> to vector<2x1x256xf32>
    %75 = vector.shape_cast %74 : vector<2x1x256xf32> to vector<2x256xf32>
    %76 = vector.extract_strided_slice %73 {offsets = [0, 1, 0], sizes = [2, 1, 256], strides = [1, 1, 1]} : vector<2x2x256xf32> to vector<2x1x256xf32>
    %77 = vector.shape_cast %76 : vector<2x1x256xf32> to vector<2x256xf32>
    %78 = vector.shape_cast %68 : vector<2x16xf32> to vector<2x16x1xf32>
    %79 = vector.broadcast %78 : vector<2x16x1xf32> to vector<2x16x256xf32>
    %80 = arith.mulf %79, %46 : vector<2x16x256xf32>
    %cst_15 = arith.constant dense<0xFF800000> : vector<2x256xf32>
    %81 = vector.multi_reduction <maximumf>, %80, %cst_15 [1] : vector<2x16x256xf32> to vector<2x256xf32>
    %cst_16 = arith.constant 1.000000e+00 : f32
    %82 = vector.broadcast %cst_16 : f32 to vector<2x16xf32>
    %83 = arith.subf %82, %68 : vector<2x16xf32>
    %84 = vector.shape_cast %83 : vector<2x16xf32> to vector<2x16x1xf32>
    %85 = vector.broadcast %84 : vector<2x16x1xf32> to vector<2x16x256xf32>
    %86 = arith.mulf %85, %46 : vector<2x16x256xf32>
    %cst_17 = arith.constant dense<0xFF800000> : vector<2x256xf32>
    %87 = vector.multi_reduction <maximumf>, %86, %cst_17 [1] : vector<2x16x256xf32> to vector<2x256xf32>
    %cst_18 = arith.constant 1.000000e-01 : f32
    %88 = vector.broadcast %cst_18 : f32 to vector<2x256xf32>
    %89 = arith.mulf %77, %88 : vector<2x256xf32>
    %90 = arith.subf %75, %77 : vector<2x256xf32>
    %cst_19 = arith.constant 0.166666672 : f32
    %91 = vector.broadcast %cst_19 : f32 to vector<2x256xf32>
    %92 = arith.mulf %90, %91 : vector<2x256xf32>
    %93 = tpu.concatenate %89, %92, %81, %87 in 0 : vector<2x256xf32>, vector<2x256xf32>, vector<2x256xf32>, vector<2x256xf32> -> vector<8x256xf32>
    %cst_20 = arith.constant 0.000000e+00 : f32
    %94 = vector.broadcast %cst_20 : f32 to vector<8x256xf32>
    %c51_i32 = arith.constant 51 : i32
    %95 = tpu.dynamic_rotate %93 by %c51_i32 dim 1 : vector<8x256xf32>, i32 -> vector<8x256xf32>
    %c0_21 = arith.constant 0 : index
    %c0_22 = arith.constant 0 : index
    %c0_23 = arith.constant 0 : index
    %96 = vector.load %arg1[%c0_21, %c0_22, %c0_23] : memref<49x8x256xf32, #tpu.memory_space<vmem>>, vector<1x8x256xf32>
    %97 = vector.shape_cast %96 : vector<1x8x256xf32> to vector<8x256xf32>
    %98 = arith.mulf %95, %97 : vector<8x256xf32>
    %99 = arith.addf %94, %98 : vector<8x256xf32>
    %c50_i32 = arith.constant 50 : i32
    %100 = tpu.dynamic_rotate %93 by %c50_i32 dim 1 : vector<8x256xf32>, i32 -> vector<8x256xf32>
    %c1_24 = arith.constant 1 : index
    %c0_25 = arith.constant 0 : index
    %c0_26 = arith.constant 0 : index
    %101 = vector.load %arg1[%c1_24, %c0_25, %c0_26] : memref<49x8x256xf32, #tpu.memory_space<vmem>>, vector<1x8x256xf32>
    %102 = vector.shape_cast %101 : vector<1x8x256xf32> to vector<8x256xf32>
    %103 = arith.mulf %100, %102 : vector<8x256xf32>
    %104 = arith.addf %99, %103 : vector<8x256xf32>
    %c49_i32 = arith.constant 49 : i32
    %105 = tpu.dynamic_rotate %93 by %c49_i32 dim 1 : vector<8x256xf32>, i32 -> vector<8x256xf32>
    %c2_27 = arith.constant 2 : index
    %c0_28 = arith.constant 0 : index
    %c0_29 = arith.constant 0 : index
    %106 = vector.load %arg1[%c2_27, %c0_28, %c0_29] : memref<49x8x256xf32, #tpu.memory_space<vmem>>, vector<1x8x256xf32>
    %107 = vector.shape_cast %106 : vector<1x8x256xf32> to vector<8x256xf32>
    %108 = arith.mulf %105, %107 : vector<8x256xf32>
    %109 = arith.addf %104, %108 : vector<8x256xf32>
    %c48_i32 = arith.constant 48 : i32
    %110 = tpu.dynamic_rotate %93 by %c48_i32 dim 1 : vector<8x256xf32>, i32 -> vector<8x256xf32>
    %c3_30 = arith.constant 3 : index
    %c0_31 = arith.constant 0 : index
    %c0_32 = arith.constant 0 : index
    %111 = vector.load %arg1[%c3_30, %c0_31, %c0_32] : memref<49x8x256xf32, #tpu.memory_space<vmem>>, vector<1x8x256xf32>
    %112 = vector.shape_cast %111 : vector<1x8x256xf32> to vector<8x256xf32>
    %113 = arith.mulf %110, %112 : vector<8x256xf32>
    %114 = arith.addf %109, %113 : vector<8x256xf32>
    %c47_i32 = arith.constant 47 : i32
    %115 = tpu.dynamic_rotate %93 by %c47_i32 dim 1 : vector<8x256xf32>, i32 -> vector<8x256xf32>
    %c4_33 = arith.constant 4 : index
    %c0_34 = arith.constant 0 : index
    %c0_35 = arith.constant 0 : index
    %116 = vector.load %arg1[%c4_33, %c0_34, %c0_35] : memref<49x8x256xf32, #tpu.memory_space<vmem>>, vector<1x8x256xf32>
    %117 = vector.shape_cast %116 : vector<1x8x256xf32> to vector<8x256xf32>
    %118 = arith.mulf %115, %117 : vector<8x256xf32>
    %119 = arith.addf %114, %118 : vector<8x256xf32>
    %c46_i32 = arith.constant 46 : i32
    %120 = tpu.dynamic_rotate %93 by %c46_i32 dim 1 : vector<8x256xf32>, i32 -> vector<8x256xf32>
    %c5 = arith.constant 5 : index
    %c0_36 = arith.constant 0 : index
    %c0_37 = arith.constant 0 : index
    %121 = vector.load %arg1[%c5, %c0_36, %c0_37] : memref<49x8x256xf32, #tpu.memory_space<vmem>>, vector<1x8x256xf32>
    %122 = vector.shape_cast %121 : vector<1x8x256xf32> to vector<8x256xf32>
    %123 = arith.mulf %120, %122 : vector<8x256xf32>
    %124 = arith.addf %119, %123 : vector<8x256xf32>
    %c45_i32 = arith.constant 45 : i32
    %125 = tpu.dynamic_rotate %93 by %c45_i32 dim 1 : vector<8x256xf32>, i32 -> vector<8x256xf32>
    %c6 = arith.constant 6 : index
    %c0_38 = arith.constant 0 : index
    %c0_39 = arith.constant 0 : index
    %126 = vector.load %arg1[%c6, %c0_38, %c0_39] : memref<49x8x256xf32, #tpu.memory_space<vmem>>, vector<1x8x256xf32>
    %127 = vector.shape_cast %126 : vector<1x8x256xf32> to vector<8x256xf32>
    %128 = arith.mulf %125, %127 : vector<8x256xf32>
    %129 = arith.addf %124, %128 : vector<8x256xf32>
    %c35_i32 = arith.constant 35 : i32
    %130 = tpu.dynamic_rotate %93 by %c35_i32 dim 1 : vector<8x256xf32>, i32 -> vector<8x256xf32>
    %c7 = arith.constant 7 : index
    %c0_40 = arith.constant 0 : index
    %c0_41 = arith.constant 0 : index
    %131 = vector.load %arg1[%c7, %c0_40, %c0_41] : memref<49x8x256xf32, #tpu.memory_space<vmem>>, vector<1x8x256xf32>
    %132 = vector.shape_cast %131 : vector<1x8x256xf32> to vector<8x256xf32>
    %133 = arith.mulf %130, %132 : vector<8x256xf32>
    %134 = arith.addf %129, %133 : vector<8x256xf32>
    %c34_i32 = arith.constant 34 : i32
    %135 = tpu.dynamic_rotate %93 by %c34_i32 dim 1 : vector<8x256xf32>, i32 -> vector<8x256xf32>
    %c8 = arith.constant 8 : index
    %c0_42 = arith.constant 0 : index
    %c0_43 = arith.constant 0 : index
    %136 = vector.load %arg1[%c8, %c0_42, %c0_43] : memref<49x8x256xf32, #tpu.memory_space<vmem>>, vector<1x8x256xf32>
    %137 = vector.shape_cast %136 : vector<1x8x256xf32> to vector<8x256xf32>
    %138 = arith.mulf %135, %137 : vector<8x256xf32>
    %139 = arith.addf %134, %138 : vector<8x256xf32>
    %c33_i32 = arith.constant 33 : i32
    %140 = tpu.dynamic_rotate %93 by %c33_i32 dim 1 : vector<8x256xf32>, i32 -> vector<8x256xf32>
    %c9 = arith.constant 9 : index
    %c0_44 = arith.constant 0 : index
    %c0_45 = arith.constant 0 : index
    %141 = vector.load %arg1[%c9, %c0_44, %c0_45] : memref<49x8x256xf32, #tpu.memory_space<vmem>>, vector<1x8x256xf32>
    %142 = vector.shape_cast %141 : vector<1x8x256xf32> to vector<8x256xf32>
    %143 = arith.mulf %140, %142 : vector<8x256xf32>
    %144 = arith.addf %139, %143 : vector<8x256xf32>
    %c32_i32 = arith.constant 32 : i32
    %145 = tpu.dynamic_rotate %93 by %c32_i32 dim 1 : vector<8x256xf32>, i32 -> vector<8x256xf32>
    %c10 = arith.constant 10 : index
    %c0_46 = arith.constant 0 : index
    %c0_47 = arith.constant 0 : index
    %146 = vector.load %arg1[%c10, %c0_46, %c0_47] : memref<49x8x256xf32, #tpu.memory_space<vmem>>, vector<1x8x256xf32>
    %147 = vector.shape_cast %146 : vector<1x8x256xf32> to vector<8x256xf32>
    %148 = arith.mulf %145, %147 : vector<8x256xf32>
    %149 = arith.addf %144, %148 : vector<8x256xf32>
    %c31_i32 = arith.constant 31 : i32
    %150 = tpu.dynamic_rotate %93 by %c31_i32 dim 1 : vector<8x256xf32>, i32 -> vector<8x256xf32>
    %c11 = arith.constant 11 : index
    %c0_48 = arith.constant 0 : index
    %c0_49 = arith.constant 0 : index
    %151 = vector.load %arg1[%c11, %c0_48, %c0_49] : memref<49x8x256xf32, #tpu.memory_space<vmem>>, vector<1x8x256xf32>
    %152 = vector.shape_cast %151 : vector<1x8x256xf32> to vector<8x256xf32>
    %153 = arith.mulf %150, %152 : vector<8x256xf32>
    %154 = arith.addf %149, %153 : vector<8x256xf32>
    %c30_i32 = arith.constant 30 : i32
    %155 = tpu.dynamic_rotate %93 by %c30_i32 dim 1 : vector<8x256xf32>, i32 -> vector<8x256xf32>
    %c12 = arith.constant 12 : index
    %c0_50 = arith.constant 0 : index
    %c0_51 = arith.constant 0 : index
    %156 = vector.load %arg1[%c12, %c0_50, %c0_51] : memref<49x8x256xf32, #tpu.memory_space<vmem>>, vector<1x8x256xf32>
    %157 = vector.shape_cast %156 : vector<1x8x256xf32> to vector<8x256xf32>
    %158 = arith.mulf %155, %157 : vector<8x256xf32>
    %159 = arith.addf %154, %158 : vector<8x256xf32>
    %c29_i32 = arith.constant 29 : i32
    %160 = tpu.dynamic_rotate %93 by %c29_i32 dim 1 : vector<8x256xf32>, i32 -> vector<8x256xf32>
    %c13 = arith.constant 13 : index
    %c0_52 = arith.constant 0 : index
    %c0_53 = arith.constant 0 : index
    %161 = vector.load %arg1[%c13, %c0_52, %c0_53] : memref<49x8x256xf32, #tpu.memory_space<vmem>>, vector<1x8x256xf32>
    %162 = vector.shape_cast %161 : vector<1x8x256xf32> to vector<8x256xf32>
    %163 = arith.mulf %160, %162 : vector<8x256xf32>
    %164 = arith.addf %159, %163 : vector<8x256xf32>
    %c19_i32 = arith.constant 19 : i32
    %165 = tpu.dynamic_rotate %93 by %c19_i32 dim 1 : vector<8x256xf32>, i32 -> vector<8x256xf32>
    %c14 = arith.constant 14 : index
    %c0_54 = arith.constant 0 : index
    %c0_55 = arith.constant 0 : index
    %166 = vector.load %arg1[%c14, %c0_54, %c0_55] : memref<49x8x256xf32, #tpu.memory_space<vmem>>, vector<1x8x256xf32>
    %167 = vector.shape_cast %166 : vector<1x8x256xf32> to vector<8x256xf32>
    %168 = arith.mulf %165, %167 : vector<8x256xf32>
    %169 = arith.addf %164, %168 : vector<8x256xf32>
    %c18_i32 = arith.constant 18 : i32
    %170 = tpu.dynamic_rotate %93 by %c18_i32 dim 1 : vector<8x256xf32>, i32 -> vector<8x256xf32>
    %c15 = arith.constant 15 : index
    %c0_56 = arith.constant 0 : index
    %c0_57 = arith.constant 0 : index
    %171 = vector.load %arg1[%c15, %c0_56, %c0_57] : memref<49x8x256xf32, #tpu.memory_space<vmem>>, vector<1x8x256xf32>
    %172 = vector.shape_cast %171 : vector<1x8x256xf32> to vector<8x256xf32>
    %173 = arith.mulf %170, %172 : vector<8x256xf32>
    %174 = arith.addf %169, %173 : vector<8x256xf32>
    %c17_i32 = arith.constant 17 : i32
    %175 = tpu.dynamic_rotate %93 by %c17_i32 dim 1 : vector<8x256xf32>, i32 -> vector<8x256xf32>
    %c16 = arith.constant 16 : index
    %c0_58 = arith.constant 0 : index
    %c0_59 = arith.constant 0 : index
    %176 = vector.load %arg1[%c16, %c0_58, %c0_59] : memref<49x8x256xf32, #tpu.memory_space<vmem>>, vector<1x8x256xf32>
    %177 = vector.shape_cast %176 : vector<1x8x256xf32> to vector<8x256xf32>
    %178 = arith.mulf %175, %177 : vector<8x256xf32>
    %179 = arith.addf %174, %178 : vector<8x256xf32>
    %c16_i32 = arith.constant 16 : i32
    %180 = tpu.dynamic_rotate %93 by %c16_i32 dim 1 : vector<8x256xf32>, i32 -> vector<8x256xf32>
    %c17 = arith.constant 17 : index
    %c0_60 = arith.constant 0 : index
    %c0_61 = arith.constant 0 : index
    %181 = vector.load %arg1[%c17, %c0_60, %c0_61] : memref<49x8x256xf32, #tpu.memory_space<vmem>>, vector<1x8x256xf32>
    %182 = vector.shape_cast %181 : vector<1x8x256xf32> to vector<8x256xf32>
    %183 = arith.mulf %180, %182 : vector<8x256xf32>
    %184 = arith.addf %179, %183 : vector<8x256xf32>
    %c15_i32 = arith.constant 15 : i32
    %185 = tpu.dynamic_rotate %93 by %c15_i32 dim 1 : vector<8x256xf32>, i32 -> vector<8x256xf32>
    %c18 = arith.constant 18 : index
    %c0_62 = arith.constant 0 : index
    %c0_63 = arith.constant 0 : index
    %186 = vector.load %arg1[%c18, %c0_62, %c0_63] : memref<49x8x256xf32, #tpu.memory_space<vmem>>, vector<1x8x256xf32>
    %187 = vector.shape_cast %186 : vector<1x8x256xf32> to vector<8x256xf32>
    %188 = arith.mulf %185, %187 : vector<8x256xf32>
    %189 = arith.addf %184, %188 : vector<8x256xf32>
    %c14_i32 = arith.constant 14 : i32
    %190 = tpu.dynamic_rotate %93 by %c14_i32 dim 1 : vector<8x256xf32>, i32 -> vector<8x256xf32>
    %c19 = arith.constant 19 : index
    %c0_64 = arith.constant 0 : index
    %c0_65 = arith.constant 0 : index
    %191 = vector.load %arg1[%c19, %c0_64, %c0_65] : memref<49x8x256xf32, #tpu.memory_space<vmem>>, vector<1x8x256xf32>
    %192 = vector.shape_cast %191 : vector<1x8x256xf32> to vector<8x256xf32>
    %193 = arith.mulf %190, %192 : vector<8x256xf32>
    %194 = arith.addf %189, %193 : vector<8x256xf32>
    %c13_i32 = arith.constant 13 : i32
    %195 = tpu.dynamic_rotate %93 by %c13_i32 dim 1 : vector<8x256xf32>, i32 -> vector<8x256xf32>
    %c20 = arith.constant 20 : index
    %c0_66 = arith.constant 0 : index
    %c0_67 = arith.constant 0 : index
    %196 = vector.load %arg1[%c20, %c0_66, %c0_67] : memref<49x8x256xf32, #tpu.memory_space<vmem>>, vector<1x8x256xf32>
    %197 = vector.shape_cast %196 : vector<1x8x256xf32> to vector<8x256xf32>
    %198 = arith.mulf %195, %197 : vector<8x256xf32>
    %199 = arith.addf %194, %198 : vector<8x256xf32>
    %c3_i32 = arith.constant 3 : i32
    %200 = tpu.dynamic_rotate %93 by %c3_i32 dim 1 : vector<8x256xf32>, i32 -> vector<8x256xf32>
    %c21 = arith.constant 21 : index
    %c0_68 = arith.constant 0 : index
    %c0_69 = arith.constant 0 : index
    %201 = vector.load %arg1[%c21, %c0_68, %c0_69] : memref<49x8x256xf32, #tpu.memory_space<vmem>>, vector<1x8x256xf32>
    %202 = vector.shape_cast %201 : vector<1x8x256xf32> to vector<8x256xf32>
    %203 = arith.mulf %200, %202 : vector<8x256xf32>
    %204 = arith.addf %199, %203 : vector<8x256xf32>
    %c2_i32 = arith.constant 2 : i32
    %205 = tpu.dynamic_rotate %93 by %c2_i32 dim 1 : vector<8x256xf32>, i32 -> vector<8x256xf32>
    %c22 = arith.constant 22 : index
    %c0_70 = arith.constant 0 : index
    %c0_71 = arith.constant 0 : index
    %206 = vector.load %arg1[%c22, %c0_70, %c0_71] : memref<49x8x256xf32, #tpu.memory_space<vmem>>, vector<1x8x256xf32>
    %207 = vector.shape_cast %206 : vector<1x8x256xf32> to vector<8x256xf32>
    %208 = arith.mulf %205, %207 : vector<8x256xf32>
    %209 = arith.addf %204, %208 : vector<8x256xf32>
    %c1_i32 = arith.constant 1 : i32
    %210 = tpu.dynamic_rotate %93 by %c1_i32 dim 1 : vector<8x256xf32>, i32 -> vector<8x256xf32>
    %c23 = arith.constant 23 : index
    %c0_72 = arith.constant 0 : index
    %c0_73 = arith.constant 0 : index
    %211 = vector.load %arg1[%c23, %c0_72, %c0_73] : memref<49x8x256xf32, #tpu.memory_space<vmem>>, vector<1x8x256xf32>
    %212 = vector.shape_cast %211 : vector<1x8x256xf32> to vector<8x256xf32>
    %213 = arith.mulf %210, %212 : vector<8x256xf32>
    %214 = arith.addf %209, %213 : vector<8x256xf32>
    %c24 = arith.constant 24 : index
    %c0_74 = arith.constant 0 : index
    %c0_75 = arith.constant 0 : index
    %215 = vector.load %arg1[%c24, %c0_74, %c0_75] : memref<49x8x256xf32, #tpu.memory_space<vmem>>, vector<1x8x256xf32>
    %216 = vector.shape_cast %215 : vector<1x8x256xf32> to vector<8x256xf32>
    %217 = arith.mulf %93, %216 : vector<8x256xf32>
    %218 = arith.addf %214, %217 : vector<8x256xf32>
    %c255_i32 = arith.constant 255 : i32
    %219 = tpu.dynamic_rotate %93 by %c255_i32 dim 1 : vector<8x256xf32>, i32 -> vector<8x256xf32>
    %c25 = arith.constant 25 : index
    %c0_76 = arith.constant 0 : index
    %c0_77 = arith.constant 0 : index
    %220 = vector.load %arg1[%c25, %c0_76, %c0_77] : memref<49x8x256xf32, #tpu.memory_space<vmem>>, vector<1x8x256xf32>
    %221 = vector.shape_cast %220 : vector<1x8x256xf32> to vector<8x256xf32>
    %222 = arith.mulf %219, %221 : vector<8x256xf32>
    %223 = arith.addf %218, %222 : vector<8x256xf32>
    %c254_i32 = arith.constant 254 : i32
    %224 = tpu.dynamic_rotate %93 by %c254_i32 dim 1 : vector<8x256xf32>, i32 -> vector<8x256xf32>
    %c26 = arith.constant 26 : index
    %c0_78 = arith.constant 0 : index
    %c0_79 = arith.constant 0 : index
    %225 = vector.load %arg1[%c26, %c0_78, %c0_79] : memref<49x8x256xf32, #tpu.memory_space<vmem>>, vector<1x8x256xf32>
    %226 = vector.shape_cast %225 : vector<1x8x256xf32> to vector<8x256xf32>
    %227 = arith.mulf %224, %226 : vector<8x256xf32>
    %228 = arith.addf %223, %227 : vector<8x256xf32>
    %c253_i32 = arith.constant 253 : i32
    %229 = tpu.dynamic_rotate %93 by %c253_i32 dim 1 : vector<8x256xf32>, i32 -> vector<8x256xf32>
    %c27 = arith.constant 27 : index
    %c0_80 = arith.constant 0 : index
    %c0_81 = arith.constant 0 : index
    %230 = vector.load %arg1[%c27, %c0_80, %c0_81] : memref<49x8x256xf32, #tpu.memory_space<vmem>>, vector<1x8x256xf32>
    %231 = vector.shape_cast %230 : vector<1x8x256xf32> to vector<8x256xf32>
    %232 = arith.mulf %229, %231 : vector<8x256xf32>
    %233 = arith.addf %228, %232 : vector<8x256xf32>
    %c243_i32 = arith.constant 243 : i32
    %234 = tpu.dynamic_rotate %93 by %c243_i32 dim 1 : vector<8x256xf32>, i32 -> vector<8x256xf32>
    %c28 = arith.constant 28 : index
    %c0_82 = arith.constant 0 : index
    %c0_83 = arith.constant 0 : index
    %235 = vector.load %arg1[%c28, %c0_82, %c0_83] : memref<49x8x256xf32, #tpu.memory_space<vmem>>, vector<1x8x256xf32>
    %236 = vector.shape_cast %235 : vector<1x8x256xf32> to vector<8x256xf32>
    %237 = arith.mulf %234, %236 : vector<8x256xf32>
    %238 = arith.addf %233, %237 : vector<8x256xf32>
    %c242_i32 = arith.constant 242 : i32
    %239 = tpu.dynamic_rotate %93 by %c242_i32 dim 1 : vector<8x256xf32>, i32 -> vector<8x256xf32>
    %c29 = arith.constant 29 : index
    %c0_84 = arith.constant 0 : index
    %c0_85 = arith.constant 0 : index
    %240 = vector.load %arg1[%c29, %c0_84, %c0_85] : memref<49x8x256xf32, #tpu.memory_space<vmem>>, vector<1x8x256xf32>
    %241 = vector.shape_cast %240 : vector<1x8x256xf32> to vector<8x256xf32>
    %242 = arith.mulf %239, %241 : vector<8x256xf32>
    %243 = arith.addf %238, %242 : vector<8x256xf32>
    %c241_i32 = arith.constant 241 : i32
    %244 = tpu.dynamic_rotate %93 by %c241_i32 dim 1 : vector<8x256xf32>, i32 -> vector<8x256xf32>
    %c30 = arith.constant 30 : index
    %c0_86 = arith.constant 0 : index
    %c0_87 = arith.constant 0 : index
    %245 = vector.load %arg1[%c30, %c0_86, %c0_87] : memref<49x8x256xf32, #tpu.memory_space<vmem>>, vector<1x8x256xf32>
    %246 = vector.shape_cast %245 : vector<1x8x256xf32> to vector<8x256xf32>
    %247 = arith.mulf %244, %246 : vector<8x256xf32>
    %248 = arith.addf %243, %247 : vector<8x256xf32>
    %c240_i32 = arith.constant 240 : i32
    %249 = tpu.dynamic_rotate %93 by %c240_i32 dim 1 : vector<8x256xf32>, i32 -> vector<8x256xf32>
    %c31 = arith.constant 31 : index
    %c0_88 = arith.constant 0 : index
    %c0_89 = arith.constant 0 : index
    %250 = vector.load %arg1[%c31, %c0_88, %c0_89] : memref<49x8x256xf32, #tpu.memory_space<vmem>>, vector<1x8x256xf32>
    %251 = vector.shape_cast %250 : vector<1x8x256xf32> to vector<8x256xf32>
    %252 = arith.mulf %249, %251 : vector<8x256xf32>
    %253 = arith.addf %248, %252 : vector<8x256xf32>
    %c239_i32 = arith.constant 239 : i32
    %254 = tpu.dynamic_rotate %93 by %c239_i32 dim 1 : vector<8x256xf32>, i32 -> vector<8x256xf32>
    %c32 = arith.constant 32 : index
    %c0_90 = arith.constant 0 : index
    %c0_91 = arith.constant 0 : index
    %255 = vector.load %arg1[%c32, %c0_90, %c0_91] : memref<49x8x256xf32, #tpu.memory_space<vmem>>, vector<1x8x256xf32>
    %256 = vector.shape_cast %255 : vector<1x8x256xf32> to vector<8x256xf32>
    %257 = arith.mulf %254, %256 : vector<8x256xf32>
    %258 = arith.addf %253, %257 : vector<8x256xf32>
    %c238_i32 = arith.constant 238 : i32
    %259 = tpu.dynamic_rotate %93 by %c238_i32 dim 1 : vector<8x256xf32>, i32 -> vector<8x256xf32>
    %c33 = arith.constant 33 : index
    %c0_92 = arith.constant 0 : index
    %c0_93 = arith.constant 0 : index
    %260 = vector.load %arg1[%c33, %c0_92, %c0_93] : memref<49x8x256xf32, #tpu.memory_space<vmem>>, vector<1x8x256xf32>
    %261 = vector.shape_cast %260 : vector<1x8x256xf32> to vector<8x256xf32>
    %262 = arith.mulf %259, %261 : vector<8x256xf32>
    %263 = arith.addf %258, %262 : vector<8x256xf32>
    %c237_i32 = arith.constant 237 : i32
    %264 = tpu.dynamic_rotate %93 by %c237_i32 dim 1 : vector<8x256xf32>, i32 -> vector<8x256xf32>
    %c34 = arith.constant 34 : index
    %c0_94 = arith.constant 0 : index
    %c0_95 = arith.constant 0 : index
    %265 = vector.load %arg1[%c34, %c0_94, %c0_95] : memref<49x8x256xf32, #tpu.memory_space<vmem>>, vector<1x8x256xf32>
    %266 = vector.shape_cast %265 : vector<1x8x256xf32> to vector<8x256xf32>
    %267 = arith.mulf %264, %266 : vector<8x256xf32>
    %268 = arith.addf %263, %267 : vector<8x256xf32>
    %c227_i32 = arith.constant 227 : i32
    %269 = tpu.dynamic_rotate %93 by %c227_i32 dim 1 : vector<8x256xf32>, i32 -> vector<8x256xf32>
    %c35 = arith.constant 35 : index
    %c0_96 = arith.constant 0 : index
    %c0_97 = arith.constant 0 : index
    %270 = vector.load %arg1[%c35, %c0_96, %c0_97] : memref<49x8x256xf32, #tpu.memory_space<vmem>>, vector<1x8x256xf32>
    %271 = vector.shape_cast %270 : vector<1x8x256xf32> to vector<8x256xf32>
    %272 = arith.mulf %269, %271 : vector<8x256xf32>
    %273 = arith.addf %268, %272 : vector<8x256xf32>
    %c226_i32 = arith.constant 226 : i32
    %274 = tpu.dynamic_rotate %93 by %c226_i32 dim 1 : vector<8x256xf32>, i32 -> vector<8x256xf32>
    %c36 = arith.constant 36 : index
    %c0_98 = arith.constant 0 : index
    %c0_99 = arith.constant 0 : index
    %275 = vector.load %arg1[%c36, %c0_98, %c0_99] : memref<49x8x256xf32, #tpu.memory_space<vmem>>, vector<1x8x256xf32>
    %276 = vector.shape_cast %275 : vector<1x8x256xf32> to vector<8x256xf32>
    %277 = arith.mulf %274, %276 : vector<8x256xf32>
    %278 = arith.addf %273, %277 : vector<8x256xf32>
    %c225_i32 = arith.constant 225 : i32
    %279 = tpu.dynamic_rotate %93 by %c225_i32 dim 1 : vector<8x256xf32>, i32 -> vector<8x256xf32>
    %c37 = arith.constant 37 : index
    %c0_100 = arith.constant 0 : index
    %c0_101 = arith.constant 0 : index
    %280 = vector.load %arg1[%c37, %c0_100, %c0_101] : memref<49x8x256xf32, #tpu.memory_space<vmem>>, vector<1x8x256xf32>
    %281 = vector.shape_cast %280 : vector<1x8x256xf32> to vector<8x256xf32>
    %282 = arith.mulf %279, %281 : vector<8x256xf32>
    %283 = arith.addf %278, %282 : vector<8x256xf32>
    %c224_i32 = arith.constant 224 : i32
    %284 = tpu.dynamic_rotate %93 by %c224_i32 dim 1 : vector<8x256xf32>, i32 -> vector<8x256xf32>
    %c38 = arith.constant 38 : index
    %c0_102 = arith.constant 0 : index
    %c0_103 = arith.constant 0 : index
    %285 = vector.load %arg1[%c38, %c0_102, %c0_103] : memref<49x8x256xf32, #tpu.memory_space<vmem>>, vector<1x8x256xf32>
    %286 = vector.shape_cast %285 : vector<1x8x256xf32> to vector<8x256xf32>
    %287 = arith.mulf %284, %286 : vector<8x256xf32>
    %288 = arith.addf %283, %287 : vector<8x256xf32>
    %c223_i32 = arith.constant 223 : i32
    %289 = tpu.dynamic_rotate %93 by %c223_i32 dim 1 : vector<8x256xf32>, i32 -> vector<8x256xf32>
    %c39 = arith.constant 39 : index
    %c0_104 = arith.constant 0 : index
    %c0_105 = arith.constant 0 : index
    %290 = vector.load %arg1[%c39, %c0_104, %c0_105] : memref<49x8x256xf32, #tpu.memory_space<vmem>>, vector<1x8x256xf32>
    %291 = vector.shape_cast %290 : vector<1x8x256xf32> to vector<8x256xf32>
    %292 = arith.mulf %289, %291 : vector<8x256xf32>
    %293 = arith.addf %288, %292 : vector<8x256xf32>
    %c222_i32 = arith.constant 222 : i32
    %294 = tpu.dynamic_rotate %93 by %c222_i32 dim 1 : vector<8x256xf32>, i32 -> vector<8x256xf32>
    %c40 = arith.constant 40 : index
    %c0_106 = arith.constant 0 : index
    %c0_107 = arith.constant 0 : index
    %295 = vector.load %arg1[%c40, %c0_106, %c0_107] : memref<49x8x256xf32, #tpu.memory_space<vmem>>, vector<1x8x256xf32>
    %296 = vector.shape_cast %295 : vector<1x8x256xf32> to vector<8x256xf32>
    %297 = arith.mulf %294, %296 : vector<8x256xf32>
    %298 = arith.addf %293, %297 : vector<8x256xf32>
    %c221_i32 = arith.constant 221 : i32
    %299 = tpu.dynamic_rotate %93 by %c221_i32 dim 1 : vector<8x256xf32>, i32 -> vector<8x256xf32>
    %c41 = arith.constant 41 : index
    %c0_108 = arith.constant 0 : index
    %c0_109 = arith.constant 0 : index
    %300 = vector.load %arg1[%c41, %c0_108, %c0_109] : memref<49x8x256xf32, #tpu.memory_space<vmem>>, vector<1x8x256xf32>
    %301 = vector.shape_cast %300 : vector<1x8x256xf32> to vector<8x256xf32>
    %302 = arith.mulf %299, %301 : vector<8x256xf32>
    %303 = arith.addf %298, %302 : vector<8x256xf32>
    %c211_i32 = arith.constant 211 : i32
    %304 = tpu.dynamic_rotate %93 by %c211_i32 dim 1 : vector<8x256xf32>, i32 -> vector<8x256xf32>
    %c42 = arith.constant 42 : index
    %c0_110 = arith.constant 0 : index
    %c0_111 = arith.constant 0 : index
    %305 = vector.load %arg1[%c42, %c0_110, %c0_111] : memref<49x8x256xf32, #tpu.memory_space<vmem>>, vector<1x8x256xf32>
    %306 = vector.shape_cast %305 : vector<1x8x256xf32> to vector<8x256xf32>
    %307 = arith.mulf %304, %306 : vector<8x256xf32>
    %308 = arith.addf %303, %307 : vector<8x256xf32>
    %c210_i32 = arith.constant 210 : i32
    %309 = tpu.dynamic_rotate %93 by %c210_i32 dim 1 : vector<8x256xf32>, i32 -> vector<8x256xf32>
    %c43 = arith.constant 43 : index
    %c0_112 = arith.constant 0 : index
    %c0_113 = arith.constant 0 : index
    %310 = vector.load %arg1[%c43, %c0_112, %c0_113] : memref<49x8x256xf32, #tpu.memory_space<vmem>>, vector<1x8x256xf32>
    %311 = vector.shape_cast %310 : vector<1x8x256xf32> to vector<8x256xf32>
    %312 = arith.mulf %309, %311 : vector<8x256xf32>
    %313 = arith.addf %308, %312 : vector<8x256xf32>
    %c209_i32 = arith.constant 209 : i32
    %314 = tpu.dynamic_rotate %93 by %c209_i32 dim 1 : vector<8x256xf32>, i32 -> vector<8x256xf32>
    %c44 = arith.constant 44 : index
    %c0_114 = arith.constant 0 : index
    %c0_115 = arith.constant 0 : index
    %315 = vector.load %arg1[%c44, %c0_114, %c0_115] : memref<49x8x256xf32, #tpu.memory_space<vmem>>, vector<1x8x256xf32>
    %316 = vector.shape_cast %315 : vector<1x8x256xf32> to vector<8x256xf32>
    %317 = arith.mulf %314, %316 : vector<8x256xf32>
    %318 = arith.addf %313, %317 : vector<8x256xf32>
    %c208_i32 = arith.constant 208 : i32
    %319 = tpu.dynamic_rotate %93 by %c208_i32 dim 1 : vector<8x256xf32>, i32 -> vector<8x256xf32>
    %c45 = arith.constant 45 : index
    %c0_116 = arith.constant 0 : index
    %c0_117 = arith.constant 0 : index
    %320 = vector.load %arg1[%c45, %c0_116, %c0_117] : memref<49x8x256xf32, #tpu.memory_space<vmem>>, vector<1x8x256xf32>
    %321 = vector.shape_cast %320 : vector<1x8x256xf32> to vector<8x256xf32>
    %322 = arith.mulf %319, %321 : vector<8x256xf32>
    %323 = arith.addf %318, %322 : vector<8x256xf32>
    %c207_i32 = arith.constant 207 : i32
    %324 = tpu.dynamic_rotate %93 by %c207_i32 dim 1 : vector<8x256xf32>, i32 -> vector<8x256xf32>
    %c46 = arith.constant 46 : index
    %c0_118 = arith.constant 0 : index
    %c0_119 = arith.constant 0 : index
    %325 = vector.load %arg1[%c46, %c0_118, %c0_119] : memref<49x8x256xf32, #tpu.memory_space<vmem>>, vector<1x8x256xf32>
    %326 = vector.shape_cast %325 : vector<1x8x256xf32> to vector<8x256xf32>
    %327 = arith.mulf %324, %326 : vector<8x256xf32>
    %328 = arith.addf %323, %327 : vector<8x256xf32>
    %c206_i32 = arith.constant 206 : i32
    %329 = tpu.dynamic_rotate %93 by %c206_i32 dim 1 : vector<8x256xf32>, i32 -> vector<8x256xf32>
    %c47 = arith.constant 47 : index
    %c0_120 = arith.constant 0 : index
    %c0_121 = arith.constant 0 : index
    %330 = vector.load %arg1[%c47, %c0_120, %c0_121] : memref<49x8x256xf32, #tpu.memory_space<vmem>>, vector<1x8x256xf32>
    %331 = vector.shape_cast %330 : vector<1x8x256xf32> to vector<8x256xf32>
    %332 = arith.mulf %329, %331 : vector<8x256xf32>
    %333 = arith.addf %328, %332 : vector<8x256xf32>
    %c205_i32 = arith.constant 205 : i32
    %334 = tpu.dynamic_rotate %93 by %c205_i32 dim 1 : vector<8x256xf32>, i32 -> vector<8x256xf32>
    %c48 = arith.constant 48 : index
    %c0_122 = arith.constant 0 : index
    %c0_123 = arith.constant 0 : index
    %335 = vector.load %arg1[%c48, %c0_122, %c0_123] : memref<49x8x256xf32, #tpu.memory_space<vmem>>, vector<1x8x256xf32>
    %336 = vector.shape_cast %335 : vector<1x8x256xf32> to vector<8x256xf32>
    %337 = arith.mulf %334, %336 : vector<8x256xf32>
    %338 = arith.addf %333, %337 : vector<8x256xf32>
    %339 = vector.extract_strided_slice %338 {offsets = [0, 0], sizes = [2, 256], strides = [1, 1]} : vector<8x256xf32> to vector<2x256xf32>
    %340 = vector.extract_strided_slice %338 {offsets = [4, 0], sizes = [2, 256], strides = [1, 1]} : vector<8x256xf32> to vector<2x256xf32>
    %341 = arith.addf %339, %340 : vector<2x256xf32>
    %342 = vector.extract_strided_slice %338 {offsets = [2, 0], sizes = [2, 256], strides = [1, 1]} : vector<8x256xf32> to vector<2x256xf32>
    %343 = vector.extract_strided_slice %338 {offsets = [6, 0], sizes = [2, 256], strides = [1, 1]} : vector<8x256xf32> to vector<2x256xf32>
    %344 = arith.addf %342, %343 : vector<2x256xf32>
    %345 = vector.shape_cast %341 : vector<2x256xf32> to vector<1x2x256xf32>
    %cst_124 = arith.constant dense<0.000000e+00> : vector<1xf32>
    %346 = vector.multi_reduction <add>, %345, %cst_124 [1, 2] : vector<1x2x256xf32> to vector<1xf32>
    %347 = vector.shape_cast %346 : vector<1xf32> to vector<1x1x1xf32>
    %348 = vector.extract %347[0, 0, 0] : f32 from vector<1x1x1xf32>
    %cst_125 = arith.constant 5.120000e+02 : f32
    %349 = arith.divf %348, %cst_125 : f32
    %350 = vector.broadcast %349 : f32 to vector<2x256xf32>
    %351 = arith.subf %341, %350 : vector<2x256xf32>
    %352 = arith.mulf %351, %351 : vector<2x256xf32>
    %353 = vector.shape_cast %352 : vector<2x256xf32> to vector<1x2x256xf32>
    %cst_126 = arith.constant dense<0.000000e+00> : vector<1xf32>
    %354 = vector.multi_reduction <add>, %353, %cst_126 [1, 2] : vector<1x2x256xf32> to vector<1xf32>
    %355 = vector.shape_cast %354 : vector<1xf32> to vector<1x1x1xf32>
    %356 = vector.extract %355[0, 0, 0] : f32 from vector<1x1x1xf32>
    %cst_127 = arith.constant 5.120000e+02 : f32
    %357 = arith.divf %356, %cst_127 : f32
    %358 = vector.broadcast %349 : f32 to vector<2x256xf32>
    %359 = arith.subf %341, %358 : vector<2x256xf32>
    %cst_128 = arith.constant 9.99999974E-6 : f32
    %360 = arith.addf %357, %cst_128 : f32
    %361 = math.rsqrt %360 : f32
    %362 = vector.broadcast %361 : f32 to vector<2x256xf32>
    %363 = arith.mulf %359, %362 : vector<2x256xf32>
    %364 = vector.broadcast %4 : f32 to vector<2x256xf32>
    %365 = arith.mulf %363, %364 : vector<2x256xf32>
    %366 = vector.broadcast %5 : f32 to vector<2x256xf32>
    %367 = arith.addf %365, %366 : vector<2x256xf32>
    %cst_129 = arith.constant 0.000000e+00 : f32
    %368 = vector.broadcast %cst_129 : f32 to vector<2x256xf32>
    %369 = arith.maximumf %367, %368 : vector<2x256xf32>
    %370 = arith.negf %369 : vector<2x256xf32>
    %371 = math.exp %370 : vector<2x256xf32>
    %cst_130 = arith.constant 1.000000e+00 : f32
    %372 = vector.broadcast %cst_130 : f32 to vector<2x256xf32>
    %373 = arith.addf %372, %371 : vector<2x256xf32>
    %374 = arith.divf %372, %373 : vector<2x256xf32>
    %375 = vector.shape_cast %344 : vector<2x256xf32> to vector<1x2x256xf32>
    %cst_131 = arith.constant dense<0.000000e+00> : vector<1xf32>
    %376 = vector.multi_reduction <add>, %375, %cst_131 [1, 2] : vector<1x2x256xf32> to vector<1xf32>
    %377 = vector.shape_cast %376 : vector<1xf32> to vector<1x1x1xf32>
    %378 = vector.extract %377[0, 0, 0] : f32 from vector<1x1x1xf32>
    %cst_132 = arith.constant 5.120000e+02 : f32
    %379 = arith.divf %378, %cst_132 : f32
    %380 = vector.broadcast %379 : f32 to vector<2x256xf32>
    %381 = arith.subf %344, %380 : vector<2x256xf32>
    %382 = arith.mulf %381, %381 : vector<2x256xf32>
    %383 = vector.shape_cast %382 : vector<2x256xf32> to vector<1x2x256xf32>
    %cst_133 = arith.constant dense<0.000000e+00> : vector<1xf32>
    %384 = vector.multi_reduction <add>, %383, %cst_133 [1, 2] : vector<1x2x256xf32> to vector<1xf32>
    %385 = vector.shape_cast %384 : vector<1xf32> to vector<1x1x1xf32>
    %386 = vector.extract %385[0, 0, 0] : f32 from vector<1x1x1xf32>
    %cst_134 = arith.constant 5.120000e+02 : f32
    %387 = arith.divf %386, %cst_134 : f32
    %388 = vector.broadcast %379 : f32 to vector<2x256xf32>
    %389 = arith.subf %344, %388 : vector<2x256xf32>
    %cst_135 = arith.constant 9.99999974E-6 : f32
    %390 = arith.addf %387, %cst_135 : f32
    %391 = math.rsqrt %390 : f32
    %392 = vector.broadcast %391 : f32 to vector<2x256xf32>
    %393 = arith.mulf %389, %392 : vector<2x256xf32>
    %394 = vector.broadcast %4 : f32 to vector<2x256xf32>
    %395 = arith.mulf %393, %394 : vector<2x256xf32>
    %396 = vector.broadcast %5 : f32 to vector<2x256xf32>
    %397 = arith.addf %395, %396 : vector<2x256xf32>
    %cst_136 = arith.constant 0.000000e+00 : f32
    %398 = vector.broadcast %cst_136 : f32 to vector<2x256xf32>
    %399 = arith.maximumf %397, %398 : vector<2x256xf32>
    %400 = arith.negf %399 : vector<2x256xf32>
    %401 = math.exp %400 : vector<2x256xf32>
    %cst_137 = arith.constant 1.000000e+00 : f32
    %402 = vector.broadcast %cst_137 : f32 to vector<2x256xf32>
    %403 = arith.addf %402, %401 : vector<2x256xf32>
    %404 = arith.divf %402, %403 : vector<2x256xf32>
    %405 = vector.shape_cast %404 : vector<2x256xf32> to vector<2x1x256xf32>
    %406 = vector.shape_cast %68 : vector<2x16xf32> to vector<2x16x1xf32>
    %407 = arith.subf %374, %404 : vector<2x256xf32>
    %408 = vector.shape_cast %407 : vector<2x256xf32> to vector<2x1x256xf32>
    %409 = vector.broadcast %406 : vector<2x16x1xf32> to vector<2x16x256xf32>
    %410 = vector.broadcast %408 : vector<2x1x256xf32> to vector<2x16x256xf32>
    %411 = arith.mulf %409, %410 : vector<2x16x256xf32>
    %412 = vector.broadcast %405 : vector<2x1x256xf32> to vector<2x16x256xf32>
    %413 = arith.addf %412, %411 : vector<2x16x256xf32>
    %414 = arith.mulf %46, %413 : vector<2x16x256xf32>
    %415 = arith.addf %414, %0 : vector<2x16x256xf32>
    %cst_138 = arith.constant 0.000000e+00 : f32
    %416 = vector.broadcast %cst_138 : f32 to vector<2x16x256xf32>
    %417 = arith.maximumf %415, %416 : vector<2x16x256xf32>
    %cst_139 = arith.constant dense<0.000000e+00> : vector<2x16xf32>
    %418 = vector.multi_reduction <add>, %417, %cst_139 [2] : vector<2x16x256xf32> to vector<2x16xf32>
    %cst_140 = arith.constant 3.906250e-03 : f32
    %419 = vector.broadcast %cst_140 : f32 to vector<2x16xf32>
    %420 = arith.mulf %418, %419 : vector<2x16xf32>
    %cst_141 = arith.constant dense<0.000000e+00> : vector<2xf32>
    %421 = vector.multi_reduction <add>, %420, %cst_141 [1] : vector<2x16xf32> to vector<2xf32>
    %422 = vector.shape_cast %421 : vector<2xf32> to vector<2x1xf32>
    %cst_142 = arith.constant 1.600000e+01 : f32
    %423 = vector.broadcast %cst_142 : f32 to vector<2x1xf32>
    %424 = arith.divf %422, %423 : vector<2x1xf32>
    %425 = vector.broadcast %424 : vector<2x1xf32> to vector<2x16xf32>
    %426 = arith.subf %420, %425 : vector<2x16xf32>
    %427 = arith.mulf %426, %426 : vector<2x16xf32>
    %cst_143 = arith.constant dense<0.000000e+00> : vector<2xf32>
    %428 = vector.multi_reduction <add>, %427, %cst_143 [1] : vector<2x16xf32> to vector<2xf32>
    %429 = vector.shape_cast %428 : vector<2xf32> to vector<2x1xf32>
    %cst_144 = arith.constant 1.600000e+01 : f32
    %430 = vector.broadcast %cst_144 : f32 to vector<2x1xf32>
    %431 = arith.divf %429, %430 : vector<2x1xf32>
    %432 = vector.broadcast %424 : vector<2x1xf32> to vector<2x16xf32>
    %433 = arith.subf %420, %432 : vector<2x16xf32>
    %cst_145 = arith.constant 9.99999997E-7 : f32
    %434 = vector.broadcast %cst_145 : f32 to vector<2x1xf32>
    %435 = arith.addf %431, %434 : vector<2x1xf32>
    %436 = math.rsqrt %435 : vector<2x1xf32>
    %437 = vector.broadcast %436 : vector<2x1xf32> to vector<2x16xf32>
    %438 = arith.mulf %433, %437 : vector<2x16xf32>
    %c0_146 = arith.constant 0 : index
    %c0_147 = arith.constant 0 : index
    %439 = vector.load %arg2[%c0_146, %c0_147] : memref<1x16xf32, #tpu.memory_space<vmem>>, vector<1x16xf32>
    %440 = vector.broadcast %439 : vector<1x16xf32> to vector<2x16xf32>
    %441 = arith.mulf %438, %440 : vector<2x16xf32>
    %c0_148 = arith.constant 0 : index
    %c0_149 = arith.constant 0 : index
    %442 = vector.load %arg3[%c0_148, %c0_149] : memref<1x16xf32, #tpu.memory_space<vmem>>, vector<1x16xf32>
    %443 = vector.broadcast %442 : vector<1x16xf32> to vector<2x16xf32>
    %444 = arith.addf %441, %443 : vector<2x16xf32>
    %c0_150 = arith.constant 0 : index
    %c0_151 = arith.constant 0 : index
    %445 = vector.load %arg6[%c0_150, %c0_151] : memref<2x16xf32, #tpu.memory_space<vmem>>, vector<2x16xf32>
    tpu.vector_store %arg6[%c0_150, %c0_151], %444 {strides = array<i32>} : memref<2x16xf32, #tpu.memory_space<vmem>>, vector<2x16xf32>,
    return
  }
}

</mosaic_0001>

<llo_original>
// kernel: tpu_custom_call.1
$region0: #{tpu_custom_call.1}
  #allocation0 [shape = 'u32[]', space=smem, size = 0x4, offset = 0x4, fixed_abs, tag = 'smem constant byte address 0x4 - core index']
  #allocation1 [shape = 'u32[144,128]{1,0:T(1,128)}', space=vmem, size = 0x12000, scoped, tag = 'internal scratch']
  %s0 = inlined_call_operand.hbm [shape: f32[2,16,256], index: 0, kind: input, shape index: {}]
  %s1 = inlined_call_operand.hbm [shape: f32[49,8,256], index: 1, kind: input, shape index: {}]
  %s2 = inlined_call_operand.vmem [shape: f32[1,16], index: 2, kind: input, shape index: {}]
  %s3 = inlined_call_operand.vmem [shape: f32[1,16], index: 3, kind: input, shape index: {}]
  %s4 = inlined_call_operand.vmem [shape: f32[5], index: 4, kind: input, shape index: {}]
  %s5 = inlined_call_operand.vmem [shape: f32[3], index: 5, kind: input, shape index: {}]
  %s6 = inlined_call_operand.hbm [shape: f32[2,16], index: 6, kind: output, shape index: {}]
  %s7 = sld [smem:[#allocation0]]
  $region50: #{tpu_custom_call.1} parent=0
    _
  %s9 = ssub.s32 1, %s7
  %s10 = scalar_select 0, %s9, %s7
  $region1: #{tpu_custom_call.1} parent=0
    #allocation2 [shape = 'u8[32768]{0}', space=vmem, size = 0x8000, scoped, tag = 'input window, operand 0, single buffered']
    #allocation3 [shape = 's32[1]{0}', space=sflag, size = 0x4, scoped, tag = 'scoped memory for tpu_custom_call.1']
    #allocation4 [shape = 's32[1]{0}', space=sflag, size = 0x4, scoped, tag = 'scoped memory for tpu_custom_call.1']
    #allocation5 [shape = 's32[1]{0}', space=sflag, size = 0x4, scoped, tag = 'scoped memory for tpu_custom_call.1']
    #allocation6 [shape = 'u8[401408]{0}', space=vmem, size = 0x62000, scoped, tag = 'input window, operand 1, single buffered']
    #allocation7 [shape = 's32[1]{0}', space=sflag, size = 0x4, scoped, tag = 'scoped memory for tpu_custom_call.1']
    #allocation8 [shape = 'u8[512]{0}', space=smem, size = 0x200, scoped, tag = 'input window, operand 4, single buffered']
    #allocation9 [shape = 'u8[512]{0}', space=smem, size = 0x200, scoped, tag = 'input window, operand 5, single buffered']
    #allocation10 [shape = 's32[1]{0}', space=sflag, size = 0x4, scoped, tag = 'scoped memory for tpu_custom_call.1']
    #allocation11 [shape = 'u8[1024]{0}', space=vmem, size = 0x400, scoped, tag = 'output window, operand 0, single buffered']
    %11 = vsyncpa [#allocation3], 0
    %12 = vsyncpa [#allocation7], 0
    %13 = vsyncpa [#allocation5], 0
    %14 = vsyncpa [#allocation10], 0
    %15 = vsyncpa [#allocation4], 0
    // Predicated region
    $region2: #{tpu_custom_call.1} parent=1 // pred_check
      _
    $region3: #{tpu_custom_call.1} parent=1 // pred_check_branch
      %17 = sbr.rel (0) target = $region5
    $region4: #{tpu_custom_call.1} parent=1 // pred_region
      %s19 = ssub.s32 1024, 1024
      %20 = vsyncadd [#allocation3], %s19
      %s21 = sshll.u32 [#allocation2], 4
      %s22 = int_to_ptr.vmem [resolvable:$true] %s21
      %27 = dma.hbm_to_vmem [thread:$0]  %s0, 1024, %s22, [#allocation3], 256, 256, 16
    $region5: #{tpu_custom_call.1} parent=1 // pred_fallthru
      _
    // Predicated region
    $region6: #{tpu_custom_call.1} parent=1 // pred_check
      _
    $region7: #{tpu_custom_call.1} parent=1 // pred_check_branch
      %29 = sbr.rel (0) target = $region9
    $region8: #{tpu_custom_call.1} parent=1 // pred_region
      %s31 = ssub.s32 12544, 12544
      %32 = vsyncadd [#allocation7], %s31
      %s33 = sshll.u32 [#allocation6], 4
      %s34 = int_to_ptr.vmem [resolvable:$true] %s33
      %39 = dma.hbm_to_vmem [thread:$0]  %s1, 12544, %s34, [#allocation7], 256, 256, 16
    $region9: #{tpu_custom_call.1} parent=1 // pred_fallthru
      _
    // Predicated region
    $region10: #{tpu_custom_call.1} parent=1 // pred_check
      _
    $region11: #{tpu_custom_call.1} parent=1 // pred_check_branch
      %41 = sbr.rel (0) target = $region13
    $region12: #{tpu_custom_call.1} parent=1 // pred_region
      _
    $region13: #{tpu_custom_call.1} parent=1 // pred_fallthru
      _
    // Predicated region
    $region14: #{tpu_custom_call.1} parent=1 // pred_check
      _
    $region15: #{tpu_custom_call.1} parent=1 // pred_check_branch
      %43 = sbr.rel (0) target = $region17
    $region16: #{tpu_custom_call.1} parent=1 // pred_region
      _
    $region17: #{tpu_custom_call.1} parent=1 // pred_fallthru
      _
    // Predicated region
    $region18: #{tpu_custom_call.1} parent=1 // pred_check
      _
    $region19: #{tpu_custom_call.1} parent=1 // pred_check_branch
      %45 = sbr.rel (0) target = $region21
    $region20: #{tpu_custom_call.1} parent=1 // pred_region
      %s47 = ssub.s32 16, 16
      %48 = vsyncadd [#allocation5], %s47
      %s50 = sshll.u32 %s4, 4
      %s51 = int_to_ptr.vmem [resolvable:$true] %s50
      %53 = dma.vmem_to_smem %s51, 16, [#allocation8], [#allocation5]
    $region21: #{tpu_custom_call.1} parent=1 // pred_fallthru
      _
    // Predicated region
    $region22: #{tpu_custom_call.1} parent=1 // pred_check
      _
    $region23: #{tpu_custom_call.1} parent=1 // pred_check_branch
      %55 = sbr.rel (0) target = $region25
    $region24: #{tpu_custom_call.1} parent=1 // pred_region
      %s57 = ssub.s32 16, 16
      %58 = vsyncadd [#allocation10], %s57
      %s60 = sshll.u32 %s5, 4
      %s61 = int_to_ptr.vmem [resolvable:$true] %s60
      %63 = dma.vmem_to_smem %s61, 16, [#allocation9], [#allocation10]
    $region25: #{tpu_custom_call.1} parent=1 // pred_fallthru
      _
    // Predicated region
    $region26: #{tpu_custom_call.1} parent=1 // pred_check
      _
    $region27: #{tpu_custom_call.1} parent=1 // pred_check_branch
      %65 = sbr.rel (0) target = $region29
    $region28: #{tpu_custom_call.1} parent=1 // pred_region
      %66 = dma.done [#allocation3], 1024
    $region29: #{tpu_custom_call.1} parent=1 // pred_fallthru
      _
    // Predicated region
    $region30: #{tpu_custom_call.1} parent=1 // pred_check
      _
    $region31: #{tpu_custom_call.1} parent=1 // pred_check_branch
      %68 = sbr.rel (0) target = $region33
    $region32: #{tpu_custom_call.1} parent=1 // pred_region
      %69 = dma.done [#allocation7], 12544
    $region33: #{tpu_custom_call.1} parent=1 // pred_fallthru
      _
    // Predicated region
    $region34: #{tpu_custom_call.1} parent=1 // pred_check
      _
    $region35: #{tpu_custom_call.1} parent=1 // pred_check_branch
      %71 = sbr.rel (0) target = $region37
    $region36: #{tpu_custom_call.1} parent=1 // pred_region
      %72 = dma.done [#allocation5], 16
    $region37: #{tpu_custom_call.1} parent=1 // pred_fallthru
      _
    // Predicated region
    $region38: #{tpu_custom_call.1} parent=1 // pred_check
      _
    $region39: #{tpu_custom_call.1} parent=1 // pred_check_branch
      %74 = sbr.rel (0) target = $region41
    $region40: #{tpu_custom_call.1} parent=1 // pred_region
      %75 = dma.done [#allocation10], 16
    $region41: #{tpu_custom_call.1} parent=1 // pred_fallthru
      _
    %76 = sfence
    %v77 = vld [vmem:[#allocation2] sm:$0xff]
    %v78 = vld [vmem:[#allocation2 + $0x8] sm:$0xff]
    %v79 = vld [vmem:[#allocation2 + $0x10] sm:$0xff]
    %v80 = vld [vmem:[#allocation2 + $0x18] sm:$0xff]
    %v81 = vld [vmem:[#allocation2 + $0x20] sm:$0xff]
    %v82 = vld [vmem:[#allocation2 + $0x28] sm:$0xff]
    %v83 = vld [vmem:[#allocation2 + $0x30] sm:$0xff]
    %v84 = vld [vmem:[#allocation2 + $0x38] sm:$0xff]
    %s85 = sld [smem:[#allocation8]]
    %s86 = sld [smem:[#allocation8 + $0x1]]
    %s87 = sld [smem:[#allocation8 + $0x2]]
    %s88 = sld [smem:[#allocation8 + $0x3]]
    %s89 = sld [smem:[#allocation8 + $0x4]]
    %v90 = vadd.f32 %v77, %v78
    %91 = vadd.xlane.f32.xlu0 %v90
    %v92 = vpop.xlane.xlu0 %91
    %v93 = vadd.f32 %v79, %v80
    %94 = vadd.xlane.f32.xlu0 %v93
    %v95 = vpop.xlane.xlu0 %94
    %v96 = vadd.f32 %v81, %v82
    %97 = vadd.xlane.f32.xlu0 %v96
    %v98 = vpop.xlane.xlu0 %97
    %v99 = vadd.f32 %v83, %v84
    %100 = vadd.xlane.f32.xlu0 %v99
    %v101 = vpop.xlane.xlu0 %100
    %v102 = vrcp.pop 256.0
    %v103 = vmul.f32 %v92, %v102
    %v104 = vmul.f32 %v95, %v102
    %v105 = vmul.f32 %v98, %v102
    %v106 = vmul.f32 %v101, %v102
    %v107 = vmax.f32 %v77, %v78
    %108 = vmax.xlane.f32.xlu0 %v107
    %v109 = vpop.xlane.xlu0 %108
    %v110 = vmax.f32 %v79, %v80
    %111 = vmax.xlane.f32.xlu0 %v110
    %v112 = vpop.xlane.xlu0 %111
    %v113 = vmax.f32 %v81, %v82
    %114 = vmax.xlane.f32.xlu0 %v113
    %v115 = vpop.xlane.xlu0 %114
    %v116 = vmax.f32 %v83, %v84
    %117 = vmax.xlane.f32.xlu0 %v116
    %v118 = vpop.xlane.xlu0 %117
    %v119 = vadd.f32 %v103, %v109
    %v120 = vadd.f32 %v104, %v112
    %v121 = vadd.f32 %v105, %v115
    %v122 = vadd.f32 %v106, %v118
    %v123 = vmul.f32 %v119, 0.5
    %v124 = vmul.f32 %v120, 0.5
    %v125 = vmul.f32 %v121, 0.5
    %v126 = vmul.f32 %v122, 0.5
    %v127 = vstv %s85
    %v128 = vmul.f32 %v127, %v103
    %v129 = vmul.f32 %v127, %v104
    %v130 = vmul.f32 %v127, %v105
    %v131 = vmul.f32 %v127, %v106
    %v132 = vadd.f32 %v123, %v128
    %v133 = vadd.f32 %v124, %v129
    %v134 = vadd.f32 %v125, %v130
    %v135 = vadd.f32 %v126, %v131
    %v136 = vstv %s86
    %v137 = vmul.f32 %v136, %v109
    %v138 = vmul.f32 %v136, %v112
    %v139 = vmul.f32 %v136, %v115
    %v140 = vmul.f32 %v136, %v118
    %v141 = vadd.f32 %v132, %v137
    %v142 = vadd.f32 %v133, %v138
    %v143 = vadd.f32 %v134, %v139
    %v144 = vadd.f32 %v135, %v140
    %v149 = vlaneseq
    %v150 = vand.u32 %v149, 127
    %v151 = vadd.s32 %v150, 4294967295
    %v152 = vlaneseq
    %v153 = vshrl.u32 %v152, 7
    %v154 = vsub.s32 %v151, %v153
    %v155 = vrot.slane %v141, %v154
    %v156 = vadd.s32 %v150, 4294967287
    %v157 = vlaneseq
    %v158 = vshrl.u32 %v157, 7
    %v159 = vsub.s32 %v156, %v158
    %v160 = vrot.slane %v142, %v159
    %vm161 = vcmask 138312
    %v162 = vsel %vm161, %v160, %v155
    %v163 = vlaneseq
    %v164 = vshrl.u32 %v163, 7
    %v165 = vsub.s32 %v151, %v164
    %v166 = vrot.slane %v143, %v165
    %v167 = vlaneseq
    %v168 = vshrl.u32 %v167, 7
    %v169 = vsub.s32 %v156, %v168
    %v170 = vrot.slane %v144, %v169
    %v171 = vsel %vm161, %v170, %v166
    %vm172 = vcmask 1041409
    %v173 = vsel %vm172, %v171, %v162
    %vm175 = vcmask 7168
    %v176 = vsel %vm175, 0.0, %v173
    %vm177 = vcmask 138240
    %v178 = vsel %vm177, %v176, 0.0
    %v179 = vstv %s87
    %v180 = vadd.f32 %v179, 0.0
    %s181 = sld [smem:[#allocation9]]
    %v182 = vstv %s181
    %v183 = vmul.f32 %v182, %v178
    %v184 = vadd.f32 %v180, %v183
    %s185 = sld [smem:[#allocation9 + $0x1]]
    %v186 = vstv %s185
    %v187 = vmul.f32 %v186, %v178
    %189 = vrot.lane.b32.xlu0 %v187, 127
    %v190 = vpop.permute.xlu0 %189
    %v192 = vadd.f32 %v184, %v190
    %s193 = sld [smem:[#allocation9 + $0x2]]
    %v194 = vstv %s193
    %v195 = vmul.f32 %v194, %v178
    %197 = vrot.lane.b32.xlu0 %v195, 126
    %v198 = vpop.permute.xlu0 %197
    %v200 = vadd.f32 %v192, %v198
    %v201 = vxor.u32 %v200, 2147483648
    %v202 = vmul.f32 %v201, 1.442695
    %v203 = vpow.pop %v202
    %v204 = vadd.f32 %v203, 1.0
    %v205 = vrcp.pop %v204
    %v206 = vmul.f32 1.0, %v205
    %v207 = vlaneseq
    %v208 = vshrl.u32 %v207, 7
    %v209 = vsub.s32 0, %v208
    %v210 = vrot.slane %v206, %v209
    %212 = vbcast.lane.b32.xlu0 %v210, 256
    %v213 = vpop.permute.xlu0 %212
    %s215 = sor.u32 256, 8
    %216 = vbcast.lane.b32.xlu0 %v210, %s215
    %v217 = vpop.permute.xlu0 %216
    %v218 = vlaneseq
    %v219 = vshrl.u32 %v218, 7
    %v220 = vsub.s32 1, %v219
    %v221 = vrot.slane %v206, %v220
    %223 = vbcast.lane.b32.xlu0 %v221, 256
    %v224 = vpop.permute.xlu0 %223
    %s226 = sor.u32 256, 8
    %227 = vbcast.lane.b32.xlu0 %v221, %s226
    %v228 = vpop.permute.xlu0 %227
    %v229 = vmul.f32 %v213, %v77
    %v230 = vmul.f32 %v213, %v78
    %v231 = vmul.f32 %v217, %v79
    %v232 = vmul.f32 %v217, %v80
    %v233 = vmul.f32 %v224, %v81
    %v234 = vmul.f32 %v224, %v82
    %v235 = vmul.f32 %v228, %v83
    %v236 = vmul.f32 %v228, %v84
    %v237 = vlaneseq
    %v238 = vshrl.u32 %v237, 7
    %v239 = vadd.s32 %v238, 8
    %vm240 = vcmp.lt.s32.totalorder %v150, %v238
    %vm241 = vcmp.lt.s32.totalorder %v150, %v239
    %v244 = vunpack.c.l.s4 1966171168
    %v245 = vunpack.c.0.s8 %v244
    %v246 = vlaneseq
    %v247 = vshrl.u32 %v246, 7
    %v248 = vsub.s32 %v245, %v247
    %v249 = vrot.slane %v206, %v248
    %v250 = vcombine.high %v249, %v249
    %v252 = vunpack.c.l.s4 1966171168
    %v253 = vunpack.c.0.s8 %v252
    %v254 = vlaneseq
    %v255 = vshrl.u32 %v254, 7
    %v256 = vsub.s32 %v253, %v255
    %v257 = vrot.slane %v249, %v256
    %v259 = vunpack.c.l.s4 1966171168
    %v260 = vunpack.c.0.s8 %v259
    %v261 = vlaneseq
    %v262 = vshrl.u32 %v261, 7
    %v263 = vsub.s32 %v260, %v262
    %v264 = vrot.slane %v250, %v263
    %v267 = vlaneseq
    %v268 = vshrl.u32 %v267, 7
    %v269 = vsub.s32 0, %v268
    %v270 = vrot.slane %v257, %v269
    %v271 = vlaneseq
    %v272 = vshrl.u32 %v271, 7
    %v273 = vsub.s32 0, %v272
    %v274 = vrot.slane %v264, %v273
    %vm277 = vcmp.gt.f32.partialorder %v270, %v213
    %vm278 = vcmp.gt.f32.partialorder %v270, %v217
    %vm279 = vcmp.gt.f32.partialorder %v274, %v224
    %vm280 = vcmp.gt.f32.partialorder %v274, %v228
    %vm281 = vcmp.eq.f32.partialorder %v270, %v213
    %vm282 = vcmp.eq.f32.partialorder %v270, %v217
    %vm283 = vcmp.eq.f32.partialorder %v274, %v224
    %vm284 = vcmp.eq.f32.partialorder %v274, %v228
    %v285 = vsel %vm240, 1, 0
    %v286 = vsel %vm241, 1, 0
    %vm287 = vcmp.eq.s32.totalorder %v285, 1
    %vm288 = vcmp.eq.s32.totalorder %v286, 1
    %vm289 = vmand %vm281, %vm287
    %vm290 = vmand %vm282, %vm288
    %vm291 = vmand %vm283, %vm287
    %vm292 = vmand %vm284, %vm288
    %vm293 = vmor %vm277, %vm289
    %vm294 = vmor %vm278, %vm290
    %vm295 = vmor %vm279, %vm291
    %vm296 = vmor %vm280, %vm292
    %v297 = vsel %vm293, 1, 0
    %v298 = vsel %vm294, 1, 0
    %v299 = vsel %vm295, 1, 0
    %v300 = vsel %vm296, 1, 0
    %v301 = vcvt.s32.f32 %v297
    %v302 = vcvt.s32.f32 %v298
    %v303 = vcvt.s32.f32 %v299
    %v304 = vcvt.s32.f32 %v300
    %vm305 = vcmask 130048
    %v306 = vsel %vm305, %v301, 0.0
    %307 = vadd.xlane.f32.xlu0 %v306
    %v308 = vpop.xlane.xlu0 %307
    %v309 = vsel %vm305, %v302, 0.0
    %310 = vadd.xlane.f32.xlu0 %v309
    %v311 = vpop.xlane.xlu0 %310
    %v312 = vsel %vm305, %v303, 0.0
    %313 = vadd.xlane.f32.xlu0 %v312
    %v314 = vpop.xlane.xlu0 %313
    %v315 = vsel %vm305, %v304, 0.0
    %316 = vadd.xlane.f32.xlu0 %v315
    %v317 = vpop.xlane.xlu0 %316
    %vm318 = vcmp.lt.f32.partialorder %v308, 10.0
    %vm319 = vcmp.lt.f32.partialorder %v311, 10.0
    %vm320 = vcmp.lt.f32.partialorder %v314, 10.0
    %vm321 = vcmp.lt.f32.partialorder %v317, 10.0
    %v322 = vsel %vm318, 1, 0
    %v323 = vsel %vm319, 1, 0
    %v324 = vsel %vm320, 1, 0
    %v325 = vsel %vm321, 1, 0
    %v326 = vcvt.s32.f32 %v322
    %v327 = vcvt.s32.f32 %v323
    %v328 = vcvt.s32.f32 %v324
    %v329 = vcvt.s32.f32 %v325
    %v334 = vlaneseq
    %v335 = vshrl.u32 %v334, 7
    %v336 = vsub.s32 %v150, %v335
    %v337 = vrot.slane %v326, %v336
    %v338 = vadd.s32 %v150, 4294967288
    %v339 = vlaneseq
    %v340 = vshrl.u32 %v339, 7
    %v341 = vsub.s32 %v338, %v340
    %v342 = vrot.slane %v327, %v341
    %vm343 = vcmask 130112
    %v344 = vsel %vm343, %v342, %v337
    %v345 = vlaneseq
    %v346 = vshrl.u32 %v345, 7
    %v347 = vsub.s32 %v150, %v346
    %v348 = vrot.slane %v328, %v347
    %v349 = vlaneseq
    %v350 = vshrl.u32 %v349, 7
    %v351 = vsub.s32 %v338, %v350
    %v352 = vrot.slane %v329, %v351
    %v353 = vsel %vm343, %v352, %v348
    %v354 = vsel %vm172, %v353, %v344
    %v356 = vmul.f32 %v206, %v354
    %v359 = vunpack.c.l.s4 1966171168
    %v360 = vunpack.c.0.s8 %v359
    %v361 = vlaneseq
    %v362 = vshrl.u32 %v361, 7
    %v363 = vsub.s32 %v360, %v362
    %v364 = vrot.slane %v356, %v363
    %v365 = vcombine.high %v364, %v364
    %v367 = vunpack.c.l.s4 1966171168
    %v368 = vunpack.c.0.s8 %v367
    %v369 = vlaneseq
    %v370 = vshrl.u32 %v369, 7
    %v371 = vsub.s32 %v368, %v370
    %v372 = vrot.slane %v364, %v371
    %v374 = vunpack.c.l.s4 1966171168
    %v375 = vunpack.c.0.s8 %v374
    %v376 = vlaneseq
    %v377 = vshrl.u32 %v376, 7
    %v378 = vsub.s32 %v375, %v377
    %v379 = vrot.slane %v365, %v378
    %v380 = vlaneseq
    %v381 = vshrl.u32 %v380, 7
    %v382 = vsub.s32 0, %v381
    %v383 = vrot.slane %v372, %v382
    %v384 = vlaneseq
    %v385 = vshrl.u32 %v384, 7
    %v386 = vsub.s32 0, %v385
    %v387 = vrot.slane %v379, %v386
    %vm390 = vcmask 1040384
    %v391 = vsel %vm390, %v257, %v383
    %v392 = vsel %vm390, %v264, %v387
    %v394 = vsel %vm305, %v391, 0
    %v396 = vand.u32 %v78, 4294901760
    %397 = vmatprep.subr.mxu0 %v396
    %v398 = vand.u32 %v77, 4294901760
    %399 = vmatpush1.msra.mxu0 %v398
    %v400 = vand.u32 %v80, 4294901760
    %401 = vmatprep.subr.mxu0 %v400
    %v402 = vand.u32 %v79, 4294901760
    %403 = vmatpush1.msra.mxu0 %v402
    %404 = vmatprep.subr.mxu0 0.0
    %405 = vmatpush1.msra.mxu0 0.0
    %406 = vmatprep.subr.mxu0 0.0
    %407 = vmatpush1.msra.mxu0 0.0
    %408 = vmatprep.subr.mxu0 0.0
    %409 = vmatpush1.msra.mxu0 0.0
    %410 = vmatprep.subr.mxu0 0.0
    %411 = vmatpush1.msra.mxu0 0.0
    %412 = vmatprep.subr.mxu0 0.0
    %413 = vmatpush1.msra.mxu0 0.0
    %414 = vmatprep.subr.mxu0 0.0
    %415 = vmatpush1.msra.mxu0 0.0
    %416 = vmatprep.subr.mxu0 0.0
    %417 = vmatpush1.msra.mxu0 0.0
    %418 = vmatprep.subr.mxu0 0.0
    %419 = vmatpush1.msra.mxu0 0.0
    %420 = vmatprep.subr.mxu0 0.0
    %421 = vmatpush1.msra.mxu0 0.0
    %422 = vmatprep.subr.mxu0 0.0
    %423 = vmatpush1.msra.mxu0 0.0
    %424 = vmatprep.subr.mxu0 0.0
    %425 = vmatpush1.msra.mxu0 0.0
    %426 = vmatprep.subr.mxu0 0.0
    %427 = vmatpush1.msra.mxu0 0.0
    %428 = vmatprep.subr.mxu0 0.0
    %429 = vmatpush1.msra.mxu0 0.0
    %430 = vmatprep.subr.mxu0 0.0
    %431 = vmatpush1.msra.mxu0 0.0
    %432 = vmatprep.subr.mxu0 0.0
    %433 = vmatpush1.msra.mxu0 0.0
    %434 = vmatprep.subr.mxu0 0.0
    %435 = vmatpush1.msra.mxu0 0.0
    %436 = vmatprep.subr.mxu0 0.0
    %437 = vmatpush1.msra.mxu0 0.0
    %438 = vmatprep.subr.mxu0 0.0
    %439 = vmatpush1.msra.mxu0 0.0
    %440 = vmatprep.subr.mxu0 0.0
    %441 = vmatpush1.msra.mxu0 0.0
    %442 = vmatprep.subr.mxu0 0.0
    %443 = vmatpush1.msra.mxu0 0.0
    %444 = vmatprep.subr.mxu0 0.0
    %445 = vmatpush1.msra.mxu0 0.0
    %446 = vmatprep.subr.mxu0 0.0
    %447 = vmatpush1.msra.mxu0 0.0
    %448 = vmatprep.subr.mxu0 0.0
    %449 = vmatpush1.msra.mxu0 0.0
    %450 = vmatprep.subr.mxu0 0.0
    %451 = vmatpush1.msra.mxu0 0.0
    %452 = vmatprep.subr.mxu0 0.0
    %453 = vmatpush1.msra.mxu0 0.0
    %454 = vmatprep.subr.mxu0 0.0
    %455 = vmatpush1.msra.mxu0 0.0
    %456 = vmatprep.subr.mxu0 0.0
    %457 = vmatpush1.msra.mxu0 0.0
    %458 = vmatprep.subr.mxu0 0.0
    %459 = vmatpush1.msra.mxu0 0.0
    %460 = vmatprep.subr.mxu0 0.0
    %461 = vmatpush1.msra.mxu0 0.0
    %462 = vmatprep.subr.mxu0 0.0
    %463 = vmatpush1.msra.mxu0 0.0
    %464 = vmatprep.mubr.f32.mxu0 0.0
    %v465 = vand.u32 %v394, 4294901760
    %v466 = vsub.f32 %v394, %v465
    %v467 = vand.u32 %v466, 4294901760
    %v468 = vsub.f32 %v466, %v467
    %v469 = vand.u32 %v468, 4294901760
    %470 = vmatmul.mubr.f32.gmra.mrb[0].mxu0 %v469
    %v471 = vpop.f32.mrb[0].mxu0
    %v472 = vadd.f32 0.0, %v471
    %v473 = vpop.f32.mrb[0].mxu0
    %v474 = vadd.f32 0.0, %v473
    %475 = vdwg.mxu0
    %v476 = vand.u32 %v78, 4294901760
    %v477 = vsub.f32 %v78, %v476
    %v478 = vand.u32 %v477, 4294901760
    %v479 = vsub.f32 %v477, %v478
    %v480 = vand.u32 %v479, 4294901760
    %481 = vmatprep.subr.mxu0 %v480
    %v482 = vand.u32 %v77, 4294901760
    %v483 = vsub.f32 %v77, %v482
    %v484 = vand.u32 %v483, 4294901760
    %v485 = vsub.f32 %v483, %v484
    %v486 = vand.u32 %v485, 4294901760
    %487 = vmatpush1.msra.mxu0 %v486
    %v488 = vand.u32 %v80, 4294901760
    %v489 = vsub.f32 %v80, %v488
    %v490 = vand.u32 %v489, 4294901760
    %v491 = vsub.f32 %v489, %v490
    %v492 = vand.u32 %v491, 4294901760
    %493 = vmatprep.subr.mxu0 %v492
    %v494 = vand.u32 %v79, 4294901760
    %v495 = vsub.f32 %v79, %v494
    %v496 = vand.u32 %v495, 4294901760
    %v497 = vsub.f32 %v495, %v496
    %v498 = vand.u32 %v497, 4294901760
    %499 = vmatpush1.msra.mxu0 %v498
    %500 = vmatprep.subr.mxu0 0.0
    %501 = vmatpush1.msra.mxu0 0.0
    %502 = vmatprep.subr.mxu0 0.0
    %503 = vmatpush1.msra.mxu0 0.0
    %504 = vmatprep.subr.mxu0 0.0
    %505 = vmatpush1.msra.mxu0 0.0
    %506 = vmatprep.subr.mxu0 0.0
    %507 = vmatpush1.msra.mxu0 0.0
    %508 = vmatprep.subr.mxu0 0.0
    %509 = vmatpush1.msra.mxu0 0.0
    %510 = vmatprep.subr.mxu0 0.0
    %511 = vmatpush1.msra.mxu0 0.0
    %512 = vmatprep.subr.mxu0 0.0
    %513 = vmatpush1.msra.mxu0 0.0
    %514 = vmatprep.subr.mxu0 0.0
    %515 = vmatpush1.msra.mxu0 0.0
    %516 = vmatprep.subr.mxu0 0.0
    %517 = vmatpush1.msra.mxu0 0.0
    %518 = vmatprep.subr.mxu0 0.0
    %519 = vmatpush1.msra.mxu0 0.0
    %520 = vmatprep.subr.mxu0 0.0
    %521 = vmatpush1.msra.mxu0 0.0
    %522 = vmatprep.subr.mxu0 0.0
    %523 = vmatpush1.msra.mxu0 0.0
    %524 = vmatprep.subr.mxu0 0.0
    %525 = vmatpush1.msra.mxu0 0.0
    %526 = vmatprep.subr.mxu0 0.0
    %527 = vmatpush1.msra.mxu0 0.0
    %528 = vmatprep.subr.mxu0 0.0
    %529 = vmatpush1.msra.mxu0 0.0
    %530 = vmatprep.subr.mxu0 0.0
    %531 = vmatpush1.msra.mxu0 0.0
    %532 = vmatprep.subr.mxu0 0.0
    %533 = vmatpush1.msra.mxu0 0.0
    %534 = vmatprep.subr.mxu0 0.0
    %535 = vmatpush1.msra.mxu0 0.0
    %536 = vmatprep.subr.mxu0 0.0
    %537 = vmatpush1.msra.mxu0 0.0
    %538 = vmatprep.subr.mxu0 0.0
    %539 = vmatpush1.msra.mxu0 0.0
    %540 = vmatprep.subr.mxu0 0.0
    %541 = vmatpush1.msra.mxu0 0.0
    %542 = vmatprep.subr.mxu0 0.0
    %543 = vmatpush1.msra.mxu0 0.0
    %544 = vmatprep.subr.mxu0 0.0
    %545 = vmatpush1.msra.mxu0 0.0
    %546 = vmatprep.subr.mxu0 0.0
    %547 = vmatpush1.msra.mxu0 0.0
    %548 = vmatprep.subr.mxu0 0.0
    %549 = vmatpush1.msra.mxu0 0.0
    %550 = vmatprep.subr.mxu0 0.0
    %551 = vmatpush1.msra.mxu0 0.0
    %552 = vmatprep.subr.mxu0 0.0
    %553 = vmatpush1.msra.mxu0 0.0
    %554 = vmatprep.subr.mxu0 0.0
    %555 = vmatpush1.msra.mxu0 0.0
    %556 = vmatprep.subr.mxu0 0.0
    %557 = vmatpush1.msra.mxu0 0.0
    %558 = vmatprep.subr.mxu0 0.0
    %559 = vmatpush1.msra.mxu0 0.0
    %560 = vmatprep.mubr.f32.mxu0 0.0
    %v561 = vand.u32 %v394, 4294901760
    %562 = vmatmul.mubr.f32.gmra.mrb[0].mxu0 %v561
    %v563 = vpop.f32.mrb[0].mxu0
    %v564 = vadd.f32 %v472, %v563
    %v565 = vpop.f32.mrb[0].mxu0
    %v566 = vadd.f32 %v474, %v565
    %567 = vdwg.mxu0
    %v568 = vand.u32 %v78, 4294901760
    %v569 = vsub.f32 %v78, %v568
    %570 = vmatprep.subr.mxu0 %v569
    %v571 = vand.u32 %v77, 4294901760
    %v572 = vsub.f32 %v77, %v571
    %573 = vmatpush1.msra.mxu0 %v572
    %v574 = vand.u32 %v80, 4294901760
    %v575 = vsub.f32 %v80, %v574
    %576 = vmatprep.subr.mxu0 %v575
    %v577 = vand.u32 %v79, 4294901760
    %v578 = vsub.f32 %v79, %v577
    %579 = vmatpush1.msra.mxu0 %v578
    %580 = vmatprep.subr.mxu0 0.0
    %581 = vmatpush1.msra.mxu0 0.0
    %582 = vmatprep.subr.mxu0 0.0
    %583 = vmatpush1.msra.mxu0 0.0
    %584 = vmatprep.subr.mxu0 0.0
    %585 = vmatpush1.msra.mxu0 0.0
    %586 = vmatprep.subr.mxu0 0.0
    %587 = vmatpush1.msra.mxu0 0.0
    %588 = vmatprep.subr.mxu0 0.0
    %589 = vmatpush1.msra.mxu0 0.0
    %590 = vmatprep.subr.mxu0 0.0
    %591 = vmatpush1.msra.mxu0 0.0
    %592 = vmatprep.subr.mxu0 0.0
    %593 = vmatpush1.msra.mxu0 0.0
    %594 = vmatprep.subr.mxu0 0.0
    %595 = vmatpush1.msra.mxu0 0.0
    %596 = vmatprep.subr.mxu0 0.0
    %597 = vmatpush1.msra.mxu0 0.0
    %598 = vmatprep.subr.mxu0 0.0
    %599 = vmatpush1.msra.mxu0 0.0
    %600 = vmatprep.subr.mxu0 0.0
    %601 = vmatpush1.msra.mxu0 0.0
    %602 = vmatprep.subr.mxu0 0.0
    %603 = vmatpush1.msra.mxu0 0.0
    %604 = vmatprep.subr.mxu0 0.0
    %605 = vmatpush1.msra.mxu0 0.0
    %606 = vmatprep.subr.mxu0 0.0
    %607 = vmatpush1.msra.mxu0 0.0
    %608 = vmatprep.subr.mxu0 0.0
    %609 = vmatpush1.msra.mxu0 0.0
    %610 = vmatprep.subr.mxu0 0.0
    %611 = vmatpush1.msra.mxu0 0.0
    %612 = vmatprep.subr.mxu0 0.0
    %613 = vmatpush1.msra.mxu0 0.0
    %614 = vmatprep.subr.mxu0 0.0
    %615 = vmatpush1.msra.mxu0 0.0
    %616 = vmatprep.subr.mxu0 0.0
    %617 = vmatpush1.msra.mxu0 0.0
    %618 = vmatprep.subr.mxu0 0.0
    %619 = vmatpush1.msra.mxu0 0.0
    %620 = vmatprep.subr.mxu0 0.0
    %621 = vmatpush1.msra.mxu0 0.0
    %622 = vmatprep.subr.mxu0 0.0
    %623 = vmatpush1.msra.mxu0 0.0
    %624 = vmatprep.subr.mxu0 0.0
    %625 = vmatpush1.msra.mxu0 0.0
    %626 = vmatprep.subr.mxu0 0.0
    %627 = vmatpush1.msra.mxu0 0.0
    %628 = vmatprep.subr.mxu0 0.0
    %629 = vmatpush1.msra.mxu0 0.0
    %630 = vmatprep.subr.mxu0 0.0
    %631 = vmatpush1.msra.mxu0 0.0
    %632 = vmatprep.subr.mxu0 0.0
    %633 = vmatpush1.msra.mxu0 0.0
    %634 = vmatprep.subr.mxu0 0.0
    %635 = vmatpush1.msra.mxu0 0.0
    %636 = vmatprep.subr.mxu0 0.0
    %637 = vmatpush1.msra.mxu0 0.0
    %638 = vmatprep.subr.mxu0 0.0
    %639 = vmatpush1.msra.mxu0 0.0
    %640 = vmatprep.mubr.f32.mxu0 0.0
    %v641 = vand.u32 %v394, 4294901760
    %v642 = vsub.f32 %v394, %v641
    %643 = vmatmul.mubr.f32.gmra.mrb[0].mxu0 %v642
    %v644 = vpop.f32.mrb[0].mxu0
    %v645 = vadd.f32 %v564, %v644
    %v646 = vpop.f32.mrb[0].mxu0
    %v647 = vadd.f32 %v566, %v646
    %648 = vdwg.mxu0
    %v649 = vand.u32 %v78, 4294901760
    %650 = vmatprep.subr.mxu0 %v649
    %v651 = vand.u32 %v77, 4294901760
    %652 = vmatpush1.msra.mxu0 %v651
    %v653 = vand.u32 %v80, 4294901760
    %654 = vmatprep.subr.mxu0 %v653
    %v655 = vand.u32 %v79, 4294901760
    %656 = vmatpush1.msra.mxu0 %v655
    %657 = vmatprep.subr.mxu0 0.0
    %658 = vmatpush1.msra.mxu0 0.0
    %659 = vmatprep.subr.mxu0 0.0
    %660 = vmatpush1.msra.mxu0 0.0
    %661 = vmatprep.subr.mxu0 0.0
    %662 = vmatpush1.msra.mxu0 0.0
    %663 = vmatprep.subr.mxu0 0.0
    %664 = vmatpush1.msra.mxu0 0.0
    %665 = vmatprep.subr.mxu0 0.0
    %666 = vmatpush1.msra.mxu0 0.0
    %667 = vmatprep.subr.mxu0 0.0
    %668 = vmatpush1.msra.mxu0 0.0
    %669 = vmatprep.subr.mxu0 0.0
    %670 = vmatpush1.msra.mxu0 0.0
    %671 = vmatprep.subr.mxu0 0.0
    %672 = vmatpush1.msra.mxu0 0.0
    %673 = vmatprep.subr.mxu0 0.0
    %674 = vmatpush1.msra.mxu0 0.0
    %675 = vmatprep.subr.mxu0 0.0
    %676 = vmatpush1.msra.mxu0 0.0
    %677 = vmatprep.subr.mxu0 0.0
    %678 = vmatpush1.msra.mxu0 0.0
    %679 = vmatprep.subr.mxu0 0.0
    %680 = vmatpush1.msra.mxu0 0.0
    %681 = vmatprep.subr.mxu0 0.0
    %682 = vmatpush1.msra.mxu0 0.0
    %683 = vmatprep.subr.mxu0 0.0
    %684 = vmatpush1.msra.mxu0 0.0
    %685 = vmatprep.subr.mxu0 0.0
    %686 = vmatpush1.msra.mxu0 0.0
    %687 = vmatprep.subr.mxu0 0.0
    %688 = vmatpush1.msra.mxu0 0.0
    %689 = vmatprep.subr.mxu0 0.0
    %690 = vmatpush1.msra.mxu0 0.0
    %691 = vmatprep.subr.mxu0 0.0
    %692 = vmatpush1.msra.mxu0 0.0
    %693 = vmatprep.subr.mxu0 0.0
    %694 = vmatpush1.msra.mxu0 0.0
    %695 = vmatprep.subr.mxu0 0.0
    %696 = vmatpush1.msra.mxu0 0.0
    %697 = vmatprep.subr.mxu0 0.0
    %698 = vmatpush1.msra.mxu0 0.0
    %699 = vmatprep.subr.mxu0 0.0
    %700 = vmatpush1.msra.mxu0 0.0
    %701 = vmatprep.subr.mxu0 0.0
    %702 = vmatpush1.msra.mxu0 0.0
    %703 = vmatprep.subr.mxu0 0.0
    %704 = vmatpush1.msra.mxu0 0.0
    %705 = vmatprep.subr.mxu0 0.0
    %706 = vmatpush1.msra.mxu0 0.0
    %707 = vmatprep.subr.mxu0 0.0
    %708 = vmatpush1.msra.mxu0 0.0
    %709 = vmatprep.subr.mxu0 0.0
    %710 = vmatpush1.msra.mxu0 0.0
    %711 = vmatprep.subr.mxu0 0.0
    %712 = vmatpush1.msra.mxu0 0.0
    %713 = vmatprep.subr.mxu0 0.0
    %714 = vmatpush1.msra.mxu0 0.0
    %715 = vmatprep.subr.mxu0 0.0
    %716 = vmatpush1.msra.mxu0 0.0
    %717 = vmatprep.mubr.f32.mxu0 0.0
    %v718 = vand.u32 %v394, 4294901760
    %v719 = vsub.f32 %v394, %v718
    %v720 = vand.u32 %v719, 4294901760
    %721 = vmatmul.mubr.f32.gmra.mrb[0].mxu0 %v720
    %v722 = vpop.f32.mrb[0].mxu0
    %v723 = vadd.f32 %v645, %v722
    %v724 = vpop.f32.mrb[0].mxu0
    %v725 = vadd.f32 %v647, %v724
    %726 = vdwg.mxu0
    %v727 = vand.u32 %v78, 4294901760
    %v728 = vsub.f32 %v78, %v727
    %v729 = vand.u32 %v728, 4294901760
    %730 = vmatprep.subr.mxu0 %v729
    %v731 = vand.u32 %v77, 4294901760
    %v732 = vsub.f32 %v77, %v731
    %v733 = vand.u32 %v732, 4294901760
    %734 = vmatpush1.msra.mxu0 %v733
    %v735 = vand.u32 %v80, 4294901760
    %v736 = vsub.f32 %v80, %v735
    %v737 = vand.u32 %v736, 4294901760
    %738 = vmatprep.subr.mxu0 %v737
    %v739 = vand.u32 %v79, 4294901760
    %v740 = vsub.f32 %v79, %v739
    %v741 = vand.u32 %v740, 4294901760
    %742 = vmatpush1.msra.mxu0 %v741
    %743 = vmatprep.subr.mxu0 0.0
    %744 = vmatpush1.msra.mxu0 0.0
    %745 = vmatprep.subr.mxu0 0.0
    %746 = vmatpush1.msra.mxu0 0.0
    %747 = vmatprep.subr.mxu0 0.0
    %748 = vmatpush1.msra.mxu0 0.0
    %749 = vmatprep.subr.mxu0 0.0
    %750 = vmatpush1.msra.mxu0 0.0
    %751 = vmatprep.subr.mxu0 0.0
    %752 = vmatpush1.msra.mxu0 0.0
    %753 = vmatprep.subr.mxu0 0.0
    %754 = vmatpush1.msra.mxu0 0.0
    %755 = vmatprep.subr.mxu0 0.0
    %756 = vmatpush1.msra.mxu0 0.0
    %757 = vmatprep.subr.mxu0 0.0
    %758 = vmatpush1.msra.mxu0 0.0
    %759 = vmatprep.subr.mxu0 0.0
    %760 = vmatpush1.msra.mxu0 0.0
    %761 = vmatprep.subr.mxu0 0.0
    %762 = vmatpush1.msra.mxu0 0.0
    %763 = vmatprep.subr.mxu0 0.0
    %764 = vmatpush1.msra.mxu0 0.0
    %765 = vmatprep.subr.mxu0 0.0
    %766 = vmatpush1.msra.mxu0 0.0
    %767 = vmatprep.subr.mxu0 0.0
    %768 = vmatpush1.msra.mxu0 0.0
    %769 = vmatprep.subr.mxu0 0.0
    %770 = vmatpush1.msra.mxu0 0.0
    %771 = vmatprep.subr.mxu0 0.0
    %772 = vmatpush1.msra.mxu0 0.0
    %773 = vmatprep.subr.mxu0 0.0
    %774 = vmatpush1.msra.mxu0 0.0
    %775 = vmatprep.subr.mxu0 0.0
    %776 = vmatpush1.msra.mxu0 0.0
    %777 = vmatprep.subr.mxu0 0.0
    %778 = vmatpush1.msra.mxu0 0.0
    %779 = vmatprep.subr.mxu0 0.0
    %780 = vmatpush1.msra.mxu0 0.0
    %781 = vmatprep.subr.mxu0 0.0
    %782 = vmatpush1.msra.mxu0 0.0
    %783 = vmatprep.subr.mxu0 0.0
    %784 = vmatpush1.msra.mxu0 0.0
    %785 = vmatprep.subr.mxu0 0.0
    %786 = vmatpush1.msra.mxu0 0.0
    %787 = vmatprep.subr.mxu0 0.0
    %788 = vmatpush1.msra.mxu0 0.0
    %789 = vmatprep.subr.mxu0 0.0
    %790 = vmatpush1.msra.mxu0 0.0
    %791 = vmatprep.subr.mxu0 0.0
    %792 = vmatpush1.msra.mxu0 0.0
    %793 = vmatprep.subr.mxu0 0.0
    %794 = vmatpush1.msra.mxu0 0.0
    %795 = vmatprep.subr.mxu0 0.0
    %796 = vmatpush1.msra.mxu0 0.0
    %797 = vmatprep.subr.mxu0 0.0
    %798 = vmatpush1.msra.mxu0 0.0
    %799 = vmatprep.subr.mxu0 0.0
    %800 = vmatpush1.msra.mxu0 0.0
    %801 = vmatprep.subr.mxu0 0.0
    %802 = vmatpush1.msra.mxu0 0.0
    %803 = vmatprep.mubr.f32.mxu0 0.0
    %v804 = vand.u32 %v394, 4294901760
    %805 = vmatmul.mubr.f32.gmra.mrb[0].mxu0 %v804
    %v806 = vpop.f32.mrb[0].mxu0
    %v807 = vadd.f32 %v723, %v806
    %v808 = vpop.f32.mrb[0].mxu0
    %v809 = vadd.f32 %v725, %v808
    %810 = vdwg.mxu0
    %v811 = vand.u32 %v78, 4294901760
    %812 = vmatprep.subr.mxu0 %v811
    %v813 = vand.u32 %v77, 4294901760
    %814 = vmatpush1.msra.mxu0 %v813
    %v815 = vand.u32 %v80, 4294901760
    %816 = vmatprep.subr.mxu0 %v815
    %v817 = vand.u32 %v79, 4294901760
    %818 = vmatpush1.msra.mxu0 %v817
    %819 = vmatprep.subr.mxu0 0.0
    %820 = vmatpush1.msra.mxu0 0.0
    %821 = vmatprep.subr.mxu0 0.0
    %822 = vmatpush1.msra.mxu0 0.0
    %823 = vmatprep.subr.mxu0 0.0
    %824 = vmatpush1.msra.mxu0 0.0
    %825 = vmatprep.subr.mxu0 0.0
    %826 = vmatpush1.msra.mxu0 0.0
    %827 = vmatprep.subr.mxu0 0.0
    %828 = vmatpush1.msra.mxu0 0.0
    %829 = vmatprep.subr.mxu0 0.0
    %830 = vmatpush1.msra.mxu0 0.0
    %831 = vmatprep.subr.mxu0 0.0
    %832 = vmatpush1.msra.mxu0 0.0
    %833 = vmatprep.subr.mxu0 0.0
    %834 = vmatpush1.msra.mxu0 0.0
    %835 = vmatprep.subr.mxu0 0.0
    %836 = vmatpush1.msra.mxu0 0.0
    %837 = vmatprep.subr.mxu0 0.0
    %838 = vmatpush1.msra.mxu0 0.0
    %839 = vmatprep.subr.mxu0 0.0
    %840 = vmatpush1.msra.mxu0 0.0
    %841 = vmatprep.subr.mxu0 0.0
    %842 = vmatpush1.msra.mxu0 0.0
    %843 = vmatprep.subr.mxu0 0.0
    %844 = vmatpush1.msra.mxu0 0.0
    %845 = vmatprep.subr.mxu0 0.0
    %846 = vmatpush1.msra.mxu0 0.0
    %847 = vmatprep.subr.mxu0 0.0
    %848 = vmatpush1.msra.mxu0 0.0
    %849 = vmatprep.subr.mxu0 0.0
    %850 = vmatpush1.msra.mxu0 0.0
    %851 = vmatprep.subr.mxu0 0.0
    %852 = vmatpush1.msra.mxu0 0.0
    %853 = vmatprep.subr.mxu0 0.0
    %854 = vmatpush1.msra.mxu0 0.0
    %855 = vmatprep.subr.mxu0 0.0
    %856 = vmatpush1.msra.mxu0 0.0
    %857 = vmatprep.subr.mxu0 0.0
    %858 = vmatpush1.msra.mxu0 0.0
    %859 = vmatprep.subr.mxu0 0.0
    %860 = vmatpush1.msra.mxu0 0.0
    %861 = vmatprep.subr.mxu0 0.0
    %862 = vmatpush1.msra.mxu0 0.0
    %863 = vmatprep.subr.mxu0 0.0
    %864 = vmatpush1.msra.mxu0 0.0
    %865 = vmatprep.subr.mxu0 0.0
    %866 = vmatpush1.msra.mxu0 0.0
    %867 = vmatprep.subr.mxu0 0.0
    %868 = vmatpush1.msra.mxu0 0.0
    %869 = vmatprep.subr.mxu0 0.0
    %870 = vmatpush1.msra.mxu0 0.0
    %871 = vmatprep.subr.mxu0 0.0
    %872 = vmatpush1.msra.mxu0 0.0
    %873 = vmatprep.subr.mxu0 0.0
    %874 = vmatpush1.msra.mxu0 0.0
    %875 = vmatprep.subr.mxu0 0.0
    %876 = vmatpush1.msra.mxu0 0.0
    %877 = vmatprep.subr.mxu0 0.0
    %878 = vmatpush1.msra.mxu0 0.0
    %879 = vmatprep.mubr.f32.mxu0 0.0
    %v880 = vand.u32 %v394, 4294901760
    %881 = vmatmul.mubr.f32.gmra.mrb[0].mxu0 %v880
    %v882 = vpop.f32.mrb[0].mxu0
    %v883 = vadd.f32 %v807, %v882
    %v884 = vpop.f32.mrb[0].mxu0
    %v885 = vadd.f32 %v809, %v884
    %886 = vdwg.mxu0
    %v888 = vsel %vm305, %v392, 0
    %v890 = vand.u32 %v82, 4294901760
    %891 = vmatprep.subr.mxu0 %v890
    %v892 = vand.u32 %v81, 4294901760
    %893 = vmatpush1.msra.mxu0 %v892
    %v894 = vand.u32 %v84, 4294901760
    %895 = vmatprep.subr.mxu0 %v894
    %v896 = vand.u32 %v83, 4294901760
    %897 = vmatpush1.msra.mxu0 %v896
    %898 = vmatprep.subr.mxu0 0.0
    %899 = vmatpush1.msra.mxu0 0.0
    %900 = vmatprep.subr.mxu0 0.0
    %901 = vmatpush1.msra.mxu0 0.0
    %902 = vmatprep.subr.mxu0 0.0
    %903 = vmatpush1.msra.mxu0 0.0
    %904 = vmatprep.subr.mxu0 0.0
    %905 = vmatpush1.msra.mxu0 0.0
    %906 = vmatprep.subr.mxu0 0.0
    %907 = vmatpush1.msra.mxu0 0.0
    %908 = vmatprep.subr.mxu0 0.0
    %909 = vmatpush1.msra.mxu0 0.0
    %910 = vmatprep.subr.mxu0 0.0
    %911 = vmatpush1.msra.mxu0 0.0
    %912 = vmatprep.subr.mxu0 0.0
    %913 = vmatpush1.msra.mxu0 0.0
    %914 = vmatprep.subr.mxu0 0.0
    %915 = vmatpush1.msra.mxu0 0.0
    %916 = vmatprep.subr.mxu0 0.0
    %917 = vmatpush1.msra.mxu0 0.0
    %918 = vmatprep.subr.mxu0 0.0
    %919 = vmatpush1.msra.mxu0 0.0
    %920 = vmatprep.subr.mxu0 0.0
    %921 = vmatpush1.msra.mxu0 0.0
    %922 = vmatprep.subr.mxu0 0.0
    %923 = vmatpush1.msra.mxu0 0.0
    %924 = vmatprep.subr.mxu0 0.0
    %925 = vmatpush1.msra.mxu0 0.0
    %926 = vmatprep.subr.mxu0 0.0
    %927 = vmatpush1.msra.mxu0 0.0
    %928 = vmatprep.subr.mxu0 0.0
    %929 = vmatpush1.msra.mxu0 0.0
    %930 = vmatprep.subr.mxu0 0.0
    %931 = vmatpush1.msra.mxu0 0.0
    %932 = vmatprep.subr.mxu0 0.0
    %933 = vmatpush1.msra.mxu0 0.0
    %934 = vmatprep.subr.mxu0 0.0
    %935 = vmatpush1.msra.mxu0 0.0
    %936 = vmatprep.subr.mxu0 0.0
    %937 = vmatpush1.msra.mxu0 0.0
    %938 = vmatprep.subr.mxu0 0.0
    %939 = vmatpush1.msra.mxu0 0.0
    %940 = vmatprep.subr.mxu0 0.0
    %941 = vmatpush1.msra.mxu0 0.0
    %942 = vmatprep.subr.mxu0 0.0
    %943 = vmatpush1.msra.mxu0 0.0
    %944 = vmatprep.subr.mxu0 0.0
    %945 = vmatpush1.msra.mxu0 0.0
    %946 = vmatprep.subr.mxu0 0.0
    %947 = vmatpush1.msra.mxu0 0.0
    %948 = vmatprep.subr.mxu0 0.0
    %949 = vmatpush1.msra.mxu0 0.0
    %950 = vmatprep.subr.mxu0 0.0
    %951 = vmatpush1.msra.mxu0 0.0
    %952 = vmatprep.subr.mxu0 0.0
    %953 = vmatpush1.msra.mxu0 0.0
    %954 = vmatprep.subr.mxu0 0.0
    %955 = vmatpush1.msra.mxu0 0.0
    %956 = vmatprep.subr.mxu0 0.0
    %957 = vmatpush1.msra.mxu0 0.0
    %958 = vmatprep.mubr.f32.mxu0 0.0
    %v959 = vand.u32 %v888, 4294901760
    %v960 = vsub.f32 %v888, %v959
    %v961 = vand.u32 %v960, 4294901760
    %v962 = vsub.f32 %v960, %v961
    %v963 = vand.u32 %v962, 4294901760
    %964 = vmatmul.mubr.f32.gmra.mrb[0].mxu0 %v963
    %v965 = vpop.f32.mrb[0].mxu0
    %v966 = vadd.f32 0.0, %v965
    %v967 = vpop.f32.mrb[0].mxu0
    %v968 = vadd.f32 0.0, %v967
    %969 = vdwg.mxu0
    %v970 = vand.u32 %v82, 4294901760
    %v971 = vsub.f32 %v82, %v970
    %v972 = vand.u32 %v971, 4294901760
    %v973 = vsub.f32 %v971, %v972
    %v974 = vand.u32 %v973, 4294901760
    %975 = vmatprep.subr.mxu0 %v974
    %v976 = vand.u32 %v81, 4294901760
    %v977 = vsub.f32 %v81, %v976
    %v978 = vand.u32 %v977, 4294901760
    %v979 = vsub.f32 %v977, %v978
    %v980 = vand.u32 %v979, 4294901760
    %981 = vmatpush1.msra.mxu0 %v980
    %v982 = vand.u32 %v84, 4294901760
    %v983 = vsub.f32 %v84, %v982
    %v984 = vand.u32 %v983, 4294901760
    %v985 = vsub.f32 %v983, %v984
    %v986 = vand.u32 %v985, 4294901760
    %987 = vmatprep.subr.mxu0 %v986
    %v988 = vand.u32 %v83, 4294901760
    %v989 = vsub.f32 %v83, %v988
    %v990 = vand.u32 %v989, 4294901760
    %v991 = vsub.f32 %v989, %v990
    %v992 = vand.u32 %v991, 4294901760
    %993 = vmatpush1.msra.mxu0 %v992
    %994 = vmatprep.subr.mxu0 0.0
    %995 = vmatpush1.msra.mxu0 0.0
    %996 = vmatprep.subr.mxu0 0.0
    %997 = vmatpush1.msra.mxu0 0.0
    %998 = vmatprep.subr.mxu0 0.0
    %999 = vmatpush1.msra.mxu0 0.0
    %1000 = vmatprep.subr.mxu0 0.0
    %1001 = vmatpush1.msra.mxu0 0.0
    %1002 = vmatprep.subr.mxu0 0.0
    %1003 = vmatpush1.msra.mxu0 0.0
    %1004 = vmatprep.subr.mxu0 0.0
    %1005 = vmatpush1.msra.mxu0 0.0
    %1006 = vmatprep.subr.mxu0 0.0
    %1007 = vmatpush1.msra.mxu0 0.0
    %1008 = vmatprep.subr.mxu0 0.0
    %1009 = vmatpush1.msra.mxu0 0.0
    %1010 = vmatprep.subr.mxu0 0.0
    %1011 = vmatpush1.msra.mxu0 0.0
    %1012 = vmatprep.subr.mxu0 0.0
    %1013 = vmatpush1.msra.mxu0 0.0
    %1014 = vmatprep.subr.mxu0 0.0
    %1015 = vmatpush1.msra.mxu0 0.0
    %1016 = vmatprep.subr.mxu0 0.0
    %1017 = vmatpush1.msra.mxu0 0.0
    %1018 = vmatprep.subr.mxu0 0.0
    %1019 = vmatpush1.msra.mxu0 0.0
    %1020 = vmatprep.subr.mxu0 0.0
    %1021 = vmatpush1.msra.mxu0 0.0
    %1022 = vmatprep.subr.mxu0 0.0
    %1023 = vmatpush1.msra.mxu0 0.0
    %1024 = vmatprep.subr.mxu0 0.0
    %1025 = vmatpush1.msra.mxu0 0.0
    %1026 = vmatprep.subr.mxu0 0.0
    %1027 = vmatpush1.msra.mxu0 0.0
    %1028 = vmatprep.subr.mxu0 0.0
    %1029 = vmatpush1.msra.mxu0 0.0
    %1030 = vmatprep.subr.mxu0 0.0
    %1031 = vmatpush1.msra.mxu0 0.0
    %1032 = vmatprep.subr.mxu0 0.0
    %1033 = vmatpush1.msra.mxu0 0.0
    %1034 = vmatprep.subr.mxu0 0.0
    %1035 = vmatpush1.msra.mxu0 0.0
    %1036 = vmatprep.subr.mxu0 0.0
    %1037 = vmatpush1.msra.mxu0 0.0
    %1038 = vmatprep.subr.mxu0 0.0
    %1039 = vmatpush1.msra.mxu0 0.0
    %1040 = vmatprep.subr.mxu0 0.0
    %1041 = vmatpush1.msra.mxu0 0.0
    %1042 = vmatprep.subr.mxu0 0.0
    %1043 = vmatpush1.msra.mxu0 0.0
    %1044 = vmatprep.subr.mxu0 0.0
    %1045 = vmatpush1.msra.mxu0 0.0
    %1046 = vmatprep.subr.mxu0 0.0
    %1047 = vmatpush1.msra.mxu0 0.0
    %1048 = vmatprep.subr.mxu0 0.0
    %1049 = vmatpush1.msra.mxu0 0.0
    %1050 = vmatprep.subr.mxu0 0.0
    %1051 = vmatpush1.msra.mxu0 0.0
    %1052 = vmatprep.subr.mxu0 0.0
    %1053 = vmatpush1.msra.mxu0 0.0
    %1054 = vmatprep.mubr.f32.mxu0 0.0
    %v1055 = vand.u32 %v888, 4294901760
    %1056 = vmatmul.mubr.f32.gmra.mrb[0].mxu0 %v1055
    %v1057 = vpop.f32.mrb[0].mxu0
    %v1058 = vadd.f32 %v966, %v1057
    %v1059 = vpop.f32.mrb[0].mxu0
    %v1060 = vadd.f32 %v968, %v1059
    %1061 = vdwg.mxu0
    %v1062 = vand.u32 %v82, 4294901760
    %v1063 = vsub.f32 %v82, %v1062
    %1064 = vmatprep.subr.mxu0 %v1063
    %v1065 = vand.u32 %v81, 4294901760
    %v1066 = vsub.f32 %v81, %v1065
    %1067 = vmatpush1.msra.mxu0 %v1066
    %v1068 = vand.u32 %v84, 4294901760
    %v1069 = vsub.f32 %v84, %v1068
    %1070 = vmatprep.subr.mxu0 %v1069
    %v1071 = vand.u32 %v83, 4294901760
    %v1072 = vsub.f32 %v83, %v1071
    %1073 = vmatpush1.msra.mxu0 %v1072
    %1074 = vmatprep.subr.mxu0 0.0
    %1075 = vmatpush1.msra.mxu0 0.0
    %1076 = vmatprep.subr.mxu0 0.0
    %1077 = vmatpush1.msra.mxu0 0.0
    %1078 = vmatprep.subr.mxu0 0.0
    %1079 = vmatpush1.msra.mxu0 0.0
    %1080 = vmatprep.subr.mxu0 0.0
    %1081 = vmatpush1.msra.mxu0 0.0
    %1082 = vmatprep.subr.mxu0 0.0
    %1083 = vmatpush1.msra.mxu0 0.0
    %1084 = vmatprep.subr.mxu0 0.0
    %1085 = vmatpush1.msra.mxu0 0.0
    %1086 = vmatprep.subr.mxu0 0.0
    %1087 = vmatpush1.msra.mxu0 0.0
    %1088 = vmatprep.subr.mxu0 0.0
    %1089 = vmatpush1.msra.mxu0 0.0
    %1090 = vmatprep.subr.mxu0 0.0
    %1091 = vmatpush1.msra.mxu0 0.0
    %1092 = vmatprep.subr.mxu0 0.0
    %1093 = vmatpush1.msra.mxu0 0.0
    %1094 = vmatprep.subr.mxu0 0.0
    %1095 = vmatpush1.msra.mxu0 0.0
    %1096 = vmatprep.subr.mxu0 0.0
    %1097 = vmatpush1.msra.mxu0 0.0
    %1098 = vmatprep.subr.mxu0 0.0
    %1099 = vmatpush1.msra.mxu0 0.0
    %1100 = vmatprep.subr.mxu0 0.0
    %1101 = vmatpush1.msra.mxu0 0.0
    %1102 = vmatprep.subr.mxu0 0.0
    %1103 = vmatpush1.msra.mxu0 0.0
    %1104 = vmatprep.subr.mxu0 0.0
    %1105 = vmatpush1.msra.mxu0 0.0
    %1106 = vmatprep.subr.mxu0 0.0
    %1107 = vmatpush1.msra.mxu0 0.0
    %1108 = vmatprep.subr.mxu0 0.0
    %1109 = vmatpush1.msra.mxu0 0.0
    %1110 = vmatprep.subr.mxu0 0.0
    %1111 = vmatpush1.msra.mxu0 0.0
    %1112 = vmatprep.subr.mxu0 0.0
    %1113 = vmatpush1.msra.mxu0 0.0
    %1114 = vmatprep.subr.mxu0 0.0
    %1115 = vmatpush1.msra.mxu0 0.0
    %1116 = vmatprep.subr.mxu0 0.0
    %1117 = vmatpush1.msra.mxu0 0.0
    %1118 = vmatprep.subr.mxu0 0.0
    %1119 = vmatpush1.msra.mxu0 0.0
    %1120 = vmatprep.subr.mxu0 0.0
    %1121 = vmatpush1.msra.mxu0 0.0
    %1122 = vmatprep.subr.mxu0 0.0
    %1123 = vmatpush1.msra.mxu0 0.0
    %1124 = vmatprep.subr.mxu0 0.0
    %1125 = vmatpush1.msra.mxu0 0.0
    %1126 = vmatprep.subr.mxu0 0.0
    %1127 = vmatpush1.msra.mxu0 0.0
    %1128 = vmatprep.subr.mxu0 0.0
    %1129 = vmatpush1.msra.mxu0 0.0
    %1130 = vmatprep.subr.mxu0 0.0
    %1131 = vmatpush1.msra.mxu0 0.0
    %1132 = vmatprep.subr.mxu0 0.0
    %1133 = vmatpush1.msra.mxu0 0.0
    %1134 = vmatprep.mubr.f32.mxu0 0.0
    %v1135 = vand.u32 %v888, 4294901760
    %v1136 = vsub.f32 %v888, %v1135
    %1137 = vmatmul.mubr.f32.gmra.mrb[0].mxu0 %v1136
    %v1138 = vpop.f32.mrb[0].mxu0
    %v1139 = vadd.f32 %v1058, %v1138
    %v1140 = vpop.f32.mrb[0].mxu0
    %v1141 = vadd.f32 %v1060, %v1140
    %1142 = vdwg.mxu0
    %v1143 = vand.u32 %v82, 4294901760
    %1144 = vmatprep.subr.mxu0 %v1143
    %v1145 = vand.u32 %v81, 4294901760
    %1146 = vmatpush1.msra.mxu0 %v1145
    %v1147 = vand.u32 %v84, 4294901760
    %1148 = vmatprep.subr.mxu0 %v1147
    %v1149 = vand.u32 %v83, 4294901760
    %1150 = vmatpush1.msra.mxu0 %v1149
    %1151 = vmatprep.subr.mxu0 0.0
    %1152 = vmatpush1.msra.mxu0 0.0
    %1153 = vmatprep.subr.mxu0 0.0
    %1154 = vmatpush1.msra.mxu0 0.0
    %1155 = vmatprep.subr.mxu0 0.0
    %1156 = vmatpush1.msra.mxu0 0.0
    %1157 = vmatprep.subr.mxu0 0.0
    %1158 = vmatpush1.msra.mxu0 0.0
    %1159 = vmatprep.subr.mxu0 0.0
    %1160 = vmatpush1.msra.mxu0 0.0
    %1161 = vmatprep.subr.mxu0 0.0
    %1162 = vmatpush1.msra.mxu0 0.0
    %1163 = vmatprep.subr.mxu0 0.0
    %1164 = vmatpush1.msra.mxu0 0.0
    %1165 = vmatprep.subr.mxu0 0.0
    %1166 = vmatpush1.msra.mxu0 0.0
    %1167 = vmatprep.subr.mxu0 0.0
    %1168 = vmatpush1.msra.mxu0 0.0
    %1169 = vmatprep.subr.mxu0 0.0
    %1170 = vmatpush1.msra.mxu0 0.0
    %1171 = vmatprep.subr.mxu0 0.0
    %1172 = vmatpush1.msra.mxu0 0.0
    %1173 = vmatprep.subr.mxu0 0.0
    %1174 = vmatpush1.msra.mxu0 0.0
    %1175 = vmatprep.subr.mxu0 0.0
    %1176 = vmatpush1.msra.mxu0 0.0
    %1177 = vmatprep.subr.mxu0 0.0
    %1178 = vmatpush1.msra.mxu0 0.0
    %1179 = vmatprep.subr.mxu0 0.0
    %1180 = vmatpush1.msra.mxu0 0.0
    %1181 = vmatprep.subr.mxu0 0.0
    %1182 = vmatpush1.msra.mxu0 0.0
    %1183 = vmatprep.subr.mxu0 0.0
    %1184 = vmatpush1.msra.mxu0 0.0
    %1185 = vmatprep.subr.mxu0 0.0
    %1186 = vmatpush1.msra.mxu0 0.0
    %1187 = vmatprep.subr.mxu0 0.0
    %1188 = vmatpush1.msra.mxu0 0.0
    %1189 = vmatprep.subr.mxu0 0.0
    %1190 = vmatpush1.msra.mxu0 0.0
    %1191 = vmatprep.subr.mxu0 0.0
    %1192 = vmatpush1.msra.mxu0 0.0
    %1193 = vmatprep.subr.mxu0 0.0
    %1194 = vmatpush1.msra.mxu0 0.0
    %1195 = vmatprep.subr.mxu0 0.0
    %1196 = vmatpush1.msra.mxu0 0.0
    %1197 = vmatprep.subr.mxu0 0.0
    %1198 = vmatpush1.msra.mxu0 0.0
    %1199 = vmatprep.subr.mxu0 0.0
    %1200 = vmatpush1.msra.mxu0 0.0
    %1201 = vmatprep.subr.mxu0 0.0
    %1202 = vmatpush1.msra.mxu0 0.0
    %1203 = vmatprep.subr.mxu0 0.0
    %1204 = vmatpush1.msra.mxu0 0.0
    %1205 = vmatprep.subr.mxu0 0.0
    %1206 = vmatpush1.msra.mxu0 0.0
    %1207 = vmatprep.subr.mxu0 0.0
    %1208 = vmatpush1.msra.mxu0 0.0
    %1209 = vmatprep.subr.mxu0 0.0
    %1210 = vmatpush1.msra.mxu0 0.0
    %1211 = vmatprep.mubr.f32.mxu0 0.0
    %v1212 = vand.u32 %v888, 4294901760
    %v1213 = vsub.f32 %v888, %v1212
    %v1214 = vand.u32 %v1213, 4294901760
    %1215 = vmatmul.mubr.f32.gmra.mrb[0].mxu0 %v1214
    %v1216 = vpop.f32.mrb[0].mxu0
    %v1217 = vadd.f32 %v1139, %v1216
    %v1218 = vpop.f32.mrb[0].mxu0
    %v1219 = vadd.f32 %v1141, %v1218
    %1220 = vdwg.mxu0
    %v1221 = vand.u32 %v82, 4294901760
    %v1222 = vsub.f32 %v82, %v1221
    %v1223 = vand.u32 %v1222, 4294901760
    %1224 = vmatprep.subr.mxu0 %v1223
    %v1225 = vand.u32 %v81, 4294901760
    %v1226 = vsub.f32 %v81, %v1225
    %v1227 = vand.u32 %v1226, 4294901760
    %1228 = vmatpush1.msra.mxu0 %v1227
    %v1229 = vand.u32 %v84, 4294901760
    %v1230 = vsub.f32 %v84, %v1229
    %v1231 = vand.u32 %v1230, 4294901760
    %1232 = vmatprep.subr.mxu0 %v1231
    %v1233 = vand.u32 %v83, 4294901760
    %v1234 = vsub.f32 %v83, %v1233
    %v1235 = vand.u32 %v1234, 4294901760
    %1236 = vmatpush1.msra.mxu0 %v1235
    %1237 = vmatprep.subr.mxu0 0.0
    %1238 = vmatpush1.msra.mxu0 0.0
    %1239 = vmatprep.subr.mxu0 0.0
    %1240 = vmatpush1.msra.mxu0 0.0
    %1241 = vmatprep.subr.mxu0 0.0
    %1242 = vmatpush1.msra.mxu0 0.0
    %1243 = vmatprep.subr.mxu0 0.0
    %1244 = vmatpush1.msra.mxu0 0.0
    %1245 = vmatprep.subr.mxu0 0.0
    %1246 = vmatpush1.msra.mxu0 0.0
    %1247 = vmatprep.subr.mxu0 0.0
    %1248 = vmatpush1.msra.mxu0 0.0
    %1249 = vmatprep.subr.mxu0 0.0
    %1250 = vmatpush1.msra.mxu0 0.0
    %1251 = vmatprep.subr.mxu0 0.0
    %1252 = vmatpush1.msra.mxu0 0.0
    %1253 = vmatprep.subr.mxu0 0.0
    %1254 = vmatpush1.msra.mxu0 0.0
    %1255 = vmatprep.subr.mxu0 0.0
    %1256 = vmatpush1.msra.mxu0 0.0
    %1257 = vmatprep.subr.mxu0 0.0
    %1258 = vmatpush1.msra.mxu0 0.0
    %1259 = vmatprep.subr.mxu0 0.0
    %1260 = vmatpush1.msra.mxu0 0.0
    %1261 = vmatprep.subr.mxu0 0.0
    %1262 = vmatpush1.msra.mxu0 0.0
    %1263 = vmatprep.subr.mxu0 0.0
    %1264 = vmatpush1.msra.mxu0 0.0
    %1265 = vmatprep.subr.mxu0 0.0
    %1266 = vmatpush1.msra.mxu0 0.0
    %1267 = vmatprep.subr.mxu0 0.0
    %1268 = vmatpush1.msra.mxu0 0.0
    %1269 = vmatprep.subr.mxu0 0.0
    %1270 = vmatpush1.msra.mxu0 0.0
    %1271 = vmatprep.subr.mxu0 0.0
    %1272 = vmatpush1.msra.mxu0 0.0
    %1273 = vmatprep.subr.mxu0 0.0
    %1274 = vmatpush1.msra.mxu0 0.0
    %1275 = vmatprep.subr.mxu0 0.0
    %1276 = vmatpush1.msra.mxu0 0.0
    %1277 = vmatprep.subr.mxu0 0.0
    %1278 = vmatpush1.msra.mxu0 0.0
    %1279 = vmatprep.subr.mxu0 0.0
    %1280 = vmatpush1.msra.mxu0 0.0
    %1281 = vmatprep.subr.mxu0 0.0
    %1282 = vmatpush1.msra.mxu0 0.0
    %1283 = vmatprep.subr.mxu0 0.0
    %1284 = vmatpush1.msra.mxu0 0.0
    %1285 = vmatprep.subr.mxu0 0.0
    %1286 = vmatpush1.msra.mxu0 0.0
    %1287 = vmatprep.subr.mxu0 0.0
    %1288 = vmatpush1.msra.mxu0 0.0
    %1289 = vmatprep.subr.mxu0 0.0
    %1290 = vmatpush1.msra.mxu0 0.0
    %1291 = vmatprep.subr.mxu0 0.0
    %1292 = vmatpush1.msra.mxu0 0.0
    %1293 = vmatprep.subr.mxu0 0.0
    %1294 = vmatpush1.msra.mxu0 0.0
    %1295 = vmatprep.subr.mxu0 0.0
    %1296 = vmatpush1.msra.mxu0 0.0
    %1297 = vmatprep.mubr.f32.mxu0 0.0
    %v1298 = vand.u32 %v888, 4294901760
    %1299 = vmatmul.mubr.f32.gmra.mrb[0].mxu0 %v1298
    %v1300 = vpop.f32.mrb[0].mxu0
    %v1301 = vadd.f32 %v1217, %v1300
    %v1302 = vpop.f32.mrb[0].mxu0
    %v1303 = vadd.f32 %v1219, %v1302
    %1304 = vdwg.mxu0
    %v1305 = vand.u32 %v82, 4294901760
    %1306 = vmatprep.subr.mxu0 %v1305
    %v1307 = vand.u32 %v81, 4294901760
    %1308 = vmatpush1.msra.mxu0 %v1307
    %v1309 = vand.u32 %v84, 4294901760
    %1310 = vmatprep.subr.mxu0 %v1309
    %v1311 = vand.u32 %v83, 4294901760
    %1312 = vmatpush1.msra.mxu0 %v1311
    %1313 = vmatprep.subr.mxu0 0.0
    %1314 = vmatpush1.msra.mxu0 0.0
    %1315 = vmatprep.subr.mxu0 0.0
    %1316 = vmatpush1.msra.mxu0 0.0
    %1317 = vmatprep.subr.mxu0 0.0
    %1318 = vmatpush1.msra.mxu0 0.0
    %1319 = vmatprep.subr.mxu0 0.0
    %1320 = vmatpush1.msra.mxu0 0.0
    %1321 = vmatprep.subr.mxu0 0.0
    %1322 = vmatpush1.msra.mxu0 0.0
    %1323 = vmatprep.subr.mxu0 0.0
    %1324 = vmatpush1.msra.mxu0 0.0
    %1325 = vmatprep.subr.mxu0 0.0
    %1326 = vmatpush1.msra.mxu0 0.0
    %1327 = vmatprep.subr.mxu0 0.0
    %1328 = vmatpush1.msra.mxu0 0.0
    %1329 = vmatprep.subr.mxu0 0.0
    %1330 = vmatpush1.msra.mxu0 0.0
    %1331 = vmatprep.subr.mxu0 0.0
    %1332 = vmatpush1.msra.mxu0 0.0
    %1333 = vmatprep.subr.mxu0 0.0
    %1334 = vmatpush1.msra.mxu0 0.0
    %1335 = vmatprep.subr.mxu0 0.0
    %1336 = vmatpush1.msra.mxu0 0.0
    %1337 = vmatprep.subr.mxu0 0.0
    %1338 = vmatpush1.msra.mxu0 0.0
    %1339 = vmatprep.subr.mxu0 0.0
    %1340 = vmatpush1.msra.mxu0 0.0
    %1341 = vmatprep.subr.mxu0 0.0
    %1342 = vmatpush1.msra.mxu0 0.0
    %1343 = vmatprep.subr.mxu0 0.0
    %1344 = vmatpush1.msra.mxu0 0.0
    %1345 = vmatprep.subr.mxu0 0.0
    %1346 = vmatpush1.msra.mxu0 0.0
    %1347 = vmatprep.subr.mxu0 0.0
    %1348 = vmatpush1.msra.mxu0 0.0
    %1349 = vmatprep.subr.mxu0 0.0
    %1350 = vmatpush1.msra.mxu0 0.0
    %1351 = vmatprep.subr.mxu0 0.0
    %1352 = vmatpush1.msra.mxu0 0.0
    %1353 = vmatprep.subr.mxu0 0.0
    %1354 = vmatpush1.msra.mxu0 0.0
    %1355 = vmatprep.subr.mxu0 0.0
    %1356 = vmatpush1.msra.mxu0 0.0
    %1357 = vmatprep.subr.mxu0 0.0
    %1358 = vmatpush1.msra.mxu0 0.0
    %1359 = vmatprep.subr.mxu0 0.0
    %1360 = vmatpush1.msra.mxu0 0.0
    %1361 = vmatprep.subr.mxu0 0.0
    %1362 = vmatpush1.msra.mxu0 0.0
    %1363 = vmatprep.subr.mxu0 0.0
    %1364 = vmatpush1.msra.mxu0 0.0
    %1365 = vmatprep.subr.mxu0 0.0
    %1366 = vmatpush1.msra.mxu0 0.0
    %1367 = vmatprep.subr.mxu0 0.0
    %1368 = vmatpush1.msra.mxu0 0.0
    %1369 = vmatprep.subr.mxu0 0.0
    %1370 = vmatpush1.msra.mxu0 0.0
    %1371 = vmatprep.subr.mxu0 0.0
    %1372 = vmatpush1.msra.mxu0 0.0
    %1373 = vmatprep.mubr.f32.mxu0 0.0
    %v1374 = vand.u32 %v888, 4294901760
    %1375 = vmatmul.mubr.f32.gmra.mrb[0].mxu0 %v1374
    %v1376 = vpop.f32.mrb[0].mxu0
    %v1377 = vadd.f32 %v1301, %v1376
    %v1378 = vpop.f32.mrb[0].mxu0
    %v1379 = vadd.f32 %v1303, %v1378
    %1380 = vdwg.mxu0
    %v1381 = vmul.f32 %v326, %v229
    %v1382 = vmul.f32 %v326, %v230
    %v1383 = vmul.f32 %v327, %v231
    %v1384 = vmul.f32 %v327, %v232
    %v1385 = vmul.f32 %v328, %v233
    %v1386 = vmul.f32 %v328, %v234
    %v1387 = vmul.f32 %v329, %v235
    %v1388 = vmul.f32 %v329, %v236
    %v1389 = vmax.f32 %v1381, %v1383
    %v1390 = vrot.slane %v1389, 4
    %v1391 = vmax.f32 %v1389, %v1390
    %v1392 = vrot.slane %v1391, 2
    %v1393 = vmax.f32 %v1391, %v1392
    %v1394 = vrot.slane %v1393, 1
    %v1395 = vmax.f32 %v1393, %v1394
    %v1396 = vmax.f32 %v1382, %v1384
    %v1397 = vrot.slane %v1396, 4
    %v1398 = vmax.f32 %v1396, %v1397
    %v1399 = vrot.slane %v1398, 2
    %v1400 = vmax.f32 %v1398, %v1399
    %v1401 = vrot.slane %v1400, 1
    %v1402 = vmax.f32 %v1400, %v1401
    %v1403 = vmax.f32 %v1385, %v1387
    %v1404 = vrot.slane %v1403, 4
    %v1405 = vmax.f32 %v1403, %v1404
    %v1406 = vrot.slane %v1405, 2
    %v1407 = vmax.f32 %v1405, %v1406
    %v1408 = vrot.slane %v1407, 1
    %v1409 = vmax.f32 %v1407, %v1408
    %v1410 = vmax.f32 %v1386, %v1388
    %v1411 = vrot.slane %v1410, 4
    %v1412 = vmax.f32 %v1410, %v1411
    %v1413 = vrot.slane %v1412, 2
    %v1414 = vmax.f32 %v1412, %v1413
    %v1415 = vrot.slane %v1414, 1
    %v1416 = vmax.f32 %v1414, %v1415
    %v1417 = vsub.f32 1.0, %v326
    %v1418 = vsub.f32 1.0, %v327
    %v1419 = vsub.f32 1.0, %v328
    %v1420 = vsub.f32 1.0, %v329
    %v1421 = vmul.f32 %v1417, %v229
    %v1422 = vmul.f32 %v1417, %v230
    %v1423 = vmul.f32 %v1418, %v231
    %v1424 = vmul.f32 %v1418, %v232
    %v1425 = vmul.f32 %v1419, %v233
    %v1426 = vmul.f32 %v1419, %v234
    %v1427 = vmul.f32 %v1420, %v235
    %v1428 = vmul.f32 %v1420, %v236
    %v1429 = vmax.f32 %v1421, %v1423
    %v1430 = vrot.slane %v1429, 4
    %v1431 = vmax.f32 %v1429, %v1430
    %v1432 = vrot.slane %v1431, 2
    %v1433 = vmax.f32 %v1431, %v1432
    %v1434 = vrot.slane %v1433, 1
    %v1435 = vmax.f32 %v1433, %v1434
    %v1436 = vmax.f32 %v1422, %v1424
    %v1437 = vrot.slane %v1436, 4
    %v1438 = vmax.f32 %v1436, %v1437
    %v1439 = vrot.slane %v1438, 2
    %v1440 = vmax.f32 %v1438, %v1439
    %v1441 = vrot.slane %v1440, 1
    %v1442 = vmax.f32 %v1440, %v1441
    %v1443 = vmax.f32 %v1425, %v1427
    %v1444 = vrot.slane %v1443, 4
    %v1445 = vmax.f32 %v1443, %v1444
    %v1446 = vrot.slane %v1445, 2
    %v1447 = vmax.f32 %v1445, %v1446
    %v1448 = vrot.slane %v1447, 1
    %v1449 = vmax.f32 %v1447, %v1448
    %v1450 = vmax.f32 %v1426, %v1428
    %v1451 = vrot.slane %v1450, 4
    %v1452 = vmax.f32 %v1450, %v1451
    %v1453 = vrot.slane %v1452, 2
    %v1454 = vmax.f32 %v1452, %v1453
    %v1455 = vrot.slane %v1454, 1
    %v1456 = vmax.f32 %v1454, %v1455
    %v1457 = vmul.f32 %v883, 0.1
    %v1458 = vmul.f32 %v885, 0.1
    %v1459 = vmul.f32 %v1377, 0.1
    %v1460 = vmul.f32 %v1379, 0.1
    %v1465 = vrot.slane %v883, 1
    %v1466 = vrot.slane %v885, 1
    %v1467 = vrot.slane %v1377, 1
    %v1468 = vrot.slane %v1379, 1
    %v1473 = vsub.f32 %v883, %v1465
    %v1474 = vsub.f32 %v885, %v1466
    %v1475 = vsub.f32 %v1377, %v1467
    %v1476 = vsub.f32 %v1379, %v1468
    %v1477 = vmul.f32 %v1473, 0.16666667
    %v1478 = vmul.f32 %v1474, 0.16666667
    %v1479 = vmul.f32 %v1475, 0.16666667
    %v1480 = vmul.f32 %v1476, 0.16666667
    %v1485 = vrot.slane %v1457, 1
    %v1486 = vsel %vm172, %v1459, %v1485
    %v1487 = vrot.slane %v1458, 1
    %v1488 = vsel %vm172, %v1460, %v1487
    %v1495 = vrot.slane %v1477, 6
    %v1496 = vrot.slane %v1479, 5
    %vm1497 = vcmask 1043459
    %v1498 = vsel %vm1497, %v1496, %v1495
    %v1499 = vrot.slane %v1478, 6
    %v1500 = vrot.slane %v1480, 5
    %v1501 = vsel %vm1497, %v1500, %v1499
    %vm1508 = vcmask 1045509
    %v1509 = vsel %vm1508, %v1409, %v1395
    %v1510 = vsel %vm1508, %v1416, %v1402
    %vm1517 = vcmask 1047559
    %v1518 = vsel %vm1517, %v1449, %v1435
    %v1519 = vsel %vm1517, %v1456, %v1442
    %vm1522 = vcmask 1041408
    %v1523 = vsel %vm1522, %v1486, %v1498
    %v1524 = vsel %vm1522, %v1488, %v1501
    %vm1525 = vcmask 1043456
    %v1526 = vsel %vm1525, %v1523, %v1509
    %v1527 = vsel %vm1525, %v1524, %v1510
    %vm1528 = vcmask 1045504
    %v1529 = vsel %vm1528, %v1526, %v1518
    %v1530 = vsel %vm1528, %v1527, %v1519
    %1531 = vrot.lane.b32.xlu0 %v1529, 51
    %v1532 = vpop.permute.xlu0 %1531
    %1533 = vrot.lane.b32.xlu0 %v1530, 51
    %v1534 = vpop.permute.xlu0 %1533
    %vm1535 = vcmp.lt.s32.totalorder %v150, 51
    %v1536 = vsel %vm1535, %v1532, %v1534
    %v1537 = vsel %vm1535, %v1534, %v1532
    %v1538 = vld [vmem:[#allocation6] sm:$0xff]
    %v1539 = vld [vmem:[#allocation6 + $0x8] sm:$0xff]
    %v1540 = vmul.f32 %v1537, %v1538
    %v1541 = vmul.f32 %v1536, %v1539
    %v1542 = vadd.f32 %v1540, 0.0
    %v1543 = vadd.f32 %v1541, 0.0
    %1544 = vrot.lane.b32.xlu0 %v1529, 50
    %v1545 = vpop.permute.xlu0 %1544
    %1546 = vrot.lane.b32.xlu0 %v1530, 50
    %v1547 = vpop.permute.xlu0 %1546
    %vm1548 = vcmp.lt.s32.totalorder %v150, 50
    %v1549 = vsel %vm1548, %v1545, %v1547
    %v1550 = vsel %vm1548, %v1547, %v1545
    %s1551 = scalar_lea.vmem [#allocation6], 16
    %v1552 = vld [vmem:[%s1551] sm:$0xff]
    %v1553 = vld [vmem:[%s1551 + $0x8] sm:$0xff]
    %v1554 = vmul.f32 %v1550, %v1552
    %v1555 = vmul.f32 %v1549, %v1553
    %v1556 = vadd.f32 %v1542, %v1554
    %v1557 = vadd.f32 %v1543, %v1555
    %1558 = vrot.lane.b32.xlu0 %v1529, 49
    %v1559 = vpop.permute.xlu0 %1558
    %1560 = vrot.lane.b32.xlu0 %v1530, 49
    %v1561 = vpop.permute.xlu0 %1560
    %vm1562 = vcmp.lt.s32.totalorder %v150, 49
    %v1563 = vsel %vm1562, %v1559, %v1561
    %v1564 = vsel %vm1562, %v1561, %v1559
    %s1565 = scalar_lea.vmem [#allocation6], 32
    %v1566 = vld [vmem:[%s1565] sm:$0xff]
    %v1567 = vld [vmem:[%s1565 + $0x8] sm:$0xff]
    %v1568 = vmul.f32 %v1564, %v1566
    %v1569 = vmul.f32 %v1563, %v1567
    %v1570 = vadd.f32 %v1556, %v1568
    %v1571 = vadd.f32 %v1557, %v1569
    %1572 = vrot.lane.b32.xlu0 %v1529, 48
    %v1573 = vpop.permute.xlu0 %1572
    %1574 = vrot.lane.b32.xlu0 %v1530, 48
    %v1575 = vpop.permute.xlu0 %1574
    %vm1576 = vcmp.lt.s32.totalorder %v150, 48
    %v1577 = vsel %vm1576, %v1573, %v1575
    %v1578 = vsel %vm1576, %v1575, %v1573
    %s1579 = scalar_lea.vmem [#allocation6], 48
    %v1580 = vld [vmem:[%s1579] sm:$0xff]
    %v1581 = vld [vmem:[%s1579 + $0x8] sm:$0xff]
    %v1582 = vmul.f32 %v1578, %v1580
    %v1583 = vmul.f32 %v1577, %v1581
    %v1584 = vadd.f32 %v1570, %v1582
    %v1585 = vadd.f32 %v1571, %v1583
    %1586 = vrot.lane.b32.xlu0 %v1529, 47
    %v1587 = vpop.permute.xlu0 %1586
    %1588 = vrot.lane.b32.xlu0 %v1530, 47
    %v1589 = vpop.permute.xlu0 %1588
    %vm1590 = vcmp.lt.s32.totalorder %v150, 47
    %v1591 = vsel %vm1590, %v1587, %v1589
    %v1592 = vsel %vm1590, %v1589, %v1587
    %s1593 = scalar_lea.vmem [#allocation6], 64
    %v1594 = vld [vmem:[%s1593] sm:$0xff]
    %v1595 = vld [vmem:[%s1593 + $0x8] sm:$0xff]
    %v1596 = vmul.f32 %v1592, %v1594
    %v1597 = vmul.f32 %v1591, %v1595
    %v1598 = vadd.f32 %v1584, %v1596
    %v1599 = vadd.f32 %v1585, %v1597
    %1600 = vrot.lane.b32.xlu0 %v1529, 46
    %v1601 = vpop.permute.xlu0 %1600
    %1602 = vrot.lane.b32.xlu0 %v1530, 46
    %v1603 = vpop.permute.xlu0 %1602
    %vm1604 = vcmp.lt.s32.totalorder %v150, 46
    %v1605 = vsel %vm1604, %v1601, %v1603
    %v1606 = vsel %vm1604, %v1603, %v1601
    %s1607 = scalar_lea.vmem [#allocation6], 80
    %v1608 = vld [vmem:[%s1607] sm:$0xff]
    %v1609 = vld [vmem:[%s1607 + $0x8] sm:$0xff]
    %v1610 = vmul.f32 %v1606, %v1608
    %v1611 = vmul.f32 %v1605, %v1609
    %v1612 = vadd.f32 %v1598, %v1610
    %v1613 = vadd.f32 %v1599, %v1611
    %1614 = vrot.lane.b32.xlu0 %v1529, 45
    %v1615 = vpop.permute.xlu0 %1614
    %1616 = vrot.lane.b32.xlu0 %v1530, 45
    %v1617 = vpop.permute.xlu0 %1616
    %vm1618 = vcmp.lt.s32.totalorder %v150, 45
    %v1619 = vsel %vm1618, %v1615, %v1617
    %v1620 = vsel %vm1618, %v1617, %v1615
    %s1621 = scalar_lea.vmem [#allocation6], 96
    %v1622 = vld [vmem:[%s1621] sm:$0xff]
    %v1623 = vld [vmem:[%s1621 + $0x8] sm:$0xff]
    %v1624 = vmul.f32 %v1620, %v1622
    %v1625 = vmul.f32 %v1619, %v1623
    %v1626 = vadd.f32 %v1612, %v1624
    %v1627 = vadd.f32 %v1613, %v1625
    %1628 = vrot.lane.b32.xlu0 %v1529, 35
    %v1629 = vpop.permute.xlu0 %1628
    %1630 = vrot.lane.b32.xlu0 %v1530, 35
    %v1631 = vpop.permute.xlu0 %1630
    %vm1632 = vcmp.lt.s32.totalorder %v150, 35
    %v1633 = vsel %vm1632, %v1629, %v1631
    %v1634 = vsel %vm1632, %v1631, %v1629
    %s1635 = scalar_lea.vmem [#allocation6], 112
    %v1636 = vld [vmem:[%s1635] sm:$0xff]
    %v1637 = vld [vmem:[%s1635 + $0x8] sm:$0xff]
    %v1638 = vmul.f32 %v1634, %v1636
    %v1639 = vmul.f32 %v1633, %v1637
    %v1640 = vadd.f32 %v1626, %v1638
    %v1641 = vadd.f32 %v1627, %v1639
    %1642 = vrot.lane.b32.xlu0 %v1529, 34
    %v1643 = vpop.permute.xlu0 %1642
    %1644 = vrot.lane.b32.xlu0 %v1530, 34
    %v1645 = vpop.permute.xlu0 %1644
    %vm1646 = vcmp.lt.s32.totalorder %v150, 34
    %v1647 = vsel %vm1646, %v1643, %v1645
    %v1648 = vsel %vm1646, %v1645, %v1643
    %s1649 = scalar_lea.vmem [#allocation6], 128
    %v1650 = vld [vmem:[%s1649] sm:$0xff]
    %v1651 = vld [vmem:[%s1649 + $0x8] sm:$0xff]
    %v1652 = vmul.f32 %v1648, %v1650
    %v1653 = vmul.f32 %v1647, %v1651
    %v1654 = vadd.f32 %v1640, %v1652
    %v1655 = vadd.f32 %v1641, %v1653
    %1656 = vrot.lane.b32.xlu0 %v1529, 33
    %v1657 = vpop.permute.xlu0 %1656
    %1658 = vrot.lane.b32.xlu0 %v1530, 33
    %v1659 = vpop.permute.xlu0 %1658
    %vm1660 = vcmp.lt.s32.totalorder %v150, 33
    %v1661 = vsel %vm1660, %v1657, %v1659
    %v1662 = vsel %vm1660, %v1659, %v1657
    %s1663 = scalar_lea.vmem [#allocation6], 144
    %v1664 = vld [vmem:[%s1663] sm:$0xff]
    %v1665 = vld [vmem:[%s1663 + $0x8] sm:$0xff]
    %v1666 = vmul.f32 %v1662, %v1664
    %v1667 = vmul.f32 %v1661, %v1665
    %v1668 = vadd.f32 %v1654, %v1666
    %v1669 = vadd.f32 %v1655, %v1667
    %1670 = vrot.lane.b32.xlu0 %v1529, 32
    %v1671 = vpop.permute.xlu0 %1670
    %1672 = vrot.lane.b32.xlu0 %v1530, 32
    %v1673 = vpop.permute.xlu0 %1672
    %vm1674 = vcmp.lt.s32.totalorder %v150, 32
    %v1675 = vsel %vm1674, %v1671, %v1673
    %v1676 = vsel %vm1674, %v1673, %v1671
    %s1677 = scalar_lea.vmem [#allocation6], 160
    %v1678 = vld [vmem:[%s1677] sm:$0xff]
    %v1679 = vld [vmem:[%s1677 + $0x8] sm:$0xff]
    %v1680 = vmul.f32 %v1676, %v1678
    %v1681 = vmul.f32 %v1675, %v1679
    %v1682 = vadd.f32 %v1668, %v1680
    %v1683 = vadd.f32 %v1669, %v1681
    %1684 = vrot.lane.b32.xlu0 %v1529, 31
    %v1685 = vpop.permute.xlu0 %1684
    %1686 = vrot.lane.b32.xlu0 %v1530, 31
    %v1687 = vpop.permute.xlu0 %1686
    %vm1688 = vcmp.lt.s32.totalorder %v150, 31
    %v1689 = vsel %vm1688, %v1685, %v1687
    %v1690 = vsel %vm1688, %v1687, %v1685
    %s1691 = scalar_lea.vmem [#allocation6], 176
    %v1692 = vld [vmem:[%s1691] sm:$0xff]
    %v1693 = vld [vmem:[%s1691 + $0x8] sm:$0xff]
    %v1694 = vmul.f32 %v1690, %v1692
    %v1695 = vmul.f32 %v1689, %v1693
    %v1696 = vadd.f32 %v1682, %v1694
    %v1697 = vadd.f32 %v1683, %v1695
    %1698 = vrot.lane.b32.xlu0 %v1529, 30
    %v1699 = vpop.permute.xlu0 %1698
    %1700 = vrot.lane.b32.xlu0 %v1530, 30
    %v1701 = vpop.permute.xlu0 %1700
    %vm1702 = vcmp.lt.s32.totalorder %v150, 30
    %v1703 = vsel %vm1702, %v1699, %v1701
    %v1704 = vsel %vm1702, %v1701, %v1699
    %s1705 = scalar_lea.vmem [#allocation6], 192
    %v1706 = vld [vmem:[%s1705] sm:$0xff]
    %v1707 = vld [vmem:[%s1705 + $0x8] sm:$0xff]
    %v1708 = vmul.f32 %v1704, %v1706
    %v1709 = vmul.f32 %v1703, %v1707
    %v1710 = vadd.f32 %v1696, %v1708
    %v1711 = vadd.f32 %v1697, %v1709
    %1712 = vrot.lane.b32.xlu0 %v1529, 29
    %v1713 = vpop.permute.xlu0 %1712
    %1714 = vrot.lane.b32.xlu0 %v1530, 29
    %v1715 = vpop.permute.xlu0 %1714
    %vm1716 = vcmp.lt.s32.totalorder %v150, 29
    %v1717 = vsel %vm1716, %v1713, %v1715
    %v1718 = vsel %vm1716, %v1715, %v1713
    %s1719 = scalar_lea.vmem [#allocation6], 208
    %v1720 = vld [vmem:[%s1719] sm:$0xff]
    %v1721 = vld [vmem:[%s1719 + $0x8] sm:$0xff]
    %v1722 = vmul.f32 %v1718, %v1720
    %v1723 = vmul.f32 %v1717, %v1721
    %v1724 = vadd.f32 %v1710, %v1722
    %v1725 = vadd.f32 %v1711, %v1723
    %1726 = vrot.lane.b32.xlu0 %v1529, 19
    %v1727 = vpop.permute.xlu0 %1726
    %1728 = vrot.lane.b32.xlu0 %v1530, 19
    %v1729 = vpop.permute.xlu0 %1728
    %vm1730 = vcmp.lt.s32.totalorder %v150, 19
    %v1731 = vsel %vm1730, %v1727, %v1729
    %v1732 = vsel %vm1730, %v1729, %v1727
    %s1733 = scalar_lea.vmem [#allocation6], 224
    %v1734 = vld [vmem:[%s1733] sm:$0xff]
    %v1735 = vld [vmem:[%s1733 + $0x8] sm:$0xff]
    %v1736 = vmul.f32 %v1732, %v1734
    %v1737 = vmul.f32 %v1731, %v1735
    %v1738 = vadd.f32 %v1724, %v1736
    %v1739 = vadd.f32 %v1725, %v1737
    %1740 = vrot.lane.b32.xlu0 %v1529, 18
    %v1741 = vpop.permute.xlu0 %1740
    %1742 = vrot.lane.b32.xlu0 %v1530, 18
    %v1743 = vpop.permute.xlu0 %1742
    %vm1744 = vcmp.lt.s32.totalorder %v150, 18
    %v1745 = vsel %vm1744, %v1741, %v1743
    %v1746 = vsel %vm1744, %v1743, %v1741
    %s1747 = scalar_lea.vmem [#allocation6], 240
    %v1748 = vld [vmem:[%s1747] sm:$0xff]
    %v1749 = vld [vmem:[%s1747 + $0x8] sm:$0xff]
    %v1750 = vmul.f32 %v1746, %v1748
    %v1751 = vmul.f32 %v1745, %v1749
    %v1752 = vadd.f32 %v1738, %v1750
    %v1753 = vadd.f32 %v1739, %v1751
    %1754 = vrot.lane.b32.xlu0 %v1529, 17
    %v1755 = vpop.permute.xlu0 %1754
    %1756 = vrot.lane.b32.xlu0 %v1530, 17
    %v1757 = vpop.permute.xlu0 %1756
    %vm1758 = vcmp.lt.s32.totalorder %v150, 17
    %v1759 = vsel %vm1758, %v1755, %v1757
    %v1760 = vsel %vm1758, %v1757, %v1755
    %s1761 = scalar_lea.vmem [#allocation6], 256
    %v1762 = vld [vmem:[%s1761] sm:$0xff]
    %v1763 = vld [vmem:[%s1761 + $0x8] sm:$0xff]
    %v1764 = vmul.f32 %v1760, %v1762
    %v1765 = vmul.f32 %v1759, %v1763
    %v1766 = vadd.f32 %v1752, %v1764
    %v1767 = vadd.f32 %v1753, %v1765
    %1768 = vrot.lane.b32.xlu0 %v1529, 16
    %v1769 = vpop.permute.xlu0 %1768
    %1770 = vrot.lane.b32.xlu0 %v1530, 16
    %v1771 = vpop.permute.xlu0 %1770
    %vm1772 = vcmp.lt.s32.totalorder %v150, 16
    %v1773 = vsel %vm1772, %v1769, %v1771
    %v1774 = vsel %vm1772, %v1771, %v1769
    %s1775 = scalar_lea.vmem [#allocation6], 272
    %v1776 = vld [vmem:[%s1775] sm:$0xff]
    %v1777 = vld [vmem:[%s1775 + $0x8] sm:$0xff]
    %v1778 = vmul.f32 %v1774, %v1776
    %v1779 = vmul.f32 %v1773, %v1777
    %v1780 = vadd.f32 %v1766, %v1778
    %v1781 = vadd.f32 %v1767, %v1779
    %1782 = vrot.lane.b32.xlu0 %v1529, 15
    %v1783 = vpop.permute.xlu0 %1782
    %1784 = vrot.lane.b32.xlu0 %v1530, 15
    %v1785 = vpop.permute.xlu0 %1784
    %vm1786 = vcmp.lt.s32.totalorder %v150, 15
    %v1787 = vsel %vm1786, %v1783, %v1785
    %v1788 = vsel %vm1786, %v1785, %v1783
    %s1789 = scalar_lea.vmem [#allocation6], 288
    %v1790 = vld [vmem:[%s1789] sm:$0xff]
    %v1791 = vld [vmem:[%s1789 + $0x8] sm:$0xff]
    %v1792 = vmul.f32 %v1788, %v1790
    %v1793 = vmul.f32 %v1787, %v1791
    %v1794 = vadd.f32 %v1780, %v1792
    %v1795 = vadd.f32 %v1781, %v1793
    %1796 = vrot.lane.b32.xlu0 %v1529, 14
    %v1797 = vpop.permute.xlu0 %1796
    %1798 = vrot.lane.b32.xlu0 %v1530, 14
    %v1799 = vpop.permute.xlu0 %1798
    %vm1800 = vcmp.lt.s32.totalorder %v150, 14
    %v1801 = vsel %vm1800, %v1797, %v1799
    %v1802 = vsel %vm1800, %v1799, %v1797
    %s1803 = scalar_lea.vmem [#allocation6], 304
    %v1804 = vld [vmem:[%s1803] sm:$0xff]
    %v1805 = vld [vmem:[%s1803 + $0x8] sm:$0xff]
    %v1806 = vmul.f32 %v1802, %v1804
    %v1807 = vmul.f32 %v1801, %v1805
    %v1808 = vadd.f32 %v1794, %v1806
    %v1809 = vadd.f32 %v1795, %v1807
    %1810 = vrot.lane.b32.xlu0 %v1529, 13
    %v1811 = vpop.permute.xlu0 %1810
    %1812 = vrot.lane.b32.xlu0 %v1530, 13
    %v1813 = vpop.permute.xlu0 %1812
    %vm1814 = vcmp.lt.s32.totalorder %v150, 13
    %v1815 = vsel %vm1814, %v1811, %v1813
    %v1816 = vsel %vm1814, %v1813, %v1811
    %s1817 = scalar_lea.vmem [#allocation6], 320
    %v1818 = vld [vmem:[%s1817] sm:$0xff]
    %v1819 = vld [vmem:[%s1817 + $0x8] sm:$0xff]
    %v1820 = vmul.f32 %v1816, %v1818
    %v1821 = vmul.f32 %v1815, %v1819
    %v1822 = vadd.f32 %v1808, %v1820
    %v1823 = vadd.f32 %v1809, %v1821
    %1824 = vrot.lane.b32.xlu0 %v1529, 3
    %v1825 = vpop.permute.xlu0 %1824
    %1826 = vrot.lane.b32.xlu0 %v1530, 3
    %v1827 = vpop.permute.xlu0 %1826
    %vm1828 = vcmp.lt.s32.totalorder %v150, 3
    %v1829 = vsel %vm1828, %v1825, %v1827
    %v1830 = vsel %vm1828, %v1827, %v1825
    %s1831 = scalar_lea.vmem [#allocation6], 336
    %v1832 = vld [vmem:[%s1831] sm:$0xff]
    %v1833 = vld [vmem:[%s1831 + $0x8] sm:$0xff]
    %v1834 = vmul.f32 %v1830, %v1832
    %v1835 = vmul.f32 %v1829, %v1833
    %v1836 = vadd.f32 %v1822, %v1834
    %v1837 = vadd.f32 %v1823, %v1835
    %1838 = vrot.lane.b32.xlu0 %v1529, 2
    %v1839 = vpop.permute.xlu0 %1838
    %1840 = vrot.lane.b32.xlu0 %v1530, 2
    %v1841 = vpop.permute.xlu0 %1840
    %vm1842 = vcmp.lt.s32.totalorder %v150, 2
    %v1843 = vsel %vm1842, %v1839, %v1841
    %v1844 = vsel %vm1842, %v1841, %v1839
    %s1845 = scalar_lea.vmem [#allocation6], 352
    %v1846 = vld [vmem:[%s1845] sm:$0xff]
    %v1847 = vld [vmem:[%s1845 + $0x8] sm:$0xff]
    %v1848 = vmul.f32 %v1844, %v1846
    %v1849 = vmul.f32 %v1843, %v1847
    %v1850 = vadd.f32 %v1836, %v1848
    %v1851 = vadd.f32 %v1837, %v1849
    %1852 = vrot.lane.b32.xlu0 %v1529, 1
    %v1853 = vpop.permute.xlu0 %1852
    %1854 = vrot.lane.b32.xlu0 %v1530, 1
    %v1855 = vpop.permute.xlu0 %1854
    %vm1856 = vcmp.lt.s32.totalorder %v150, 1
    %v1857 = vsel %vm1856, %v1853, %v1855
    %v1858 = vsel %vm1856, %v1855, %v1853
    %s1859 = scalar_lea.vmem [#allocation6], 368
    %v1860 = vld [vmem:[%s1859] sm:$0xff]
    %v1861 = vld [vmem:[%s1859 + $0x8] sm:$0xff]
    %v1862 = vmul.f32 %v1858, %v1860
    %v1863 = vmul.f32 %v1857, %v1861
    %v1864 = vadd.f32 %v1850, %v1862
    %v1865 = vadd.f32 %v1851, %v1863
    %s1866 = scalar_lea.vmem [#allocation6], 384
    %v1867 = vld [vmem:[%s1866] sm:$0xff]
    %v1868 = vld [vmem:[%s1866 + $0x8] sm:$0xff]
    %v1869 = vmul.f32 %v1529, %v1867
    %v1870 = vmul.f32 %v1530, %v1868
    %v1871 = vadd.f32 %v1864, %v1869
    %v1872 = vadd.f32 %v1865, %v1870
    %1873 = vrot.lane.b32.xlu0 %v1529, 127
    %v1874 = vpop.permute.xlu0 %1873
    %1875 = vrot.lane.b32.xlu0 %v1530, 127
    %v1876 = vpop.permute.xlu0 %1875
    %vm1877 = vcmp.lt.s32.totalorder %v150, 127
    %v1878 = vsel %vm1877, %v1874, %v1876
    %v1879 = vsel %vm1877, %v1876, %v1874
    %s1880 = scalar_lea.vmem [#allocation6], 400
    %v1881 = vld [vmem:[%s1880] sm:$0xff]
    %v1882 = vld [vmem:[%s1880 + $0x8] sm:$0xff]
    %v1883 = vmul.f32 %v1878, %v1881
    %v1884 = vmul.f32 %v1879, %v1882
    %v1885 = vadd.f32 %v1871, %v1883
    %v1886 = vadd.f32 %v1872, %v1884
    %1887 = vrot.lane.b32.xlu0 %v1529, 126
    %v1888 = vpop.permute.xlu0 %1887
    %1889 = vrot.lane.b32.xlu0 %v1530, 126
    %v1890 = vpop.permute.xlu0 %1889
    %vm1891 = vcmp.lt.s32.totalorder %v150, 126
    %v1892 = vsel %vm1891, %v1888, %v1890
    %v1893 = vsel %vm1891, %v1890, %v1888
    %s1894 = scalar_lea.vmem [#allocation6], 416
    %v1895 = vld [vmem:[%s1894] sm:$0xff]
    %v1896 = vld [vmem:[%s1894 + $0x8] sm:$0xff]
    %v1897 = vmul.f32 %v1892, %v1895
    %v1898 = vmul.f32 %v1893, %v1896
    %v1899 = vadd.f32 %v1885, %v1897
    %v1900 = vadd.f32 %v1886, %v1898
    %1901 = vrot.lane.b32.xlu0 %v1529, 125
    %v1902 = vpop.permute.xlu0 %1901
    %1903 = vrot.lane.b32.xlu0 %v1530, 125
    %v1904 = vpop.permute.xlu0 %1903
    %vm1905 = vcmp.lt.s32.totalorder %v150, 125
    %v1906 = vsel %vm1905, %v1902, %v1904
    %v1907 = vsel %vm1905, %v1904, %v1902
    %s1908 = scalar_lea.vmem [#allocation6], 432
    %v1909 = vld [vmem:[%s1908] sm:$0xff]
    %v1910 = vld [vmem:[%s1908 + $0x8] sm:$0xff]
    %v1911 = vmul.f32 %v1906, %v1909
    %v1912 = vmul.f32 %v1907, %v1910
    %v1913 = vadd.f32 %v1899, %v1911
    %v1914 = vadd.f32 %v1900, %v1912
    %1915 = vrot.lane.b32.xlu0 %v1529, 115
    %v1916 = vpop.permute.xlu0 %1915
    %1917 = vrot.lane.b32.xlu0 %v1530, 115
    %v1918 = vpop.permute.xlu0 %1917
    %vm1919 = vcmp.lt.s32.totalorder %v150, 115
    %v1920 = vsel %vm1919, %v1916, %v1918
    %v1921 = vsel %vm1919, %v1918, %v1916
    %s1922 = scalar_lea.vmem [#allocation6], 448
    %v1923 = vld [vmem:[%s1922] sm:$0xff]
    %v1924 = vld [vmem:[%s1922 + $0x8] sm:$0xff]
    %v1925 = vmul.f32 %v1920, %v1923
    %v1926 = vmul.f32 %v1921, %v1924
    %v1927 = vadd.f32 %v1913, %v1925
    %v1928 = vadd.f32 %v1914, %v1926
    %1929 = vrot.lane.b32.xlu0 %v1529, 114
    %v1930 = vpop.permute.xlu0 %1929
    %1931 = vrot.lane.b32.xlu0 %v1530, 114
    %v1932 = vpop.permute.xlu0 %1931
    %vm1933 = vcmp.lt.s32.totalorder %v150, 114
    %v1934 = vsel %vm1933, %v1930, %v1932
    %v1935 = vsel %vm1933, %v1932, %v1930
    %s1936 = scalar_lea.vmem [#allocation6], 464
    %v1937 = vld [vmem:[%s1936] sm:$0xff]
    %v1938 = vld [vmem:[%s1936 + $0x8] sm:$0xff]
    %v1939 = vmul.f32 %v1934, %v1937
    %v1940 = vmul.f32 %v1935, %v1938
    %v1941 = vadd.f32 %v1927, %v1939
    %v1942 = vadd.f32 %v1928, %v1940
    %1943 = vrot.lane.b32.xlu0 %v1529, 113
    %v1944 = vpop.permute.xlu0 %1943
    %1945 = vrot.lane.b32.xlu0 %v1530, 113
    %v1946 = vpop.permute.xlu0 %1945
    %vm1947 = vcmp.lt.s32.totalorder %v150, 113
    %v1948 = vsel %vm1947, %v1944, %v1946
    %v1949 = vsel %vm1947, %v1946, %v1944
    %s1950 = scalar_lea.vmem [#allocation6], 480
    %v1951 = vld [vmem:[%s1950] sm:$0xff]
    %v1952 = vld [vmem:[%s1950 + $0x8] sm:$0xff]
    %v1953 = vmul.f32 %v1948, %v1951
    %v1954 = vmul.f32 %v1949, %v1952
    %v1955 = vadd.f32 %v1941, %v1953
    %v1956 = vadd.f32 %v1942, %v1954
    %1957 = vrot.lane.b32.xlu0 %v1529, 112
    %v1958 = vpop.permute.xlu0 %1957
    %1959 = vrot.lane.b32.xlu0 %v1530, 112
    %v1960 = vpop.permute.xlu0 %1959
    %vm1961 = vcmp.lt.s32.totalorder %v150, 112
    %v1962 = vsel %vm1961, %v1958, %v1960
    %v1963 = vsel %vm1961, %v1960, %v1958
    %s1964 = scalar_lea.vmem [#allocation6], 496
    %v1965 = vld [vmem:[%s1964] sm:$0xff]
    %v1966 = vld [vmem:[%s1964 + $0x8] sm:$0xff]
    %v1967 = vmul.f32 %v1962, %v1965
    %v1968 = vmul.f32 %v1963, %v1966
    %v1969 = vadd.f32 %v1955, %v1967
    %v1970 = vadd.f32 %v1956, %v1968
    %1971 = vrot.lane.b32.xlu0 %v1529, 111
    %v1972 = vpop.permute.xlu0 %1971
    %1973 = vrot.lane.b32.xlu0 %v1530, 111
    %v1974 = vpop.permute.xlu0 %1973
    %vm1975 = vcmp.lt.s32.totalorder %v150, 111
    %v1976 = vsel %vm1975, %v1972, %v1974
    %v1977 = vsel %vm1975, %v1974, %v1972
    %s1978 = scalar_lea.vmem [#allocation6], 512
    %v1979 = vld [vmem:[%s1978] sm:$0xff]
    %v1980 = vld [vmem:[%s1978 + $0x8] sm:$0xff]
    %v1981 = vmul.f32 %v1976, %v1979
    %v1982 = vmul.f32 %v1977, %v1980
    %v1983 = vadd.f32 %v1969, %v1981
    %v1984 = vadd.f32 %v1970, %v1982
    %1985 = vrot.lane.b32.xlu0 %v1529, 110
    %v1986 = vpop.permute.xlu0 %1985
    %1987 = vrot.lane.b32.xlu0 %v1530, 110
    %v1988 = vpop.permute.xlu0 %1987
    %vm1989 = vcmp.lt.s32.totalorder %v150, 110
    %v1990 = vsel %vm1989, %v1986, %v1988
    %v1991 = vsel %vm1989, %v1988, %v1986
    %s1992 = scalar_lea.vmem [#allocation6], 528
    %v1993 = vld [vmem:[%s1992] sm:$0xff]
    %v1994 = vld [vmem:[%s1992 + $0x8] sm:$0xff]
    %v1995 = vmul.f32 %v1990, %v1993
    %v1996 = vmul.f32 %v1991, %v1994
    %v1997 = vadd.f32 %v1983, %v1995
    %v1998 = vadd.f32 %v1984, %v1996
    %1999 = vrot.lane.b32.xlu0 %v1529, 109
    %v2000 = vpop.permute.xlu0 %1999
    %2001 = vrot.lane.b32.xlu0 %v1530, 109
    %v2002 = vpop.permute.xlu0 %2001
    %vm2003 = vcmp.lt.s32.totalorder %v150, 109
    %v2004 = vsel %vm2003, %v2000, %v2002
    %v2005 = vsel %vm2003, %v2002, %v2000
    %s2006 = scalar_lea.vmem [#allocation6], 544
    %v2007 = vld [vmem:[%s2006] sm:$0xff]
    %v2008 = vld [vmem:[%s2006 + $0x8] sm:$0xff]
    %v2009 = vmul.f32 %v2004, %v2007
    %v2010 = vmul.f32 %v2005, %v2008
    %v2011 = vadd.f32 %v1997, %v2009
    %v2012 = vadd.f32 %v1998, %v2010
    %2013 = vrot.lane.b32.xlu0 %v1529, 99
    %v2014 = vpop.permute.xlu0 %2013
    %2015 = vrot.lane.b32.xlu0 %v1530, 99
    %v2016 = vpop.permute.xlu0 %2015
    %vm2017 = vcmp.lt.s32.totalorder %v150, 99
    %v2018 = vsel %vm2017, %v2014, %v2016
    %v2019 = vsel %vm2017, %v2016, %v2014
    %s2020 = scalar_lea.vmem [#allocation6], 560
    %v2021 = vld [vmem:[%s2020] sm:$0xff]
    %v2022 = vld [vmem:[%s2020 + $0x8] sm:$0xff]
    %v2023 = vmul.f32 %v2018, %v2021
    %v2024 = vmul.f32 %v2019, %v2022
    %v2025 = vadd.f32 %v2011, %v2023
    %v2026 = vadd.f32 %v2012, %v2024
    %2027 = vrot.lane.b32.xlu0 %v1529, 98
    %v2028 = vpop.permute.xlu0 %2027
    %2029 = vrot.lane.b32.xlu0 %v1530, 98
    %v2030 = vpop.permute.xlu0 %2029
    %vm2031 = vcmp.lt.s32.totalorder %v150, 98
    %v2032 = vsel %vm2031, %v2028, %v2030
    %v2033 = vsel %vm2031, %v2030, %v2028
    %s2034 = scalar_lea.vmem [#allocation6], 576
    %v2035 = vld [vmem:[%s2034] sm:$0xff]
    %v2036 = vld [vmem:[%s2034 + $0x8] sm:$0xff]
    %v2037 = vmul.f32 %v2032, %v2035
    %v2038 = vmul.f32 %v2033, %v2036
    %v2039 = vadd.f32 %v2025, %v2037
    %v2040 = vadd.f32 %v2026, %v2038
    %2041 = vrot.lane.b32.xlu0 %v1529, 97
    %v2042 = vpop.permute.xlu0 %2041
    %2043 = vrot.lane.b32.xlu0 %v1530, 97
    %v2044 = vpop.permute.xlu0 %2043
    %vm2045 = vcmp.lt.s32.totalorder %v150, 97
    %v2046 = vsel %vm2045, %v2042, %v2044
    %v2047 = vsel %vm2045, %v2044, %v2042
    %s2048 = scalar_lea.vmem [#allocation6], 592
    %v2049 = vld [vmem:[%s2048] sm:$0xff]
    %v2050 = vld [vmem:[%s2048 + $0x8] sm:$0xff]
    %v2051 = vmul.f32 %v2046, %v2049
    %v2052 = vmul.f32 %v2047, %v2050
    %v2053 = vadd.f32 %v2039, %v2051
    %v2054 = vadd.f32 %v2040, %v2052
    %2055 = vrot.lane.b32.xlu0 %v1529, 96
    %v2056 = vpop.permute.xlu0 %2055
    %2057 = vrot.lane.b32.xlu0 %v1530, 96
    %v2058 = vpop.permute.xlu0 %2057
    %vm2059 = vcmp.lt.s32.totalorder %v150, 96
    %v2060 = vsel %vm2059, %v2056, %v2058
    %v2061 = vsel %vm2059, %v2058, %v2056
    %s2062 = scalar_lea.vmem [#allocation6], 608
    %v2063 = vld [vmem:[%s2062] sm:$0xff]
    %v2064 = vld [vmem:[%s2062 + $0x8] sm:$0xff]
    %v2065 = vmul.f32 %v2060, %v2063
    %v2066 = vmul.f32 %v2061, %v2064
    %v2067 = vadd.f32 %v2053, %v2065
    %v2068 = vadd.f32 %v2054, %v2066
    %2069 = vrot.lane.b32.xlu0 %v1529, 95
    %v2070 = vpop.permute.xlu0 %2069
    %2071 = vrot.lane.b32.xlu0 %v1530, 95
    %v2072 = vpop.permute.xlu0 %2071
    %vm2073 = vcmp.lt.s32.totalorder %v150, 95
    %v2074 = vsel %vm2073, %v2070, %v2072
    %v2075 = vsel %vm2073, %v2072, %v2070
    %s2076 = scalar_lea.vmem [#allocation6], 624
    %v2077 = vld [vmem:[%s2076] sm:$0xff]
    %v2078 = vld [vmem:[%s2076 + $0x8] sm:$0xff]
    %v2079 = vmul.f32 %v2074, %v2077
    %v2080 = vmul.f32 %v2075, %v2078
    %v2081 = vadd.f32 %v2067, %v2079
    %v2082 = vadd.f32 %v2068, %v2080
    %2083 = vrot.lane.b32.xlu0 %v1529, 94
    %v2084 = vpop.permute.xlu0 %2083
    %2085 = vrot.lane.b32.xlu0 %v1530, 94
    %v2086 = vpop.permute.xlu0 %2085
    %vm2087 = vcmp.lt.s32.totalorder %v150, 94
    %v2088 = vsel %vm2087, %v2084, %v2086
    %v2089 = vsel %vm2087, %v2086, %v2084
    %s2090 = scalar_lea.vmem [#allocation6], 640
    %v2091 = vld [vmem:[%s2090] sm:$0xff]
    %v2092 = vld [vmem:[%s2090 + $0x8] sm:$0xff]
    %v2093 = vmul.f32 %v2088, %v2091
    %v2094 = vmul.f32 %v2089, %v2092
    %v2095 = vadd.f32 %v2081, %v2093
    %v2096 = vadd.f32 %v2082, %v2094
    %2097 = vrot.lane.b32.xlu0 %v1529, 93
    %v2098 = vpop.permute.xlu0 %2097
    %2099 = vrot.lane.b32.xlu0 %v1530, 93
    %v2100 = vpop.permute.xlu0 %2099
    %vm2101 = vcmp.lt.s32.totalorder %v150, 93
    %v2102 = vsel %vm2101, %v2098, %v2100
    %v2103 = vsel %vm2101, %v2100, %v2098
    %s2104 = scalar_lea.vmem [#allocation6], 656
    %v2105 = vld [vmem:[%s2104] sm:$0xff]
    %v2106 = vld [vmem:[%s2104 + $0x8] sm:$0xff]
    %v2107 = vmul.f32 %v2102, %v2105
    %v2108 = vmul.f32 %v2103, %v2106
    %v2109 = vadd.f32 %v2095, %v2107
    %v2110 = vadd.f32 %v2096, %v2108
    %2111 = vrot.lane.b32.xlu0 %v1529, 83
    %v2112 = vpop.permute.xlu0 %2111
    %2113 = vrot.lane.b32.xlu0 %v1530, 83
    %v2114 = vpop.permute.xlu0 %2113
    %vm2115 = vcmp.lt.s32.totalorder %v150, 83
    %v2116 = vsel %vm2115, %v2112, %v2114
    %v2117 = vsel %vm2115, %v2114, %v2112
    %s2118 = scalar_lea.vmem [#allocation6], 672
    %v2119 = vld [vmem:[%s2118] sm:$0xff]
    %v2120 = vld [vmem:[%s2118 + $0x8] sm:$0xff]
    %v2121 = vmul.f32 %v2116, %v2119
    %v2122 = vmul.f32 %v2117, %v2120
    %v2123 = vadd.f32 %v2109, %v2121
    %v2124 = vadd.f32 %v2110, %v2122
    %2125 = vrot.lane.b32.xlu0 %v1529, 82
    %v2126 = vpop.permute.xlu0 %2125
    %2127 = vrot.lane.b32.xlu0 %v1530, 82
    %v2128 = vpop.permute.xlu0 %2127
    %vm2129 = vcmp.lt.s32.totalorder %v150, 82
    %v2130 = vsel %vm2129, %v2126, %v2128
    %v2131 = vsel %vm2129, %v2128, %v2126
    %s2132 = scalar_lea.vmem [#allocation6], 688
    %v2133 = vld [vmem:[%s2132] sm:$0xff]
    %v2134 = vld [vmem:[%s2132 + $0x8] sm:$0xff]
    %v2135 = vmul.f32 %v2130, %v2133
    %v2136 = vmul.f32 %v2131, %v2134
    %v2137 = vadd.f32 %v2123, %v2135
    %v2138 = vadd.f32 %v2124, %v2136
    %2139 = vrot.lane.b32.xlu0 %v1529, 81
    %v2140 = vpop.permute.xlu0 %2139
    %2141 = vrot.lane.b32.xlu0 %v1530, 81
    %v2142 = vpop.permute.xlu0 %2141
    %vm2143 = vcmp.lt.s32.totalorder %v150, 81
    %v2144 = vsel %vm2143, %v2140, %v2142
    %v2145 = vsel %vm2143, %v2142, %v2140
    %s2146 = scalar_lea.vmem [#allocation6], 704
    %v2147 = vld [vmem:[%s2146] sm:$0xff]
    %v2148 = vld [vmem:[%s2146 + $0x8] sm:$0xff]
    %v2149 = vmul.f32 %v2144, %v2147
    %v2150 = vmul.f32 %v2145, %v2148
    %v2151 = vadd.f32 %v2137, %v2149
    %v2152 = vadd.f32 %v2138, %v2150
    %2153 = vrot.lane.b32.xlu0 %v1529, 80
    %v2154 = vpop.permute.xlu0 %2153
    %2155 = vrot.lane.b32.xlu0 %v1530, 80
    %v2156 = vpop.permute.xlu0 %2155
    %vm2157 = vcmp.lt.s32.totalorder %v150, 80
    %v2158 = vsel %vm2157, %v2154, %v2156
    %v2159 = vsel %vm2157, %v2156, %v2154
    %s2160 = scalar_lea.vmem [#allocation6], 720
    %v2161 = vld [vmem:[%s2160] sm:$0xff]
    %v2162 = vld [vmem:[%s2160 + $0x8] sm:$0xff]
    %v2163 = vmul.f32 %v2158, %v2161
    %v2164 = vmul.f32 %v2159, %v2162
    %v2165 = vadd.f32 %v2151, %v2163
    %v2166 = vadd.f32 %v2152, %v2164
    %2167 = vrot.lane.b32.xlu0 %v1529, 79
    %v2168 = vpop.permute.xlu0 %2167
    %2169 = vrot.lane.b32.xlu0 %v1530, 79
    %v2170 = vpop.permute.xlu0 %2169
    %vm2171 = vcmp.lt.s32.totalorder %v150, 79
    %v2172 = vsel %vm2171, %v2168, %v2170
    %v2173 = vsel %vm2171, %v2170, %v2168
    %s2174 = scalar_lea.vmem [#allocation6], 736
    %v2175 = vld [vmem:[%s2174] sm:$0xff]
    %v2176 = vld [vmem:[%s2174 + $0x8] sm:$0xff]
    %v2177 = vmul.f32 %v2172, %v2175
    %v2178 = vmul.f32 %v2173, %v2176
    %v2179 = vadd.f32 %v2165, %v2177
    %v2180 = vadd.f32 %v2166, %v2178
    %2181 = vrot.lane.b32.xlu0 %v1529, 78
    %v2182 = vpop.permute.xlu0 %2181
    %2183 = vrot.lane.b32.xlu0 %v1530, 78
    %v2184 = vpop.permute.xlu0 %2183
    %vm2185 = vcmp.lt.s32.totalorder %v150, 78
    %v2186 = vsel %vm2185, %v2182, %v2184
    %v2187 = vsel %vm2185, %v2184, %v2182
    %s2188 = scalar_lea.vmem [#allocation6], 752
    %v2189 = vld [vmem:[%s2188] sm:$0xff]
    %v2190 = vld [vmem:[%s2188 + $0x8] sm:$0xff]
    %v2191 = vmul.f32 %v2186, %v2189
    %v2192 = vmul.f32 %v2187, %v2190
    %v2193 = vadd.f32 %v2179, %v2191
    %v2194 = vadd.f32 %v2180, %v2192
    %2195 = vrot.lane.b32.xlu0 %v1529, 77
    %v2196 = vpop.permute.xlu0 %2195
    %2197 = vrot.lane.b32.xlu0 %v1530, 77
    %v2198 = vpop.permute.xlu0 %2197
    %vm2199 = vcmp.lt.s32.totalorder %v150, 77
    %v2200 = vsel %vm2199, %v2196, %v2198
    %v2201 = vsel %vm2199, %v2198, %v2196
    %s2202 = scalar_lea.vmem [#allocation6], 768
    %v2203 = vld [vmem:[%s2202] sm:$0xff]
    %v2204 = vld [vmem:[%s2202 + $0x8] sm:$0xff]
    %v2205 = vmul.f32 %v2200, %v2203
    %v2206 = vmul.f32 %v2201, %v2204
    %v2207 = vadd.f32 %v2193, %v2205
    %v2208 = vadd.f32 %v2194, %v2206
    %v2211 = vrot.slane %v2207, 4
    %v2212 = vrot.slane %v2208, 4
    %v2215 = vadd.f32 %v2207, %v2211
    %v2216 = vadd.f32 %v2208, %v2212
    %v2217 = vsel %vm1522, %v2215, 0.0
    %v2218 = vsel %vm1522, %v2216, 0.0
    %v2219 = vadd.f32 %v2217, %v2218
    %2220 = vadd.xlane.f32.xlu0 %v2219
    %v2221 = vpop.xlane.xlu0 %2220
    %v2222 = vrot.slane %v2221, 4
    %v2223 = vadd.f32 %v2221, %v2222
    %v2224 = vrot.slane %v2223, 2
    %v2225 = vadd.f32 %v2223, %v2224
    %v2226 = vrot.slane %v2225, 1
    %v2227 = vadd.f32 %v2225, %v2226
    %s2228 = vtos %v2227
    %v2229 = vrcp.pop 512.0
    %s2230 = vtos %v2229
    %s2231 = smul.f32 %s2228, %s2230
    %v2232 = vstv %s2231
    %v2233 = vsub.f32 %v2215, %v2232
    %v2234 = vsub.f32 %v2216, %v2232
    %v2235 = vmul.f32 %v2233, %v2233
    %v2236 = vmul.f32 %v2234, %v2234
    %v2237 = vsel %vm1522, %v2235, 0.0
    %v2238 = vsel %vm1522, %v2236, 0.0
    %v2239 = vadd.f32 %v2237, %v2238
    %2240 = vadd.xlane.f32.xlu0 %v2239
    %v2241 = vpop.xlane.xlu0 %2240
    %v2242 = vrot.slane %v2241, 4
    %v2243 = vadd.f32 %v2241, %v2242
    %v2244 = vrot.slane %v2243, 2
    %v2245 = vadd.f32 %v2243, %v2244
    %v2246 = vrot.slane %v2245, 1
    %v2247 = vadd.f32 %v2245, %v2246
    %s2248 = vtos %v2247
    %v2249 = vrcp.pop 512.0
    %s2250 = vtos %v2249
    %s2251 = smul.f32 %s2248, %s2250
    %s2252 = sadd.f32 %s2251, 1e-05
    %v2253 = vstv %s2252
    %v2254 = vrsqrt.pop %v2253
    %s2255 = vtos %v2254
    %v2256 = vstv %s2255
    %v2257 = vmul.f32 %v2233, %v2256
    %v2258 = vmul.f32 %v2234, %v2256
    %v2259 = vstv %s88
    %v2260 = vmul.f32 %v2257, %v2259
    %v2261 = vmul.f32 %v2258, %v2259
    %v2262 = vstv %s89
    %v2263 = vadd.f32 %v2260, %v2262
    %v2264 = vadd.f32 %v2261, %v2262
    %v2265 = vmax.f32 %v2263, 0.0
    %v2266 = vmax.f32 %v2264, 0.0
    %v2267 = vxor.u32 %v2265, 2147483648
    %v2268 = vxor.u32 %v2266, 2147483648
    %v2269 = vmul.f32 %v2267, 1.442695
    %v2270 = vpow.pop %v2269
    %v2271 = vmul.f32 %v2268, 1.442695
    %v2272 = vpow.pop %v2271
    %v2273 = vadd.f32 %v2270, 1.0
    %v2274 = vadd.f32 %v2272, 1.0
    %v2275 = vrcp.pop %v2273
    %v2276 = vmul.f32 1.0, %v2275
    %v2277 = vrcp.pop %v2274
    %v2278 = vmul.f32 1.0, %v2277
    %v2281 = vrot.slane %v2215, 2
    %v2282 = vrot.slane %v2216, 2
    %v2285 = vsel %vm1522, %v2281, 0.0
    %v2286 = vsel %vm1522, %v2282, 0.0
    %v2287 = vadd.f32 %v2285, %v2286
    %2288 = vadd.xlane.f32.xlu0 %v2287
    %v2289 = vpop.xlane.xlu0 %2288
    %v2290 = vrot.slane %v2289, 4
    %v2291 = vadd.f32 %v2289, %v2290
    %v2292 = vrot.slane %v2291, 2
    %v2293 = vadd.f32 %v2291, %v2292
    %v2294 = vrot.slane %v2293, 1
    %v2295 = vadd.f32 %v2293, %v2294
    %s2296 = vtos %v2295
    %v2297 = vrcp.pop 512.0
    %s2298 = vtos %v2297
    %s2299 = smul.f32 %s2296, %s2298
    %v2300 = vstv %s2299
    %v2301 = vsub.f32 %v2215, %v2300
    %v2302 = vsub.f32 %v2216, %v2300
    %v2303 = vmul.f32 %v2301, %v2301
    %v2304 = vmul.f32 %v2302, %v2302
    %v2307 = vrot.slane %v2303, 2
    %v2308 = vrot.slane %v2304, 2
    %v2311 = vsel %vm1522, %v2307, 0.0
    %v2312 = vsel %vm1522, %v2308, 0.0
    %v2313 = vadd.f32 %v2311, %v2312
    %2314 = vadd.xlane.f32.xlu0 %v2313
    %v2315 = vpop.xlane.xlu0 %2314
    %v2316 = vrot.slane %v2315, 4
    %v2317 = vadd.f32 %v2315, %v2316
    %v2318 = vrot.slane %v2317, 2
    %v2319 = vadd.f32 %v2317, %v2318
    %v2320 = vrot.slane %v2319, 1
    %v2321 = vadd.f32 %v2319, %v2320
    %s2322 = vtos %v2321
    %v2323 = vrcp.pop 512.0
    %s2324 = vtos %v2323
    %s2325 = smul.f32 %s2322, %s2324
    %s2326 = sadd.f32 %s2325, 1e-05
    %v2327 = vstv %s2326
    %v2328 = vrsqrt.pop %v2327
    %s2329 = vtos %v2328
    %v2330 = vstv %s2329
    %v2331 = vmul.f32 %v2301, %v2330
    %v2332 = vmul.f32 %v2302, %v2330
    %v2333 = vmul.f32 %v2331, %v2259
    %v2334 = vmul.f32 %v2332, %v2259
    %v2335 = vadd.f32 %v2333, %v2262
    %v2336 = vadd.f32 %v2334, %v2262
    %v2337 = vmax.f32 %v2335, 0.0
    %v2338 = vmax.f32 %v2336, 0.0
    %v2339 = vxor.u32 %v2337, 2147483648
    %v2340 = vxor.u32 %v2338, 2147483648
    %v2341 = vmul.f32 %v2339, 1.442695
    %v2342 = vpow.pop %v2341
    %v2343 = vmul.f32 %v2340, 1.442695
    %v2344 = vpow.pop %v2343
    %v2345 = vadd.f32 %v2342, 1.0
    %v2346 = vadd.f32 %v2344, 1.0
    %v2347 = vrcp.pop %v2345
    %v2348 = vmul.f32 1.0, %v2347
    %v2349 = vrcp.pop %v2346
    %v2350 = vmul.f32 1.0, %v2349
    %v2353 = vcombine.low %v2348, %v2350
    %v2355 = vunpack.c.l.s4 1966171168
    %v2356 = vunpack.c.0.s8 %v2355
    %v2357 = vlaneseq
    %v2358 = vshrl.u32 %v2357, 7
    %v2359 = vsub.s32 %v2356, %v2358
    %v2360 = vrot.slane %v2353, %v2359
    %v2361 = vcombine.high %v2360, %v2360
    %v2363 = vunpack.c.l.s4 1966171168
    %v2364 = vunpack.c.0.s8 %v2363
    %v2365 = vlaneseq
    %v2366 = vshrl.u32 %v2365, 7
    %v2367 = vsub.s32 %v2364, %v2366
    %v2368 = vrot.slane %v2360, %v2367
    %v2370 = vunpack.c.l.s4 1966171168
    %v2371 = vunpack.c.0.s8 %v2370
    %v2372 = vlaneseq
    %v2373 = vshrl.u32 %v2372, 7
    %v2374 = vsub.s32 %v2371, %v2373
    %v2375 = vrot.slane %v2361, %v2374
    %v2376 = vcombine.high %v2368, %v2368
    %v2377 = vcombine.high %v2375, %v2375
    %v2378 = vrot.slane %v2348, 2
    %v2379 = vrot.slane %v2350, 2
    %v2382 = vsub.f32 %v2276, %v2378
    %v2383 = vsub.f32 %v2278, %v2379
    %v2386 = vcombine.low %v2382, %v2383
    %v2388 = vunpack.c.l.s4 1966171168
    %v2389 = vunpack.c.0.s8 %v2388
    %v2390 = vlaneseq
    %v2391 = vshrl.u32 %v2390, 7
    %v2392 = vsub.s32 %v2389, %v2391
    %v2393 = vrot.slane %v2386, %v2392
    %v2394 = vcombine.high %v2393, %v2393
    %v2396 = vunpack.c.l.s4 1966171168
    %v2397 = vunpack.c.0.s8 %v2396
    %v2398 = vlaneseq
    %v2399 = vshrl.u32 %v2398, 7
    %v2400 = vsub.s32 %v2397, %v2399
    %v2401 = vrot.slane %v2393, %v2400
    %v2403 = vunpack.c.l.s4 1966171168
    %v2404 = vunpack.c.0.s8 %v2403
    %v2405 = vlaneseq
    %v2406 = vshrl.u32 %v2405, 7
    %v2407 = vsub.s32 %v2404, %v2406
    %v2408 = vrot.slane %v2394, %v2407
    %v2409 = vlaneseq
    %v2410 = vshrl.u32 %v2409, 7
    %v2411 = vsub.s32 0, %v2410
    %v2412 = vrot.slane %v2401, %v2411
    %v2413 = vlaneseq
    %v2414 = vshrl.u32 %v2413, 7
    %v2415 = vsub.s32 1, %v2414
    %v2416 = vrot.slane %v2401, %v2415
    %v2417 = vlaneseq
    %v2418 = vshrl.u32 %v2417, 7
    %v2419 = vsub.s32 0, %v2418
    %v2420 = vrot.slane %v2408, %v2419
    %v2421 = vlaneseq
    %v2422 = vshrl.u32 %v2421, 7
    %v2423 = vsub.s32 1, %v2422
    %v2424 = vrot.slane %v2408, %v2423
    %v2429 = vmul.f32 %v326, %v2412
    %v2430 = vmul.f32 %v326, %v2416
    %v2431 = vmul.f32 %v327, %v2412
    %v2432 = vmul.f32 %v327, %v2416
    %v2433 = vmul.f32 %v328, %v2420
    %v2434 = vmul.f32 %v328, %v2424
    %v2435 = vmul.f32 %v329, %v2420
    %v2436 = vmul.f32 %v329, %v2424
    %v2437 = vlaneseq
    %v2438 = vshrl.u32 %v2437, 7
    %v2439 = vsub.s32 0, %v2438
    %v2440 = vrot.slane %v2376, %v2439
    %v2441 = vlaneseq
    %v2442 = vshrl.u32 %v2441, 7
    %v2443 = vsub.s32 1, %v2442
    %v2444 = vrot.slane %v2376, %v2443
    %v2445 = vlaneseq
    %v2446 = vshrl.u32 %v2445, 7
    %v2447 = vsub.s32 0, %v2446
    %v2448 = vrot.slane %v2377, %v2447
    %v2449 = vlaneseq
    %v2450 = vshrl.u32 %v2449, 7
    %v2451 = vsub.s32 1, %v2450
    %v2452 = vrot.slane %v2377, %v2451
    %v2457 = vadd.f32 %v2440, %v2429
    %v2458 = vadd.f32 %v2444, %v2430
    %v2459 = vadd.f32 %v2440, %v2431
    %v2460 = vadd.f32 %v2444, %v2432
    %v2461 = vadd.f32 %v2448, %v2433
    %v2462 = vadd.f32 %v2452, %v2434
    %v2463 = vadd.f32 %v2448, %v2435
    %v2464 = vadd.f32 %v2452, %v2436
    %v2465 = vmul.f32 %v229, %v2457
    %v2466 = vmul.f32 %v230, %v2458
    %v2467 = vmul.f32 %v231, %v2459
    %v2468 = vmul.f32 %v232, %v2460
    %v2469 = vmul.f32 %v233, %v2461
    %v2470 = vmul.f32 %v234, %v2462
    %v2471 = vmul.f32 %v235, %v2463
    %v2472 = vmul.f32 %v236, %v2464
    %v2473 = vadd.f32 %v2465, %v77
    %v2474 = vadd.f32 %v2466, %v78
    %v2475 = vadd.f32 %v2467, %v79
    %v2476 = vadd.f32 %v2468, %v80
    %v2477 = vadd.f32 %v2469, %v81
    %v2478 = vadd.f32 %v2470, %v82
    %v2479 = vadd.f32 %v2471, %v83
    %v2480 = vadd.f32 %v2472, %v84
    %v2481 = vmax.f32 %v2473, 0.0
    %v2482 = vmax.f32 %v2474, 0.0
    %v2483 = vmax.f32 %v2475, 0.0
    %v2484 = vmax.f32 %v2476, 0.0
    %v2485 = vmax.f32 %v2477, 0.0
    %v2486 = vmax.f32 %v2478, 0.0
    %v2487 = vmax.f32 %v2479, 0.0
    %v2488 = vmax.f32 %v2480, 0.0
    %v2489 = vadd.f32 %v2481, %v2482
    %2490 = vadd.xlane.f32.xlu0 %v2489
    %v2491 = vpop.xlane.xlu0 %2490
    %v2492 = vadd.f32 %v2483, %v2484
    %2493 = vadd.xlane.f32.xlu0 %v2492
    %v2494 = vpop.xlane.xlu0 %2493
    %v2495 = vadd.f32 %v2485, %v2486
    %2496 = vadd.xlane.f32.xlu0 %v2495
    %v2497 = vpop.xlane.xlu0 %2496
    %v2498 = vadd.f32 %v2487, %v2488
    %2499 = vadd.xlane.f32.xlu0 %v2498
    %v2500 = vpop.xlane.xlu0 %2499
    %v2501 = vmul.f32 %v2491, 0.00390625
    %v2502 = vmul.f32 %v2494, 0.00390625
    %v2503 = vmul.f32 %v2497, 0.00390625
    %v2504 = vmul.f32 %v2500, 0.00390625
    %v2509 = vlaneseq
    %v2510 = vshrl.u32 %v2509, 7
    %v2511 = vsub.s32 %v150, %v2510
    %v2512 = vrot.slane %v2501, %v2511
    %v2513 = vlaneseq
    %v2514 = vshrl.u32 %v2513, 7
    %v2515 = vsub.s32 %v338, %v2514
    %v2516 = vrot.slane %v2502, %v2515
    %v2517 = vsel %vm343, %v2516, %v2512
    %v2518 = vlaneseq
    %v2519 = vshrl.u32 %v2518, 7
    %v2520 = vsub.s32 %v150, %v2519
    %v2521 = vrot.slane %v2503, %v2520
    %v2522 = vlaneseq
    %v2523 = vshrl.u32 %v2522, 7
    %v2524 = vsub.s32 %v338, %v2523
    %v2525 = vrot.slane %v2504, %v2524
    %v2526 = vsel %vm343, %v2525, %v2521
    %v2527 = vsel %vm172, %v2526, %v2517
    %vm2529 = vcmask 123904
    %v2530 = vsel %vm2529, %v2527, 0.0
    %2531 = vadd.xlane.f32.xlu0 %v2530
    %v2532 = vpop.xlane.xlu0 %2531
    %v2533 = vrcp.pop 16.0
    %v2534 = vmul.f32 %v2532, %v2533
    %v2536 = vlaneseq
    %v2537 = vshrl.u32 %v2536, 7
    %v2538 = vsub.s32 0, %v2537
    %v2539 = vrot.slane %v2534, %v2538
    %v2540 = vlaneseq
    %v2541 = vshrl.u32 %v2540, 7
    %v2542 = vsub.s32 1, %v2541
    %v2543 = vrot.slane %v2534, %v2542
    %v2546 = vsub.f32 %v2501, %v2539
    %v2547 = vsub.f32 %v2502, %v2539
    %v2548 = vsub.f32 %v2503, %v2543
    %v2549 = vsub.f32 %v2504, %v2543
    %v2550 = vmul.f32 %v2546, %v2546
    %v2551 = vmul.f32 %v2547, %v2547
    %v2552 = vmul.f32 %v2548, %v2548
    %v2553 = vmul.f32 %v2549, %v2549
    %2558 = vset.pattern.permute.xlu0 0
    %2559 = vperm.xlu0 %2558, %v2550
    %v2560 = vpop.permute.xlu0 %2559
    %2561 = vset.pattern.permute.xlu0 0
    %2562 = vperm.xlu0 %2561, %v2551
    %v2563 = vpop.permute.xlu0 %2562
    %2564 = vset.pattern.permute.xlu0 0
    %2565 = vperm.xlu0 %2564, %v2552
    %v2566 = vpop.permute.xlu0 %2565
    %2567 = vset.pattern.permute.xlu0 0
    %2568 = vperm.xlu0 %2567, %v2553
    %v2569 = vpop.permute.xlu0 %2568
    %v2570 = vlaneseq
    %v2571 = vshrl.u32 %v2570, 7
    %v2572 = vsub.s32 %v150, %v2571
    %v2573 = vrot.slane %v2560, %v2572
    %v2574 = vlaneseq
    %v2575 = vshrl.u32 %v2574, 7
    %v2576 = vsub.s32 %v338, %v2575
    %v2577 = vrot.slane %v2563, %v2576
    %v2578 = vsel %vm343, %v2577, %v2573
    %v2579 = vlaneseq
    %v2580 = vshrl.u32 %v2579, 7
    %v2581 = vsub.s32 %v150, %v2580
    %v2582 = vrot.slane %v2566, %v2581
    %v2583 = vlaneseq
    %v2584 = vshrl.u32 %v2583, 7
    %v2585 = vsub.s32 %v338, %v2584
    %v2586 = vrot.slane %v2569, %v2585
    %v2587 = vsel %vm343, %v2586, %v2582
    %v2588 = vsel %vm172, %v2587, %v2578
    %v2590 = vsel %vm2529, %v2588, 0.0
    %2591 = vadd.xlane.f32.xlu0 %v2590
    %v2592 = vpop.xlane.xlu0 %2591
    %v2593 = vmul.f32 %v2592, %v2533
    %v2594 = vadd.f32 %v2593, 1e-06
    %v2595 = vrsqrt.pop %v2594
    %v2597 = vlaneseq
    %v2598 = vshrl.u32 %v2597, 7
    %v2599 = vsub.s32 0, %v2598
    %v2600 = vrot.slane %v2595, %v2599
    %v2601 = vlaneseq
    %v2602 = vshrl.u32 %v2601, 7
    %v2603 = vsub.s32 1, %v2602
    %v2604 = vrot.slane %v2595, %v2603
    %v2607 = vmul.f32 %v2546, %v2600
    %v2608 = vmul.f32 %v2547, %v2600
    %v2609 = vmul.f32 %v2548, %v2604
    %v2610 = vmul.f32 %v2549, %v2604
    %v2611 = vld [vmem:[%s2] sm:$0x1]
    %v2613 = vlaneseq
    %v2614 = vshrl.u32 %v2613, 7
    %v2615 = vsub.s32 0, %v2614
    %v2616 = vrot.slane %v2611, %v2615
    %2618 = vbcast.lane.b32.xlu0 %v2616, 256
    %v2619 = vpop.permute.xlu0 %2618
    %s2621 = sor.u32 256, 8
    %2622 = vbcast.lane.b32.xlu0 %v2616, %s2621
    %v2623 = vpop.permute.xlu0 %2622
    %v2626 = vmul.f32 %v2607, %v2619
    %v2627 = vmul.f32 %v2608, %v2623
    %v2628 = vmul.f32 %v2609, %v2619
    %v2629 = vmul.f32 %v2610, %v2623
    %v2630 = vld [vmem:[%s3] sm:$0x1]
    %v2632 = vlaneseq
    %v2633 = vshrl.u32 %v2632, 7
    %v2634 = vsub.s32 0, %v2633
    %v2635 = vrot.slane %v2630, %v2634
    %2637 = vbcast.lane.b32.xlu0 %v2635, 256
    %v2638 = vpop.permute.xlu0 %2637
    %s2640 = sor.u32 256, 8
    %2641 = vbcast.lane.b32.xlu0 %v2635, %s2640
    %v2642 = vpop.permute.xlu0 %2641
    %v2645 = vadd.f32 %v2626, %v2638
    %v2646 = vadd.f32 %v2627, %v2642
    %v2647 = vadd.f32 %v2628, %v2638
    %v2648 = vadd.f32 %v2629, %v2642
    %2653 = vset.pattern.permute.xlu0 0
    %2654 = vperm.xlu0 %2653, %v2645
    %v2655 = vpop.permute.xlu0 %2654
    %2656 = vset.pattern.permute.xlu0 0
    %2657 = vperm.xlu0 %2656, %v2646
    %v2658 = vpop.permute.xlu0 %2657
    %2659 = vset.pattern.permute.xlu0 0
    %2660 = vperm.xlu0 %2659, %v2647
    %v2661 = vpop.permute.xlu0 %2660
    %2662 = vset.pattern.permute.xlu0 0
    %2663 = vperm.xlu0 %2662, %v2648
    %v2664 = vpop.permute.xlu0 %2663
    %v2665 = vlaneseq
    %v2666 = vshrl.u32 %v2665, 7
    %v2667 = vsub.s32 %v150, %v2666
    %v2668 = vrot.slane %v2655, %v2667
    %v2669 = vlaneseq
    %v2670 = vshrl.u32 %v2669, 7
    %v2671 = vsub.s32 %v338, %v2670
    %v2672 = vrot.slane %v2658, %v2671
    %v2673 = vsel %vm343, %v2672, %v2668
    %v2674 = vlaneseq
    %v2675 = vshrl.u32 %v2674, 7
    %v2676 = vsub.s32 %v150, %v2675
    %v2677 = vrot.slane %v2661, %v2676
    %v2678 = vlaneseq
    %v2679 = vshrl.u32 %v2678, 7
    %v2680 = vsub.s32 %v338, %v2679
    %v2681 = vrot.slane %v2664, %v2680
    %v2682 = vsel %vm343, %v2681, %v2677
    %v2683 = vsel %vm172, %v2682, %v2673
    %2685 = vst.msk [vmem:[#allocation11] sm:$0x3] %vm2529, %v2683
    // Predicated region
    $region42: #{tpu_custom_call.1} parent=1 // pred_check
      _
    $region43: #{tpu_custom_call.1} parent=1 // pred_check_branch
      %2687 = sbr.rel (0) target = $region45
    $region44: #{tpu_custom_call.1} parent=1 // pred_region
      %s2689 = ssub.s32 32, 32
      %2690 = vsyncadd [#allocation4], %s2689
      %s2692 = sshll.u32 [#allocation11], 4
      %s2693 = int_to_ptr.vmem [resolvable:$true] %s2692
      %2695 = dma.vmem_to_hbm [thread:$0]  %s2693, 32, %s6, [#allocation4]
    $region45: #{tpu_custom_call.1} parent=1 // pred_fallthru
      _
    // Predicated region
    $region46: #{tpu_custom_call.1} parent=1 // pred_check
      _
    $region47: #{tpu_custom_call.1} parent=1 // pred_check_branch
      %2697 = sbr.rel (0) target = $region49
    $region48: #{tpu_custom_call.1} parent=1 // pred_region
      %2698 = dma.done [#allocation4], 32
    $region49: #{tpu_custom_call.1} parent=1 // pred_fallthru
      _
    %2699 = vsyncpa [#allocation3], 1
    %2700 = vsyncpa [#allocation7], 1
    %2701 = vsyncpa [#allocation4], 1
    %2702 = vsyncpa [#allocation5], 1
    %2703 = vsyncpa [#allocation10], 1

</llo_original>
